<compile_context>
chip_gen: v7x
topology: tpu7x:2x2x1
jax: 0.10.0
libtpu: 0.0.40
codegen_flags: <defaults>
</compile_context>

<pallas_src>
import functools

import jax
import jax.numpy as jnp
import numpy as np
from jax.experimental import pallas as pl
from jax.experimental.pallas import tpu as pltpu

EPS = 1e-5
VMEM_LIMIT = 48 * 1024 * 1024   # > default scoped limits, < v7x 64 MiB physical

# XLA/Eigen float32 rational erf approximation (lowers cleanly in Mosaic:
# only mul/add/div/clamp).  Matches torch's exact (erf-based) GELU to ~f32 eps.
_ERF_ALPHA = (-2.72614225801306e-10, 2.77068142495902e-08, -2.10102402082508e-06,
              -5.69250639462346e-05, -7.34990630326855e-04, -2.95459980854025e-03,
              -1.60960333262415e-02)
_ERF_BETA = (-1.45660718464996e-05, -2.13374055278905e-04, -1.68282697438203e-03,
             -7.37332916720468e-03, -1.42647390514189e-02)


def _erf_f32(x):
    x = jnp.clip(x, -3.832506856900711, 3.832506856900711)
    x2 = x * x
    p = jnp.full_like(x, _ERF_ALPHA[0])
    for a in _ERF_ALPHA[1:]:
        p = p * x2 + a
    p = p * x
    q = jnp.full_like(x, _ERF_BETA[0])
    for b in _ERF_BETA[1:]:
        q = q * x2 + b
    return p / q


def _gelu(x):
    # exact (erf-based) GELU -- matches torch.nn.GELU() / F.gelu default
    return 0.5 * x * (1.0 + _erf_f32(x * 0.7071067811865476))


def _bn_eval(x, gamma, beta, mean, var):
    return (x - mean) * (gamma * jax.lax.rsqrt(var + EPS)) + beta


def _two_layer(x, w1, w2, vec_h, b2):
    # TwoLayerNN: Linear -> BatchNorm1d(eval) -> GELU -> Linear, + residual
    # vec_h rows: [b1, gamma, beta, running_mean, running_var]   shape (5, H)
    h = jnp.dot(x, w1, preferred_element_type=jnp.float32) + vec_h[0]
    h = _gelu(_bn_eval(h, vec_h[1], vec_h[2], vec_h[3], vec_h[4]))
    o = jnp.dot(h, w2, preferred_element_type=jnp.float32) + b2[0]
    return o + x


def _row_tile(n, target):
    """Largest row tile <= target that divides n and keeps blocks (8,128)-legal."""
    if n <= target:
        return n
    t = (target // 8) * 8
    while t >= 8 and n % t:
        t -= 8
    return t if t >= 8 else n


# ----------------------------- Pallas kernels ------------------------------

def _sim_kernel(xr_ref, xa_ref, o_ref):
    # row-tiled similarity: sim[i, :] = x_rows @ x_all^T  (NT dot_general, no .T)
    o_ref[0] = jax.lax.dot_general(
        xr_ref[0], xa_ref[0], (((1,), (1,)), ((), ())),
        preferred_element_type=jnp.float32)


def _mlp1_kernel(x_ref, w1_ref, w2_ref, vh_ref, b2_ref, o_ref):
    # in_layer1 over a row tile
    o_ref[...] = _two_layer(x_ref[...], w1_ref[...], w2_ref[...],
                            vh_ref[...], b2_ref[...])


def _neighbor_max_kernel(idx_ref, h_ref, o_ref, *, k):
    # out[i, c] = max_{j in 0..k-1} h[idx[i, j], c]
    # Gather of the k top-k rows is done as k one-hot MXU matmuls with a
    # running elementwise max — no (N, N, C) broadcast intermediate.
    idx = idx_ref[0]                                       # (TN, k) int32
    h = h_ref[0]                                           # (N, C)
    tn = idx.shape[0]
    n = h.shape[0]
    col = jax.lax.broadcasted_iota(jnp.int32, (tn, n), 1)  # (TN, N)
    acc = None
    for j in range(k):                                     # k is small & static
        sel = (col == idx[:, j:j + 1]).astype(jnp.float32)  # (TN, N) one-hot
        nb = jnp.dot(sel, h, preferred_element_type=jnp.float32)  # (TN, C)
        acc = nb if acc is None else jnp.maximum(acc, nb)
    o_ref[0] = acc


def _tail_kernel(nmax_ref, x_ref,
                 i1w1_ref, i1w2_ref, i1vh_ref, i1b2_ref,
                 wcs_ref, wcm_ref, bc_ref,
                 o1w1_ref, o1w2_ref, o1vh_ref, o1b2_ref,
                 i2w1_ref, i2w2_ref, i2vh_ref, i2b2_ref,
                 o2w1_ref, o2w2_ref, o2vh_ref, o2b2_ref,
                 out_ref):
    # fused: in_layer1 recompute + 1x1 conv + out_layer1 + residual
    #        + in_layer2 + out_layer2
    x = x_ref[...]                                         # (TM, C) shortcut
    # recompute in_layer1 for this tile (avoids re-reading h1 from HBM)
    h1 = _two_layer(x, i1w1_ref[...], i1w2_ref[...], i1vh_ref[...], i1b2_ref[...])
    e = nmax_ref[...] - h1                                 # amax_j(x_j - x_i)
    y = (jnp.dot(h1, wcs_ref[...], preferred_element_type=jnp.float32)
         + jnp.dot(e, wcm_ref[...], preferred_element_type=jnp.float32)
         + bc_ref[...][0])                                 # multi_head_fc
    z = _two_layer(_gelu(y), o1w1_ref[...], o1w2_ref[...],
                   o1vh_ref[...], o1b2_ref[...])           # out_layer1
    x1 = z + x                                             # + shortcut
    t = _two_layer(x1, i2w1_ref[...], i2w2_ref[...],
                   i2vh_ref[...], i2b2_ref[...])           # in_layer2
    v = _two_layer(_gelu(t), o2w1_ref[...], o2w2_ref[...],
                   o2vh_ref[...], o2b2_ref[...])           # out_layer2
    out_ref[...] = x1 + v


# ------------------------------- wrapper ------------------------------------

def vig_block(x, params, k):
    B, N, C = x.shape
    M = B * N
    TM = _row_tile(M, 512)      # large row tile for MXU utilization
    TN = _row_tile(N, 256)      # row tile over nodes for sim / neighbor-max

    full = lambda i: (0, 0)
    row = lambda i: (i, 0)
    par1 = pltpu.CompilerParams(dimension_semantics=("parallel",),
                                vmem_limit_bytes=VMEM_LIMIT)
    par2 = pltpu.CompilerParams(dimension_semantics=("parallel", "parallel"),
                                vmem_limit_bytes=VMEM_LIMIT)

    # --- kernel 1: similarity sim = x @ x^T, row-tiled, NT contraction ---
    sim = pl.pallas_call(
        _sim_kernel,
        out_shape=jax.ShapeDtypeStruct((B, N, N), jnp.float32),
        grid=(B, N // TN),
        in_specs=[pl.BlockSpec((1, TN, C), lambda b, i: (b, i, 0)),
                  pl.BlockSpec((1, N, C), lambda b, i: (b, 0, 0))],
        out_specs=pl.BlockSpec((1, TN, N), lambda b, i: (b, i, 0)),
        compiler_params=par2,
    )(x, x)

    # --- top-k neighbor indices (XLA glue; dense mask / one_hot removed) ---
    # TODO(synk): top-k itself has no clean Pallas TPU path; kept in XLA.
    _, idx = jax.lax.top_k(sim, k)                         # (B, N, k) int32

    # --- kernel 2: in_layer1 over large row tiles (h1 needed for gather) ---
    x_flat = x.reshape(M, C)
    p1 = params['in_layer1']
    h1_flat = pl.pallas_call(
        _mlp1_kernel,
        out_shape=jax.ShapeDtypeStruct((M, C), jnp.float32),
        grid=(M // TM,),
        in_specs=[pl.BlockSpec((TM, C), row),
                  pl.BlockSpec(p1['w1'].shape, full),
                  pl.BlockSpec(p1['w2'].shape, full),
                  pl.BlockSpec(p1['vec_h'].shape, full),
                  pl.BlockSpec(p1['b2'].shape, full)],
        out_specs=pl.BlockSpec((TM, C), row),
        compiler_params=par1,
    )(x_flat, p1['w1'], p1['w2'], p1['vec_h'], p1['b2'])
    h1 = h1_flat.reshape(B, N, C)

    # --- kernel 3: per-node max over the k gathered neighbor features ---
    nmax = pl.pallas_call(
        functools.partial(_neighbor_max_kernel, k=k),
        out_shape=jax.ShapeDtypeStruct((B, N, C), jnp.float32),
        grid=(B, N // TN),
        in_specs=[pl.BlockSpec((1, TN, k), lambda b, i: (b, i, 0)),
                  pl.BlockSpec((1, N, C), lambda b, i: (b, 0, 0))],
        out_specs=pl.BlockSpec((1, TN, C), lambda b, i: (b, i, 0)),
        compiler_params=par2,
    )(idx, h1)

    # --- kernel 4: fused tail over large row tiles (recomputes in_layer1) ---
    po1, pi2, po2, pc = (params['out_layer1'], params['in_layer2'],
                         params['out_layer2'], params['conv'])
    args = [nmax.reshape(M, C), x_flat,
            p1['w1'], p1['w2'], p1['vec_h'], p1['b2'],
            pc['w_self'], pc['w_max'], pc['b'],
            po1['w1'], po1['w2'], po1['vec_h'], po1['b2'],
            pi2['w1'], pi2['w2'], pi2['vec_h'], pi2['b2'],
            po2['w1'], po2['w2'], po2['vec_h'], po2['b2']]
    in_specs = ([pl.BlockSpec((TM, C), row)] * 2
                + [pl.BlockSpec(a.shape, full) for a in args[2:]])
    wbytes = sum(int(a.size) * 4 for a in args[2:])
    cost = pl.CostEstimate(flops=int(44 * M * C * C),
                           transcendentals=int(12 * M * C),
                           bytes_accessed=int(3 * M * C * 4 + wbytes))
    out_flat = pl.pallas_call(
        _tail_kernel,
        out_shape=jax.ShapeDtypeStruct((M, C), jnp.float32),
        grid=(M // TM,),
        in_specs=in_specs,
        out_specs=pl.BlockSpec((TM, C), row),
        compiler_params=par1,
        cost_estimate=cost,
    )(*args)
    return out_flat.reshape(B, N, C)


# --------------------- deterministic synthetic parameters -------------------

def make_params(key, C):
    keys = iter(jax.random.split(key, 40))

    def lin(cin, cout):
        w = jax.random.normal(next(keys), (cin, cout), jnp.float32) / np.sqrt(cin)
        b = 0.05 * jax.random.normal(next(keys), (cout,), jnp.float32)
        return w, b

    def bn(h):
        gamma = 1.0 + 0.1 * jax.random.normal(next(keys), (h,), jnp.float32)
        beta = 0.1 * jax.random.normal(next(keys), (h,), jnp.float32)
        mean = 0.1 * jax.random.normal(next(keys), (h,), jnp.float32)
        var = 0.5 + 0.5 * jnp.abs(jax.random.normal(next(keys), (h,), jnp.float32))
        return gamma, beta, mean, var

    def two_layer(cin, h):
        w1, b1 = lin(cin, h)
        g, be, m, v = bn(h)
        w2, b2 = lin(h, cin)
        return dict(w1=w1, w2=w2,
                    vec_h=jnp.stack([b1, g, be, m, v], axis=0),   # (5, h)
                    b2=b2.reshape(1, cin))

    params = dict(in_layer1=two_layer(C, C),
                  out_layer1=two_layer(C, C),
                  in_layer2=two_layer(C, 4 * C),
                  out_layer2=two_layer(C, 4 * C))

    # Conv1d(2C, C, kernel=1, groups=1): weight (C_out, 2C_in, 1), bias (C_out,)
    wconv = jax.random.normal(next(keys), (C, 2 * C, 1), jnp.float32) / np.sqrt(2 * C)
    bconv = 0.05 * jax.random.normal(next(keys), (C,), jnp.float32)
    # torch.stack([x, maxdiff], -1).view(B*N, 2C, 1) interleaves channels as
    # [x_0, e_0, x_1, e_1, ...]  ->  de-interleave the conv weight accordingly.
    params['conv'] = dict(w_self=wconv[:, 0::2, 0].T,    # (C_in, C_out)
                          w_max=wconv[:, 1::2, 0].T,
                          b=bconv.reshape(1, C))
    return params


# ----------------------------- pure-JAX reference ---------------------------

def vig_block_ref(x, params, k):
    B, N, C = x.shape

    def two_layer(xf, p):
        h = xf @ p['w1'] + p['vec_h'][0]
        h = _gelu(_bn_eval(h, p['vec_h'][1], p['vec_h'][2],
                           p['vec_h'][3], p['vec_h'][4]))
        return h @ p['w2'] + p['b2'][0] + xf

    sim = jnp.einsum('bnc,bmc->bnm', x, x)
    _, idx = jax.lax.top_k(sim, k)
    shortcut = x
    h1 = two_layer(x.reshape(B * N, C), params['in_layer1']).reshape(B, N, C)
    nb = jax.vmap(lambda h, g: h[g])(h1, idx)              # (B, N, k, C)
    e = jnp.max(nb - h1[:, :, None, :], axis=2)            # (B, N, C)
    pc = params['conv']
    y = (h1.reshape(B * N, C) @ pc['w_self']
         + e.reshape(B * N, C) @ pc['w_max'] + pc['b'][0])
    z = two_layer(_gelu(y), params['out_layer1']).reshape(B, N, C)
    x1 = z + shortcut
    t = two_layer(x1.reshape(B * N, C), params['in_layer2'])
    v = two_layer(_gelu(t), params['out_layer2']).reshape(B, N, C)
    return x1 + v


if __name__ == "__main__":
    B, N, C, K = 2, 16, 8, 9            # input x: (B, N, C) "tokens" layout
    key = jax.random.PRNGKey(0)
    kx, kp = jax.random.split(key)
    x = jax.random.normal(kx, (B, N, C), jnp.float32)
    params = make_params(kp, C)

    out = jax.jit(functools.partial(vig_block, k=K))(x, params)
    out = jax.block_until_ready(out)
    assert out.shape == (B, N, C)

    ref = vig_block_ref(x, params, K)
    np.testing.assert_allclose(np.asarray(out), np.asarray(ref),
                               rtol=1e-4, atol=1e-4)
    print("KERNEL_OK")
</pallas_src>

<mosaic_0001>
module attributes {stable_mosaic.version = 11 : i64} {
  func.func @_mlp1_kernel(%arg0: i32, %arg1: memref<32x8xf32, #tpu.memory_space<vmem>>, %arg2: memref<8x8xf32, #tpu.memory_space<vmem>>, %arg3: memref<8x8xf32, #tpu.memory_space<vmem>>, %arg4: memref<5x8xf32, #tpu.memory_space<vmem>>, %arg5: memref<1x8xf32, #tpu.memory_space<vmem>>, %arg6: memref<32x8xf32, #tpu.memory_space<vmem>>) attributes {dimension_semantics = [#tpu.dimension_semantics<parallel>], iteration_bounds = array<i64: 1>, scalar_prefetch = 0 : i64, scratch_operands = 0 : i64, tpu.core_type = #tpu.core_type<tc>, window_params = [{transform_indices = @transform_0, window_bounds = array<i64: 32, 8>}, {pipeline_mode = #tpu.pipeline_mode<synchronous>, transform_indices = @transform_1, window_bounds = array<i64: 8, 8>}, {pipeline_mode = #tpu.pipeline_mode<synchronous>, transform_indices = @transform_2, window_bounds = array<i64: 8, 8>}, {pipeline_mode = #tpu.pipeline_mode<synchronous>, transform_indices = @transform_3, window_bounds = array<i64: 5, 8>}, {pipeline_mode = #tpu.pipeline_mode<synchronous>, transform_indices = @transform_4, window_bounds = array<i64: 1, 8>}, {transform_indices = @transform_5, window_bounds = array<i64: 32, 8>}]} {
    %c0 = arith.constant 0 : index
    %c0_0 = arith.constant 0 : index
    %0 = vector.load %arg1[%c0, %c0_0] : memref<32x8xf32, #tpu.memory_space<vmem>>, vector<32x8xf32>
    %c0_1 = arith.constant 0 : index
    %c0_2 = arith.constant 0 : index
    %1 = vector.load %arg2[%c0_1, %c0_2] : memref<8x8xf32, #tpu.memory_space<vmem>>, vector<8x8xf32>
    %c0_3 = arith.constant 0 : index
    %c0_4 = arith.constant 0 : index
    %2 = vector.load %arg3[%c0_3, %c0_4] : memref<8x8xf32, #tpu.memory_space<vmem>>, vector<8x8xf32>
    %c0_5 = arith.constant 0 : index
    %c0_6 = arith.constant 0 : index
    %3 = vector.load %arg4[%c0_5, %c0_6] : memref<5x8xf32, #tpu.memory_space<vmem>>, vector<5x8xf32>
    %c0_7 = arith.constant 0 : index
    %c0_8 = arith.constant 0 : index
    %4 = vector.load %arg5[%c0_7, %c0_8] : memref<1x8xf32, #tpu.memory_space<vmem>>, vector<1x8xf32>
    %cst = arith.constant dense<0.000000e+00> : vector<32x8xf32>
    %5 = tpu.matmul %0, %1, %cst {dimension_numbers = #tpu.dot_dimension_numbers<[1], [0], [0], [1], [0, 0, 1, 1], [], []>} : vector<32x8xf32>, vector<8x8xf32>, vector<32x8xf32> -> vector<32x8xf32>
    %6 = vector.extract_strided_slice %3 {offsets = [0, 0], sizes = [1, 8], strides = [1, 1]} : vector<5x8xf32> to vector<1x8xf32>
    %7 = vector.shape_cast %6 : vector<1x8xf32> to vector<8xf32>
    %8 = vector.shape_cast %7 : vector<8xf32> to vector<1x8xf32>
    %9 = vector.broadcast %8 : vector<1x8xf32> to vector<32x8xf32>
    %10 = arith.addf %5, %9 : vector<32x8xf32>
    %11 = vector.extract_strided_slice %3 {offsets = [1, 0], sizes = [1, 8], strides = [1, 1]} : vector<5x8xf32> to vector<1x8xf32>
    %12 = vector.shape_cast %11 : vector<1x8xf32> to vector<8xf32>
    %13 = vector.extract_strided_slice %3 {offsets = [2, 0], sizes = [1, 8], strides = [1, 1]} : vector<5x8xf32> to vector<1x8xf32>
    %14 = vector.shape_cast %13 : vector<1x8xf32> to vector<8xf32>
    %15 = vector.extract_strided_slice %3 {offsets = [3, 0], sizes = [1, 8], strides = [1, 1]} : vector<5x8xf32> to vector<1x8xf32>
    %16 = vector.shape_cast %15 : vector<1x8xf32> to vector<8xf32>
    %17 = vector.extract_strided_slice %3 {offsets = [4, 0], sizes = [1, 8], strides = [1, 1]} : vector<5x8xf32> to vector<1x8xf32>
    %18 = vector.shape_cast %17 : vector<1x8xf32> to vector<8xf32>
    %19 = vector.shape_cast %16 : vector<8xf32> to vector<1x8xf32>
    %20 = vector.broadcast %19 : vector<1x8xf32> to vector<32x8xf32>
    %21 = arith.subf %10, %20 : vector<32x8xf32>
    %cst_9 = arith.constant 9.99999974E-6 : f32
    %22 = vector.broadcast %cst_9 : f32 to vector<8xf32>
    %23 = arith.addf %18, %22 : vector<8xf32>
    %24 = math.rsqrt %23 : vector<8xf32>
    %25 = arith.mulf %12, %24 : vector<8xf32>
    %26 = vector.shape_cast %25 : vector<8xf32> to vector<1x8xf32>
    %27 = vector.broadcast %26 : vector<1x8xf32> to vector<32x8xf32>
    %28 = arith.mulf %21, %27 : vector<32x8xf32>
    %29 = vector.shape_cast %14 : vector<8xf32> to vector<1x8xf32>
    %30 = vector.broadcast %29 : vector<1x8xf32> to vector<32x8xf32>
    %31 = arith.addf %28, %30 : vector<32x8xf32>
    %cst_10 = arith.constant 5.000000e-01 : f32
    %32 = vector.broadcast %cst_10 : f32 to vector<32x8xf32>
    %33 = arith.mulf %32, %31 : vector<32x8xf32>
    %cst_11 = arith.constant 0.707106769 : f32
    %34 = vector.broadcast %cst_11 : f32 to vector<32x8xf32>
    %35 = arith.mulf %31, %34 : vector<32x8xf32>
    %cst_12 = arith.constant -3.8325069 : f32
    %cst_13 = arith.constant 3.8325069 : f32
    %36 = vector.broadcast %cst_12 : f32 to vector<32x8xf32>
    %37 = arith.maximumf %36, %35 : vector<32x8xf32>
    %38 = vector.broadcast %cst_13 : f32 to vector<32x8xf32>
    %39 = arith.minimumf %38, %37 : vector<32x8xf32>
    %40 = arith.mulf %39, %39 : vector<32x8xf32>
    %cst_14 = arith.constant -2.72614237E-10 : f32
    %41 = vector.broadcast %cst_14 : f32 to vector<32x8xf32>
    %42 = arith.mulf %41, %40 : vector<32x8xf32>
    %cst_15 = arith.constant 2.77068146E-8 : f32
    %43 = vector.broadcast %cst_15 : f32 to vector<32x8xf32>
    %44 = arith.addf %42, %43 : vector<32x8xf32>
    %45 = arith.mulf %44, %40 : vector<32x8xf32>
    %cst_16 = arith.constant -2.10102394E-6 : f32
    %46 = vector.broadcast %cst_16 : f32 to vector<32x8xf32>
    %47 = arith.addf %45, %46 : vector<32x8xf32>
    %48 = arith.mulf %47, %40 : vector<32x8xf32>
    %cst_17 = arith.constant -5.69250624E-5 : f32
    %49 = vector.broadcast %cst_17 : f32 to vector<32x8xf32>
    %50 = arith.addf %48, %49 : vector<32x8xf32>
    %51 = arith.mulf %50, %40 : vector<32x8xf32>
    %cst_18 = arith.constant -7.34990637E-4 : f32
    %52 = vector.broadcast %cst_18 : f32 to vector<32x8xf32>
    %53 = arith.addf %51, %52 : vector<32x8xf32>
    %54 = arith.mulf %53, %40 : vector<32x8xf32>
    %cst_19 = arith.constant -2.954600e-03 : f32
    %55 = vector.broadcast %cst_19 : f32 to vector<32x8xf32>
    %56 = arith.addf %54, %55 : vector<32x8xf32>
    %57 = arith.mulf %56, %40 : vector<32x8xf32>
    %cst_20 = arith.constant -0.0160960332 : f32
    %58 = vector.broadcast %cst_20 : f32 to vector<32x8xf32>
    %59 = arith.addf %57, %58 : vector<32x8xf32>
    %60 = arith.mulf %59, %39 : vector<32x8xf32>
    %cst_21 = arith.constant -1.45660715E-5 : f32
    %61 = vector.broadcast %cst_21 : f32 to vector<32x8xf32>
    %62 = arith.mulf %61, %40 : vector<32x8xf32>
    %cst_22 = arith.constant -2.13374049E-4 : f32
    %63 = vector.broadcast %cst_22 : f32 to vector<32x8xf32>
    %64 = arith.addf %62, %63 : vector<32x8xf32>
    %65 = arith.mulf %64, %40 : vector<32x8xf32>
    %cst_23 = arith.constant -0.00168282702 : f32
    %66 = vector.broadcast %cst_23 : f32 to vector<32x8xf32>
    %67 = arith.addf %65, %66 : vector<32x8xf32>
    %68 = arith.mulf %67, %40 : vector<32x8xf32>
    %cst_24 = arith.constant -0.00737332925 : f32
    %69 = vector.broadcast %cst_24 : f32 to vector<32x8xf32>
    %70 = arith.addf %68, %69 : vector<32x8xf32>
    %71 = arith.mulf %70, %40 : vector<32x8xf32>
    %cst_25 = arith.constant -0.0142647391 : f32
    %72 = vector.broadcast %cst_25 : f32 to vector<32x8xf32>
    %73 = arith.addf %71, %72 : vector<32x8xf32>
    %74 = arith.divf %60, %73 : vector<32x8xf32>
    %cst_26 = arith.constant 1.000000e+00 : f32
    %75 = vector.broadcast %cst_26 : f32 to vector<32x8xf32>
    %76 = arith.addf %75, %74 : vector<32x8xf32>
    %77 = arith.mulf %33, %76 : vector<32x8xf32>
    %cst_27 = arith.constant dense<0.000000e+00> : vector<32x8xf32>
    %78 = tpu.matmul %77, %2, %cst_27 {dimension_numbers = #tpu.dot_dimension_numbers<[1], [0], [0], [1], [0, 0, 1, 1], [], []>} : vector<32x8xf32>, vector<8x8xf32>, vector<32x8xf32> -> vector<32x8xf32>
    %79 = vector.shape_cast %4 : vector<1x8xf32> to vector<8xf32>
    %80 = vector.shape_cast %79 : vector<8xf32> to vector<1x8xf32>
    %81 = vector.broadcast %80 : vector<1x8xf32> to vector<32x8xf32>
    %82 = arith.addf %78, %81 : vector<32x8xf32>
    %83 = arith.addf %82, %0 : vector<32x8xf32>
    %c0_28 = arith.constant 0 : index
    %c0_29 = arith.constant 0 : index
    %84 = vector.load %arg6[%c0_28, %c0_29] : memref<32x8xf32, #tpu.memory_space<vmem>>, vector<32x8xf32>
    tpu.vector_store %arg6[%c0_28, %c0_29], %83 {strides = array<i32>} : memref<32x8xf32, #tpu.memory_space<vmem>>, vector<32x8xf32>,
    return
  }
  func.func @transform_0(%arg0: i32) -> (i32, i32) {
    %c0_i32 = arith.constant 0 : i32
    %c0_i32_0 = arith.constant 0 : i32
    return %arg0, %c0_i32 : i32, i32
  }
  func.func @transform_1(%arg0: i32) -> (i32, i32) {
    %c0_i32 = arith.constant 0 : i32
    %c0_i32_0 = arith.constant 0 : i32
    %c0_i32_1 = arith.constant 0 : i32
    return %c0_i32, %c0_i32_0 : i32, i32
  }
  func.func @transform_2(%arg0: i32) -> (i32, i32) {
    %c0_i32 = arith.constant 0 : i32
    %c0_i32_0 = arith.constant 0 : i32
    %c0_i32_1 = arith.constant 0 : i32
    return %c0_i32, %c0_i32_0 : i32, i32
  }
  func.func @transform_3(%arg0: i32) -> (i32, i32) {
    %c0_i32 = arith.constant 0 : i32
    %c0_i32_0 = arith.constant 0 : i32
    %c0_i32_1 = arith.constant 0 : i32
    return %c0_i32, %c0_i32_0 : i32, i32
  }
  func.func @transform_4(%arg0: i32) -> (i32, i32) {
    %c0_i32 = arith.constant 0 : i32
    %c0_i32_0 = arith.constant 0 : i32
    %c0_i32_1 = arith.constant 0 : i32
    return %c0_i32, %c0_i32_0 : i32, i32
  }
  func.func @transform_5(%arg0: i32) -> (i32, i32) {
    %c0_i32 = arith.constant 0 : i32
    %c0_i32_0 = arith.constant 0 : i32
    return %arg0, %c0_i32 : i32, i32
  }
}

module attributes {stable_mosaic.version = 11 : i64} {
  func.func @_sim_kernel(%arg0: i32, %arg1: i32, %arg2: memref<1x16x8xf32, #tpu.memory_space<vmem>>, %arg3: memref<1x16x8xf32, #tpu.memory_space<vmem>>, %arg4: memref<1x16x16xf32, #tpu.memory_space<vmem>>) attributes {dimension_semantics = [#tpu.dimension_semantics<parallel>, #tpu.dimension_semantics<parallel>], iteration_bounds = array<i64: 2, 1>, scalar_prefetch = 0 : i64, scratch_operands = 0 : i64, tpu.core_type = #tpu.core_type<tc>, window_params = [{transform_indices = @transform_0, window_bounds = array<i64: 1, 16, 8>}, {transform_indices = @transform_1, window_bounds = array<i64: 1, 16, 8>}, {transform_indices = @transform_2, window_bounds = array<i64: 1, 16, 16>}]} {
    %c0 = arith.constant 0 : index
    %c0_0 = arith.constant 0 : index
    %c0_1 = arith.constant 0 : index
    %0 = vector.load %arg2[%c0, %c0_0, %c0_1] : memref<1x16x8xf32, #tpu.memory_space<vmem>>, vector<1x16x8xf32>
    %1 = vector.shape_cast %0 : vector<1x16x8xf32> to vector<16x8xf32>
    %c0_2 = arith.constant 0 : index
    %c0_3 = arith.constant 0 : index
    %c0_4 = arith.constant 0 : index
    %2 = vector.load %arg3[%c0_2, %c0_3, %c0_4] : memref<1x16x8xf32, #tpu.memory_space<vmem>>, vector<1x16x8xf32>
    %3 = vector.shape_cast %2 : vector<1x16x8xf32> to vector<16x8xf32>
    %cst = arith.constant dense<0.000000e+00> : vector<16x16xf32>
    %4 = tpu.matmul %1, %3, %cst {dimension_numbers = #tpu.dot_dimension_numbers<[1], [1], [0], [0], [0, 0, 1, 0], [], []>} : vector<16x8xf32>, vector<16x8xf32>, vector<16x16xf32> -> vector<16x16xf32>
    %c0_5 = arith.constant 0 : index
    %c0_6 = arith.constant 0 : index
    %c0_7 = arith.constant 0 : index
    %5 = vector.load %arg4[%c0_5, %c0_6, %c0_7] : memref<1x16x16xf32, #tpu.memory_space<vmem>>, vector<1x16x16xf32>
    %6 = vector.shape_cast %5 : vector<1x16x16xf32> to vector<16x16xf32>
    %7 = vector.shape_cast %4 : vector<16x16xf32> to vector<1x16x16xf32>
    tpu.vector_store %arg4[%c0_5, %c0_6, %c0_7], %7 {strides = array<i32>} : memref<1x16x16xf32, #tpu.memory_space<vmem>>, vector<1x16x16xf32>,
    return
  }
  func.func @transform_0(%arg0: i32, %arg1: i32) -> (i32, i32, i32) {
    %c0_i32 = arith.constant 0 : i32
    %c0_i32_0 = arith.constant 0 : i32
    return %arg0, %arg1, %c0_i32 : i32, i32, i32
  }
  func.func @transform_1(%arg0: i32, %arg1: i32) -> (i32, i32, i32) {
    %c0_i32 = arith.constant 0 : i32
    %c0_i32_0 = arith.constant 0 : i32
    %c0_i32_1 = arith.constant 0 : i32
    return %arg0, %c0_i32, %c0_i32_0 : i32, i32, i32
  }
  func.func @transform_2(%arg0: i32, %arg1: i32) -> (i32, i32, i32) {
    %c0_i32 = arith.constant 0 : i32
    %c0_i32_0 = arith.constant 0 : i32
    return %arg0, %arg1, %c0_i32 : i32, i32, i32
  }
}

module attributes {stable_mosaic.version = 11 : i64} {
  func.func @_neighbor_max_kernel(%arg0: i32, %arg1: i32, %arg2: memref<1x16x9xi32, #tpu.memory_space<vmem>>, %arg3: memref<1x16x8xf32, #tpu.memory_space<vmem>>, %arg4: memref<1x16x8xf32, #tpu.memory_space<vmem>>) attributes {dimension_semantics = [#tpu.dimension_semantics<parallel>, #tpu.dimension_semantics<parallel>], iteration_bounds = array<i64: 2, 1>, scalar_prefetch = 0 : i64, scratch_operands = 0 : i64, tpu.core_type = #tpu.core_type<tc>, window_params = [{transform_indices = @transform_0, window_bounds = array<i64: 1, 16, 9>}, {transform_indices = @transform_1, window_bounds = array<i64: 1, 16, 8>}, {transform_indices = @transform_2, window_bounds = array<i64: 1, 16, 8>}]} {
    %c0 = arith.constant 0 : index
    %c0_0 = arith.constant 0 : index
    %c0_1 = arith.constant 0 : index
    %0 = vector.load %arg2[%c0, %c0_0, %c0_1] : memref<1x16x9xi32, #tpu.memory_space<vmem>>, vector<1x16x9xi32>
    %1 = vector.shape_cast %0 : vector<1x16x9xi32> to vector<16x9xi32>
    %c0_2 = arith.constant 0 : index
    %c0_3 = arith.constant 0 : index
    %c0_4 = arith.constant 0 : index
    %2 = vector.load %arg3[%c0_2, %c0_3, %c0_4] : memref<1x16x8xf32, #tpu.memory_space<vmem>>, vector<1x16x8xf32>
    %3 = vector.shape_cast %2 : vector<1x16x8xf32> to vector<16x8xf32>
    %4 = tpu.iota {dimensions = array<i32: 1>} : vector<16x16xi32>
    %5 = vector.extract_strided_slice %1 {offsets = [0, 0], sizes = [16, 1], strides = [1, 1]} : vector<16x9xi32> to vector<16x1xi32>
    %6 = vector.broadcast %5 : vector<16x1xi32> to vector<16x16xi32>
    %7 = arith.cmpi eq, %4, %6 : vector<16x16xi32>
    %8 = arith.extui %7 : vector<16x16xi1> to vector<16x16xi32>
    %9 = arith.sitofp %8 : vector<16x16xi32> to vector<16x16xf32>
    %cst = arith.constant dense<0.000000e+00> : vector<16x8xf32>
    %10 = tpu.matmul %9, %3, %cst {dimension_numbers = #tpu.dot_dimension_numbers<[1], [0], [0], [1], [0, 0, 1, 1], [], []>} : vector<16x16xf32>, vector<16x8xf32>, vector<16x8xf32> -> vector<16x8xf32>
    %11 = vector.extract_strided_slice %1 {offsets = [0, 1], sizes = [16, 1], strides = [1, 1]} : vector<16x9xi32> to vector<16x1xi32>
    %12 = vector.broadcast %11 : vector<16x1xi32> to vector<16x16xi32>
    %13 = arith.cmpi eq, %4, %12 : vector<16x16xi32>
    %14 = arith.extui %13 : vector<16x16xi1> to vector<16x16xi32>
    %15 = arith.sitofp %14 : vector<16x16xi32> to vector<16x16xf32>
    %cst_5 = arith.constant dense<0.000000e+00> : vector<16x8xf32>
    %16 = tpu.matmul %15, %3, %cst_5 {dimension_numbers = #tpu.dot_dimension_numbers<[1], [0], [0], [1], [0, 0, 1, 1], [], []>} : vector<16x16xf32>, vector<16x8xf32>, vector<16x8xf32> -> vector<16x8xf32>
    %17 = arith.maximumf %10, %16 : vector<16x8xf32>
    %18 = vector.extract_strided_slice %1 {offsets = [0, 2], sizes = [16, 1], strides = [1, 1]} : vector<16x9xi32> to vector<16x1xi32>
    %19 = vector.broadcast %18 : vector<16x1xi32> to vector<16x16xi32>
    %20 = arith.cmpi eq, %4, %19 : vector<16x16xi32>
    %21 = arith.extui %20 : vector<16x16xi1> to vector<16x16xi32>
    %22 = arith.sitofp %21 : vector<16x16xi32> to vector<16x16xf32>
    %cst_6 = arith.constant dense<0.000000e+00> : vector<16x8xf32>
    %23 = tpu.matmul %22, %3, %cst_6 {dimension_numbers = #tpu.dot_dimension_numbers<[1], [0], [0], [1], [0, 0, 1, 1], [], []>} : vector<16x16xf32>, vector<16x8xf32>, vector<16x8xf32> -> vector<16x8xf32>
    %24 = arith.maximumf %17, %23 : vector<16x8xf32>
    %25 = vector.extract_strided_slice %1 {offsets = [0, 3], sizes = [16, 1], strides = [1, 1]} : vector<16x9xi32> to vector<16x1xi32>
    %26 = vector.broadcast %25 : vector<16x1xi32> to vector<16x16xi32>
    %27 = arith.cmpi eq, %4, %26 : vector<16x16xi32>
    %28 = arith.extui %27 : vector<16x16xi1> to vector<16x16xi32>
    %29 = arith.sitofp %28 : vector<16x16xi32> to vector<16x16xf32>
    %cst_7 = arith.constant dense<0.000000e+00> : vector<16x8xf32>
    %30 = tpu.matmul %29, %3, %cst_7 {dimension_numbers = #tpu.dot_dimension_numbers<[1], [0], [0], [1], [0, 0, 1, 1], [], []>} : vector<16x16xf32>, vector<16x8xf32>, vector<16x8xf32> -> vector<16x8xf32>
    %31 = arith.maximumf %24, %30 : vector<16x8xf32>
    %32 = vector.extract_strided_slice %1 {offsets = [0, 4], sizes = [16, 1], strides = [1, 1]} : vector<16x9xi32> to vector<16x1xi32>
    %33 = vector.broadcast %32 : vector<16x1xi32> to vector<16x16xi32>
    %34 = arith.cmpi eq, %4, %33 : vector<16x16xi32>
    %35 = arith.extui %34 : vector<16x16xi1> to vector<16x16xi32>
    %36 = arith.sitofp %35 : vector<16x16xi32> to vector<16x16xf32>
    %cst_8 = arith.constant dense<0.000000e+00> : vector<16x8xf32>
    %37 = tpu.matmul %36, %3, %cst_8 {dimension_numbers = #tpu.dot_dimension_numbers<[1], [0], [0], [1], [0, 0, 1, 1], [], []>} : vector<16x16xf32>, vector<16x8xf32>, vector<16x8xf32> -> vector<16x8xf32>
    %38 = arith.maximumf %31, %37 : vector<16x8xf32>
    %39 = vector.extract_strided_slice %1 {offsets = [0, 5], sizes = [16, 1], strides = [1, 1]} : vector<16x9xi32> to vector<16x1xi32>
    %40 = vector.broadcast %39 : vector<16x1xi32> to vector<16x16xi32>
    %41 = arith.cmpi eq, %4, %40 : vector<16x16xi32>
    %42 = arith.extui %41 : vector<16x16xi1> to vector<16x16xi32>
    %43 = arith.sitofp %42 : vector<16x16xi32> to vector<16x16xf32>
    %cst_9 = arith.constant dense<0.000000e+00> : vector<16x8xf32>
    %44 = tpu.matmul %43, %3, %cst_9 {dimension_numbers = #tpu.dot_dimension_numbers<[1], [0], [0], [1], [0, 0, 1, 1], [], []>} : vector<16x16xf32>, vector<16x8xf32>, vector<16x8xf32> -> vector<16x8xf32>
    %45 = arith.maximumf %38, %44 : vector<16x8xf32>
    %46 = vector.extract_strided_slice %1 {offsets = [0, 6], sizes = [16, 1], strides = [1, 1]} : vector<16x9xi32> to vector<16x1xi32>
    %47 = vector.broadcast %46 : vector<16x1xi32> to vector<16x16xi32>
    %48 = arith.cmpi eq, %4, %47 : vector<16x16xi32>
    %49 = arith.extui %48 : vector<16x16xi1> to vector<16x16xi32>
    %50 = arith.sitofp %49 : vector<16x16xi32> to vector<16x16xf32>
    %cst_10 = arith.constant dense<0.000000e+00> : vector<16x8xf32>
    %51 = tpu.matmul %50, %3, %cst_10 {dimension_numbers = #tpu.dot_dimension_numbers<[1], [0], [0], [1], [0, 0, 1, 1], [], []>} : vector<16x16xf32>, vector<16x8xf32>, vector<16x8xf32> -> vector<16x8xf32>
    %52 = arith.maximumf %45, %51 : vector<16x8xf32>
    %53 = vector.extract_strided_slice %1 {offsets = [0, 7], sizes = [16, 1], strides = [1, 1]} : vector<16x9xi32> to vector<16x1xi32>
    %54 = vector.broadcast %53 : vector<16x1xi32> to vector<16x16xi32>
    %55 = arith.cmpi eq, %4, %54 : vector<16x16xi32>
    %56 = arith.extui %55 : vector<16x16xi1> to vector<16x16xi32>
    %57 = arith.sitofp %56 : vector<16x16xi32> to vector<16x16xf32>
    %cst_11 = arith.constant dense<0.000000e+00> : vector<16x8xf32>
    %58 = tpu.matmul %57, %3, %cst_11 {dimension_numbers = #tpu.dot_dimension_numbers<[1], [0], [0], [1], [0, 0, 1, 1], [], []>} : vector<16x16xf32>, vector<16x8xf32>, vector<16x8xf32> -> vector<16x8xf32>
    %59 = arith.maximumf %52, %58 : vector<16x8xf32>
    %60 = vector.extract_strided_slice %1 {offsets = [0, 8], sizes = [16, 1], strides = [1, 1]} : vector<16x9xi32> to vector<16x1xi32>
    %61 = vector.broadcast %60 : vector<16x1xi32> to vector<16x16xi32>
    %62 = arith.cmpi eq, %4, %61 : vector<16x16xi32>
    %63 = arith.extui %62 : vector<16x16xi1> to vector<16x16xi32>
    %64 = arith.sitofp %63 : vector<16x16xi32> to vector<16x16xf32>
    %cst_12 = arith.constant dense<0.000000e+00> : vector<16x8xf32>
    %65 = tpu.matmul %64, %3, %cst_12 {dimension_numbers = #tpu.dot_dimension_numbers<[1], [0], [0], [1], [0, 0, 1, 1], [], []>} : vector<16x16xf32>, vector<16x8xf32>, vector<16x8xf32> -> vector<16x8xf32>
    %66 = arith.maximumf %59, %65 : vector<16x8xf32>
    %c0_13 = arith.constant 0 : index
    %c0_14 = arith.constant 0 : index
    %c0_15 = arith.constant 0 : index
    %67 = vector.load %arg4[%c0_13, %c0_14, %c0_15] : memref<1x16x8xf32, #tpu.memory_space<vmem>>, vector<1x16x8xf32>
    %68 = vector.shape_cast %67 : vector<1x16x8xf32> to vector<16x8xf32>
    %69 = vector.shape_cast %66 : vector<16x8xf32> to vector<1x16x8xf32>
    tpu.vector_store %arg4[%c0_13, %c0_14, %c0_15], %69 {strides = array<i32>} : memref<1x16x8xf32, #tpu.memory_space<vmem>>, vector<1x16x8xf32>,
    return
  }
  func.func @transform_0(%arg0: i32, %arg1: i32) -> (i32, i32, i32) {
    %c0_i32 = arith.constant 0 : i32
    %c0_i32_0 = arith.constant 0 : i32
    return %arg0, %arg1, %c0_i32 : i32, i32, i32
  }
  func.func @transform_1(%arg0: i32, %arg1: i32) -> (i32, i32, i32) {
    %c0_i32 = arith.constant 0 : i32
    %c0_i32_0 = arith.constant 0 : i32
    %c0_i32_1 = arith.constant 0 : i32
    return %arg0, %c0_i32, %c0_i32_0 : i32, i32, i32
  }
  func.func @transform_2(%arg0: i32, %arg1: i32) -> (i32, i32, i32) {
    %c0_i32 = arith.constant 0 : i32
    %c0_i32_0 = arith.constant 0 : i32
    return %arg0, %arg1, %c0_i32 : i32, i32, i32
  }
}

module attributes {stable_mosaic.version = 11 : i64} {
  func.func @_tail_kernel(%arg0: i32, %arg1: memref<32x8xf32, #tpu.memory_space<vmem>>, %arg2: memref<32x8xf32, #tpu.memory_space<vmem>>, %arg3: memref<8x8xf32, #tpu.memory_space<vmem>>, %arg4: memref<8x8xf32, #tpu.memory_space<vmem>>, %arg5: memref<5x8xf32, #tpu.memory_space<vmem>>, %arg6: memref<1x8xf32, #tpu.memory_space<vmem>>, %arg7: memref<8x8xf32, #tpu.memory_space<vmem>>, %arg8: memref<8x8xf32, #tpu.memory_space<vmem>>, %arg9: memref<1x8xf32, #tpu.memory_space<vmem>>, %arg10: memref<8x8xf32, #tpu.memory_space<vmem>>, %arg11: memref<8x8xf32, #tpu.memory_space<vmem>>, %arg12: memref<5x8xf32, #tpu.memory_space<vmem>>, %arg13: memref<1x8xf32, #tpu.memory_space<vmem>>, %arg14: memref<8x32xf32, #tpu.memory_space<vmem>>, %arg15: memref<32x8xf32, #tpu.memory_space<vmem>>, %arg16: memref<5x32xf32, #tpu.memory_space<vmem>>, %arg17: memref<1x8xf32, #tpu.memory_space<vmem>>, %arg18: memref<8x32xf32, #tpu.memory_space<vmem>>, %arg19: memref<32x8xf32, #tpu.memory_space<vmem>>, %arg20: memref<5x32xf32, #tpu.memory_space<vmem>>, %arg21: memref<1x8xf32, #tpu.memory_space<vmem>>, %arg22: memref<32x8xf32, #tpu.memory_space<vmem>>) attributes {dimension_semantics = [#tpu.dimension_semantics<parallel>], iteration_bounds = array<i64: 1>, scalar_prefetch = 0 : i64, scratch_operands = 0 : i64, tpu.core_type = #tpu.core_type<tc>, window_params = [{transform_indices = @transform_0, window_bounds = array<i64: 32, 8>}, {transform_indices = @transform_1, window_bounds = array<i64: 32, 8>}, {pipeline_mode = #tpu.pipeline_mode<synchronous>, transform_indices = @transform_2, window_bounds = array<i64: 8, 8>}, {pipeline_mode = #tpu.pipeline_mode<synchronous>, transform_indices = @transform_3, window_bounds = array<i64: 8, 8>}, {pipeline_mode = #tpu.pipeline_mode<synchronous>, transform_indices = @transform_4, window_bounds = array<i64: 5, 8>}, {pipeline_mode = #tpu.pipeline_mode<synchronous>, transform_indices = @transform_5, window_bounds = array<i64: 1, 8>}, {pipeline_mode = #tpu.pipeline_mode<synchronous>, transform_indices = @transform_6, window_bounds = array<i64: 8, 8>}, {pipeline_mode = #tpu.pipeline_mode<synchronous>, transform_indices = @transform_7, window_bounds = array<i64: 8, 8>}, {pipeline_mode = #tpu.pipeline_mode<synchronous>, transform_indices = @transform_8, window_bounds = array<i64: 1, 8>}, {pipeline_mode = #tpu.pipeline_mode<synchronous>, transform_indices = @transform_9, window_bounds = array<i64: 8, 8>}, {pipeline_mode = #tpu.pipeline_mode<synchronous>, transform_indices = @transform_10, window_bounds = array<i64: 8, 8>}, {pipeline_mode = #tpu.pipeline_mode<synchronous>, transform_indices = @transform_11, window_bounds = array<i64: 5, 8>}, {pipeline_mode = #tpu.pipeline_mode<synchronous>, transform_indices = @transform_12, window_bounds = array<i64: 1, 8>}, {pipeline_mode = #tpu.pipeline_mode<synchronous>, transform_indices = @transform_13, window_bounds = array<i64: 8, 32>}, {pipeline_mode = #tpu.pipeline_mode<synchronous>, transform_indices = @transform_14, window_bounds = array<i64: 32, 8>}, {pipeline_mode = #tpu.pipeline_mode<synchronous>, transform_indices = @transform_15, window_bounds = array<i64: 5, 32>}, {pipeline_mode = #tpu.pipeline_mode<synchronous>, transform_indices = @transform_16, window_bounds = array<i64: 1, 8>}, {pipeline_mode = #tpu.pipeline_mode<synchronous>, transform_indices = @transform_17, window_bounds = array<i64: 8, 32>}, {pipeline_mode = #tpu.pipeline_mode<synchronous>, transform_indices = @transform_18, window_bounds = array<i64: 32, 8>}, {pipeline_mode = #tpu.pipeline_mode<synchronous>, transform_indices = @transform_19, window_bounds = array<i64: 5, 32>}, {pipeline_mode = #tpu.pipeline_mode<synchronous>, transform_indices = @transform_20, window_bounds = array<i64: 1, 8>}, {transform_indices = @transform_21, window_bounds = array<i64: 32, 8>}]} {
    %c0 = arith.constant 0 : index
    %c0_0 = arith.constant 0 : index
    %0 = vector.load %arg2[%c0, %c0_0] : memref<32x8xf32, #tpu.memory_space<vmem>>, vector<32x8xf32>
    %c0_1 = arith.constant 0 : index
    %c0_2 = arith.constant 0 : index
    %1 = vector.load %arg3[%c0_1, %c0_2] : memref<8x8xf32, #tpu.memory_space<vmem>>, vector<8x8xf32>
    %c0_3 = arith.constant 0 : index
    %c0_4 = arith.constant 0 : index
    %2 = vector.load %arg4[%c0_3, %c0_4] : memref<8x8xf32, #tpu.memory_space<vmem>>, vector<8x8xf32>
    %c0_5 = arith.constant 0 : index
    %c0_6 = arith.constant 0 : index
    %3 = vector.load %arg5[%c0_5, %c0_6] : memref<5x8xf32, #tpu.memory_space<vmem>>, vector<5x8xf32>
    %c0_7 = arith.constant 0 : index
    %c0_8 = arith.constant 0 : index
    %4 = vector.load %arg6[%c0_7, %c0_8] : memref<1x8xf32, #tpu.memory_space<vmem>>, vector<1x8xf32>
    %cst = arith.constant dense<0.000000e+00> : vector<32x8xf32>
    %5 = tpu.matmul %0, %1, %cst {dimension_numbers = #tpu.dot_dimension_numbers<[1], [0], [0], [1], [0, 0, 1, 1], [], []>} : vector<32x8xf32>, vector<8x8xf32>, vector<32x8xf32> -> vector<32x8xf32>
    %6 = vector.extract_strided_slice %3 {offsets = [0, 0], sizes = [1, 8], strides = [1, 1]} : vector<5x8xf32> to vector<1x8xf32>
    %7 = vector.shape_cast %6 : vector<1x8xf32> to vector<8xf32>
    %8 = vector.shape_cast %7 : vector<8xf32> to vector<1x8xf32>
    %9 = vector.broadcast %8 : vector<1x8xf32> to vector<32x8xf32>
    %10 = arith.addf %5, %9 : vector<32x8xf32>
    %11 = vector.extract_strided_slice %3 {offsets = [1, 0], sizes = [1, 8], strides = [1, 1]} : vector<5x8xf32> to vector<1x8xf32>
    %12 = vector.shape_cast %11 : vector<1x8xf32> to vector<8xf32>
    %13 = vector.extract_strided_slice %3 {offsets = [2, 0], sizes = [1, 8], strides = [1, 1]} : vector<5x8xf32> to vector<1x8xf32>
    %14 = vector.shape_cast %13 : vector<1x8xf32> to vector<8xf32>
    %15 = vector.extract_strided_slice %3 {offsets = [3, 0], sizes = [1, 8], strides = [1, 1]} : vector<5x8xf32> to vector<1x8xf32>
    %16 = vector.shape_cast %15 : vector<1x8xf32> to vector<8xf32>
    %17 = vector.extract_strided_slice %3 {offsets = [4, 0], sizes = [1, 8], strides = [1, 1]} : vector<5x8xf32> to vector<1x8xf32>
    %18 = vector.shape_cast %17 : vector<1x8xf32> to vector<8xf32>
    %19 = vector.shape_cast %16 : vector<8xf32> to vector<1x8xf32>
    %20 = vector.broadcast %19 : vector<1x8xf32> to vector<32x8xf32>
    %21 = arith.subf %10, %20 : vector<32x8xf32>
    %cst_9 = arith.constant 9.99999974E-6 : f32
    %22 = vector.broadcast %cst_9 : f32 to vector<8xf32>
    %23 = arith.addf %18, %22 : vector<8xf32>
    %24 = math.rsqrt %23 : vector<8xf32>
    %25 = arith.mulf %12, %24 : vector<8xf32>
    %26 = vector.shape_cast %25 : vector<8xf32> to vector<1x8xf32>
    %27 = vector.broadcast %26 : vector<1x8xf32> to vector<32x8xf32>
    %28 = arith.mulf %21, %27 : vector<32x8xf32>
    %29 = vector.shape_cast %14 : vector<8xf32> to vector<1x8xf32>
    %30 = vector.broadcast %29 : vector<1x8xf32> to vector<32x8xf32>
    %31 = arith.addf %28, %30 : vector<32x8xf32>
    %cst_10 = arith.constant 5.000000e-01 : f32
    %32 = vector.broadcast %cst_10 : f32 to vector<32x8xf32>
    %33 = arith.mulf %32, %31 : vector<32x8xf32>
    %cst_11 = arith.constant 0.707106769 : f32
    %34 = vector.broadcast %cst_11 : f32 to vector<32x8xf32>
    %35 = arith.mulf %31, %34 : vector<32x8xf32>
    %cst_12 = arith.constant -3.8325069 : f32
    %cst_13 = arith.constant 3.8325069 : f32
    %36 = vector.broadcast %cst_12 : f32 to vector<32x8xf32>
    %37 = arith.maximumf %36, %35 : vector<32x8xf32>
    %38 = vector.broadcast %cst_13 : f32 to vector<32x8xf32>
    %39 = arith.minimumf %38, %37 : vector<32x8xf32>
    %40 = arith.mulf %39, %39 : vector<32x8xf32>
    %cst_14 = arith.constant -2.72614237E-10 : f32
    %41 = vector.broadcast %cst_14 : f32 to vector<32x8xf32>
    %42 = arith.mulf %41, %40 : vector<32x8xf32>
    %cst_15 = arith.constant 2.77068146E-8 : f32
    %43 = vector.broadcast %cst_15 : f32 to vector<32x8xf32>
    %44 = arith.addf %42, %43 : vector<32x8xf32>
    %45 = arith.mulf %44, %40 : vector<32x8xf32>
    %cst_16 = arith.constant -2.10102394E-6 : f32
    %46 = vector.broadcast %cst_16 : f32 to vector<32x8xf32>
    %47 = arith.addf %45, %46 : vector<32x8xf32>
    %48 = arith.mulf %47, %40 : vector<32x8xf32>
    %cst_17 = arith.constant -5.69250624E-5 : f32
    %49 = vector.broadcast %cst_17 : f32 to vector<32x8xf32>
    %50 = arith.addf %48, %49 : vector<32x8xf32>
    %51 = arith.mulf %50, %40 : vector<32x8xf32>
    %cst_18 = arith.constant -7.34990637E-4 : f32
    %52 = vector.broadcast %cst_18 : f32 to vector<32x8xf32>
    %53 = arith.addf %51, %52 : vector<32x8xf32>
    %54 = arith.mulf %53, %40 : vector<32x8xf32>
    %cst_19 = arith.constant -2.954600e-03 : f32
    %55 = vector.broadcast %cst_19 : f32 to vector<32x8xf32>
    %56 = arith.addf %54, %55 : vector<32x8xf32>
    %57 = arith.mulf %56, %40 : vector<32x8xf32>
    %cst_20 = arith.constant -0.0160960332 : f32
    %58 = vector.broadcast %cst_20 : f32 to vector<32x8xf32>
    %59 = arith.addf %57, %58 : vector<32x8xf32>
    %60 = arith.mulf %59, %39 : vector<32x8xf32>
    %cst_21 = arith.constant -1.45660715E-5 : f32
    %61 = vector.broadcast %cst_21 : f32 to vector<32x8xf32>
    %62 = arith.mulf %61, %40 : vector<32x8xf32>
    %cst_22 = arith.constant -2.13374049E-4 : f32
    %63 = vector.broadcast %cst_22 : f32 to vector<32x8xf32>
    %64 = arith.addf %62, %63 : vector<32x8xf32>
    %65 = arith.mulf %64, %40 : vector<32x8xf32>
    %cst_23 = arith.constant -0.00168282702 : f32
    %66 = vector.broadcast %cst_23 : f32 to vector<32x8xf32>
    %67 = arith.addf %65, %66 : vector<32x8xf32>
    %68 = arith.mulf %67, %40 : vector<32x8xf32>
    %cst_24 = arith.constant -0.00737332925 : f32
    %69 = vector.broadcast %cst_24 : f32 to vector<32x8xf32>
    %70 = arith.addf %68, %69 : vector<32x8xf32>
    %71 = arith.mulf %70, %40 : vector<32x8xf32>
    %cst_25 = arith.constant -0.0142647391 : f32
    %72 = vector.broadcast %cst_25 : f32 to vector<32x8xf32>
    %73 = arith.addf %71, %72 : vector<32x8xf32>
    %74 = arith.divf %60, %73 : vector<32x8xf32>
    %cst_26 = arith.constant 1.000000e+00 : f32
    %75 = vector.broadcast %cst_26 : f32 to vector<32x8xf32>
    %76 = arith.addf %75, %74 : vector<32x8xf32>
    %77 = arith.mulf %33, %76 : vector<32x8xf32>
    %cst_27 = arith.constant dense<0.000000e+00> : vector<32x8xf32>
    %78 = tpu.matmul %77, %2, %cst_27 {dimension_numbers = #tpu.dot_dimension_numbers<[1], [0], [0], [1], [0, 0, 1, 1], [], []>} : vector<32x8xf32>, vector<8x8xf32>, vector<32x8xf32> -> vector<32x8xf32>
    %79 = vector.shape_cast %4 : vector<1x8xf32> to vector<8xf32>
    %80 = vector.shape_cast %79 : vector<8xf32> to vector<1x8xf32>
    %81 = vector.broadcast %80 : vector<1x8xf32> to vector<32x8xf32>
    %82 = arith.addf %78, %81 : vector<32x8xf32>
    %83 = arith.addf %82, %0 : vector<32x8xf32>
    %c0_28 = arith.constant 0 : index
    %c0_29 = arith.constant 0 : index
    %84 = vector.load %arg1[%c0_28, %c0_29] : memref<32x8xf32, #tpu.memory_space<vmem>>, vector<32x8xf32>
    %85 = arith.subf %84, %83 : vector<32x8xf32>
    %c0_30 = arith.constant 0 : index
    %c0_31 = arith.constant 0 : index
    %86 = vector.load %arg7[%c0_30, %c0_31] : memref<8x8xf32, #tpu.memory_space<vmem>>, vector<8x8xf32>
    %cst_32 = arith.constant dense<0.000000e+00> : vector<32x8xf32>
    %87 = tpu.matmul %83, %86, %cst_32 {dimension_numbers = #tpu.dot_dimension_numbers<[1], [0], [0], [1], [0, 0, 1, 1], [], []>} : vector<32x8xf32>, vector<8x8xf32>, vector<32x8xf32> -> vector<32x8xf32>
    %c0_33 = arith.constant 0 : index
    %c0_34 = arith.constant 0 : index
    %88 = vector.load %arg8[%c0_33, %c0_34] : memref<8x8xf32, #tpu.memory_space<vmem>>, vector<8x8xf32>
    %cst_35 = arith.constant dense<0.000000e+00> : vector<32x8xf32>
    %89 = tpu.matmul %85, %88, %cst_35 {dimension_numbers = #tpu.dot_dimension_numbers<[1], [0], [0], [1], [0, 0, 1, 1], [], []>} : vector<32x8xf32>, vector<8x8xf32>, vector<32x8xf32> -> vector<32x8xf32>
    %90 = arith.addf %87, %89 : vector<32x8xf32>
    %c0_36 = arith.constant 0 : index
    %c0_37 = arith.constant 0 : index
    %91 = vector.load %arg9[%c0_36, %c0_37] : memref<1x8xf32, #tpu.memory_space<vmem>>, vector<1x8xf32>
    %92 = vector.shape_cast %91 : vector<1x8xf32> to vector<8xf32>
    %93 = vector.shape_cast %92 : vector<8xf32> to vector<1x8xf32>
    %94 = vector.broadcast %93 : vector<1x8xf32> to vector<32x8xf32>
    %95 = arith.addf %90, %94 : vector<32x8xf32>
    %cst_38 = arith.constant 5.000000e-01 : f32
    %96 = vector.broadcast %cst_38 : f32 to vector<32x8xf32>
    %97 = arith.mulf %96, %95 : vector<32x8xf32>
    %cst_39 = arith.constant 0.707106769 : f32
    %98 = vector.broadcast %cst_39 : f32 to vector<32x8xf32>
    %99 = arith.mulf %95, %98 : vector<32x8xf32>
    %cst_40 = arith.constant -3.8325069 : f32
    %cst_41 = arith.constant 3.8325069 : f32
    %100 = vector.broadcast %cst_40 : f32 to vector<32x8xf32>
    %101 = arith.maximumf %100, %99 : vector<32x8xf32>
    %102 = vector.broadcast %cst_41 : f32 to vector<32x8xf32>
    %103 = arith.minimumf %102, %101 : vector<32x8xf32>
    %104 = arith.mulf %103, %103 : vector<32x8xf32>
    %cst_42 = arith.constant -2.72614237E-10 : f32
    %105 = vector.broadcast %cst_42 : f32 to vector<32x8xf32>
    %106 = arith.mulf %105, %104 : vector<32x8xf32>
    %cst_43 = arith.constant 2.77068146E-8 : f32
    %107 = vector.broadcast %cst_43 : f32 to vector<32x8xf32>
    %108 = arith.addf %106, %107 : vector<32x8xf32>
    %109 = arith.mulf %108, %104 : vector<32x8xf32>
    %cst_44 = arith.constant -2.10102394E-6 : f32
    %110 = vector.broadcast %cst_44 : f32 to vector<32x8xf32>
    %111 = arith.addf %109, %110 : vector<32x8xf32>
    %112 = arith.mulf %111, %104 : vector<32x8xf32>
    %cst_45 = arith.constant -5.69250624E-5 : f32
    %113 = vector.broadcast %cst_45 : f32 to vector<32x8xf32>
    %114 = arith.addf %112, %113 : vector<32x8xf32>
    %115 = arith.mulf %114, %104 : vector<32x8xf32>
    %cst_46 = arith.constant -7.34990637E-4 : f32
    %116 = vector.broadcast %cst_46 : f32 to vector<32x8xf32>
    %117 = arith.addf %115, %116 : vector<32x8xf32>
    %118 = arith.mulf %117, %104 : vector<32x8xf32>
    %cst_47 = arith.constant -2.954600e-03 : f32
    %119 = vector.broadcast %cst_47 : f32 to vector<32x8xf32>
    %120 = arith.addf %118, %119 : vector<32x8xf32>
    %121 = arith.mulf %120, %104 : vector<32x8xf32>
    %cst_48 = arith.constant -0.0160960332 : f32
    %122 = vector.broadcast %cst_48 : f32 to vector<32x8xf32>
    %123 = arith.addf %121, %122 : vector<32x8xf32>
    %124 = arith.mulf %123, %103 : vector<32x8xf32>
    %cst_49 = arith.constant -1.45660715E-5 : f32
    %125 = vector.broadcast %cst_49 : f32 to vector<32x8xf32>
    %126 = arith.mulf %125, %104 : vector<32x8xf32>
    %cst_50 = arith.constant -2.13374049E-4 : f32
    %127 = vector.broadcast %cst_50 : f32 to vector<32x8xf32>
    %128 = arith.addf %126, %127 : vector<32x8xf32>
    %129 = arith.mulf %128, %104 : vector<32x8xf32>
    %cst_51 = arith.constant -0.00168282702 : f32
    %130 = vector.broadcast %cst_51 : f32 to vector<32x8xf32>
    %131 = arith.addf %129, %130 : vector<32x8xf32>
    %132 = arith.mulf %131, %104 : vector<32x8xf32>
    %cst_52 = arith.constant -0.00737332925 : f32
    %133 = vector.broadcast %cst_52 : f32 to vector<32x8xf32>
    %134 = arith.addf %132, %133 : vector<32x8xf32>
    %135 = arith.mulf %134, %104 : vector<32x8xf32>
    %cst_53 = arith.constant -0.0142647391 : f32
    %136 = vector.broadcast %cst_53 : f32 to vector<32x8xf32>
    %137 = arith.addf %135, %136 : vector<32x8xf32>
    %138 = arith.divf %124, %137 : vector<32x8xf32>
    %cst_54 = arith.constant 1.000000e+00 : f32
    %139 = vector.broadcast %cst_54 : f32 to vector<32x8xf32>
    %140 = arith.addf %139, %138 : vector<32x8xf32>
    %141 = arith.mulf %97, %140 : vector<32x8xf32>
    %c0_55 = arith.constant 0 : index
    %c0_56 = arith.constant 0 : index
    %142 = vector.load %arg10[%c0_55, %c0_56] : memref<8x8xf32, #tpu.memory_space<vmem>>, vector<8x8xf32>
    %c0_57 = arith.constant 0 : index
    %c0_58 = arith.constant 0 : index
    %143 = vector.load %arg11[%c0_57, %c0_58] : memref<8x8xf32, #tpu.memory_space<vmem>>, vector<8x8xf32>
    %c0_59 = arith.constant 0 : index
    %c0_60 = arith.constant 0 : index
    %144 = vector.load %arg12[%c0_59, %c0_60] : memref<5x8xf32, #tpu.memory_space<vmem>>, vector<5x8xf32>
    %c0_61 = arith.constant 0 : index
    %c0_62 = arith.constant 0 : index
    %145 = vector.load %arg13[%c0_61, %c0_62] : memref<1x8xf32, #tpu.memory_space<vmem>>, vector<1x8xf32>
    %cst_63 = arith.constant dense<0.000000e+00> : vector<32x8xf32>
    %146 = tpu.matmul %141, %142, %cst_63 {dimension_numbers = #tpu.dot_dimension_numbers<[1], [0], [0], [1], [0, 0, 1, 1], [], []>} : vector<32x8xf32>, vector<8x8xf32>, vector<32x8xf32> -> vector<32x8xf32>
    %147 = vector.extract_strided_slice %144 {offsets = [0, 0], sizes = [1, 8], strides = [1, 1]} : vector<5x8xf32> to vector<1x8xf32>
    %148 = vector.shape_cast %147 : vector<1x8xf32> to vector<8xf32>
    %149 = vector.shape_cast %148 : vector<8xf32> to vector<1x8xf32>
    %150 = vector.broadcast %149 : vector<1x8xf32> to vector<32x8xf32>
    %151 = arith.addf %146, %150 : vector<32x8xf32>
    %152 = vector.extract_strided_slice %144 {offsets = [1, 0], sizes = [1, 8], strides = [1, 1]} : vector<5x8xf32> to vector<1x8xf32>
    %153 = vector.shape_cast %152 : vector<1x8xf32> to vector<8xf32>
    %154 = vector.extract_strided_slice %144 {offsets = [2, 0], sizes = [1, 8], strides = [1, 1]} : vector<5x8xf32> to vector<1x8xf32>
    %155 = vector.shape_cast %154 : vector<1x8xf32> to vector<8xf32>
    %156 = vector.extract_strided_slice %144 {offsets = [3, 0], sizes = [1, 8], strides = [1, 1]} : vector<5x8xf32> to vector<1x8xf32>
    %157 = vector.shape_cast %156 : vector<1x8xf32> to vector<8xf32>
    %158 = vector.extract_strided_slice %144 {offsets = [4, 0], sizes = [1, 8], strides = [1, 1]} : vector<5x8xf32> to vector<1x8xf32>
    %159 = vector.shape_cast %158 : vector<1x8xf32> to vector<8xf32>
    %160 = vector.shape_cast %157 : vector<8xf32> to vector<1x8xf32>
    %161 = vector.broadcast %160 : vector<1x8xf32> to vector<32x8xf32>
    %162 = arith.subf %151, %161 : vector<32x8xf32>
    %cst_64 = arith.constant 9.99999974E-6 : f32
    %163 = vector.broadcast %cst_64 : f32 to vector<8xf32>
    %164 = arith.addf %159, %163 : vector<8xf32>
    %165 = math.rsqrt %164 : vector<8xf32>
    %166 = arith.mulf %153, %165 : vector<8xf32>
    %167 = vector.shape_cast %166 : vector<8xf32> to vector<1x8xf32>
    %168 = vector.broadcast %167 : vector<1x8xf32> to vector<32x8xf32>
    %169 = arith.mulf %162, %168 : vector<32x8xf32>
    %170 = vector.shape_cast %155 : vector<8xf32> to vector<1x8xf32>
    %171 = vector.broadcast %170 : vector<1x8xf32> to vector<32x8xf32>
    %172 = arith.addf %169, %171 : vector<32x8xf32>
    %cst_65 = arith.constant 5.000000e-01 : f32
    %173 = vector.broadcast %cst_65 : f32 to vector<32x8xf32>
    %174 = arith.mulf %173, %172 : vector<32x8xf32>
    %cst_66 = arith.constant 0.707106769 : f32
    %175 = vector.broadcast %cst_66 : f32 to vector<32x8xf32>
    %176 = arith.mulf %172, %175 : vector<32x8xf32>
    %cst_67 = arith.constant -3.8325069 : f32
    %cst_68 = arith.constant 3.8325069 : f32
    %177 = vector.broadcast %cst_67 : f32 to vector<32x8xf32>
    %178 = arith.maximumf %177, %176 : vector<32x8xf32>
    %179 = vector.broadcast %cst_68 : f32 to vector<32x8xf32>
    %180 = arith.minimumf %179, %178 : vector<32x8xf32>
    %181 = arith.mulf %180, %180 : vector<32x8xf32>
    %cst_69 = arith.constant -2.72614237E-10 : f32
    %182 = vector.broadcast %cst_69 : f32 to vector<32x8xf32>
    %183 = arith.mulf %182, %181 : vector<32x8xf32>
    %cst_70 = arith.constant 2.77068146E-8 : f32
    %184 = vector.broadcast %cst_70 : f32 to vector<32x8xf32>
    %185 = arith.addf %183, %184 : vector<32x8xf32>
    %186 = arith.mulf %185, %181 : vector<32x8xf32>
    %cst_71 = arith.constant -2.10102394E-6 : f32
    %187 = vector.broadcast %cst_71 : f32 to vector<32x8xf32>
    %188 = arith.addf %186, %187 : vector<32x8xf32>
    %189 = arith.mulf %188, %181 : vector<32x8xf32>
    %cst_72 = arith.constant -5.69250624E-5 : f32
    %190 = vector.broadcast %cst_72 : f32 to vector<32x8xf32>
    %191 = arith.addf %189, %190 : vector<32x8xf32>
    %192 = arith.mulf %191, %181 : vector<32x8xf32>
    %cst_73 = arith.constant -7.34990637E-4 : f32
    %193 = vector.broadcast %cst_73 : f32 to vector<32x8xf32>
    %194 = arith.addf %192, %193 : vector<32x8xf32>
    %195 = arith.mulf %194, %181 : vector<32x8xf32>
    %cst_74 = arith.constant -2.954600e-03 : f32
    %196 = vector.broadcast %cst_74 : f32 to vector<32x8xf32>
    %197 = arith.addf %195, %196 : vector<32x8xf32>
    %198 = arith.mulf %197, %181 : vector<32x8xf32>
    %cst_75 = arith.constant -0.0160960332 : f32
    %199 = vector.broadcast %cst_75 : f32 to vector<32x8xf32>
    %200 = arith.addf %198, %199 : vector<32x8xf32>
    %201 = arith.mulf %200, %180 : vector<32x8xf32>
    %cst_76 = arith.constant -1.45660715E-5 : f32
    %202 = vector.broadcast %cst_76 : f32 to vector<32x8xf32>
    %203 = arith.mulf %202, %181 : vector<32x8xf32>
    %cst_77 = arith.constant -2.13374049E-4 : f32
    %204 = vector.broadcast %cst_77 : f32 to vector<32x8xf32>
    %205 = arith.addf %203, %204 : vector<32x8xf32>
    %206 = arith.mulf %205, %181 : vector<32x8xf32>
    %cst_78 = arith.constant -0.00168282702 : f32
    %207 = vector.broadcast %cst_78 : f32 to vector<32x8xf32>
    %208 = arith.addf %206, %207 : vector<32x8xf32>
    %209 = arith.mulf %208, %181 : vector<32x8xf32>
    %cst_79 = arith.constant -0.00737332925 : f32
    %210 = vector.broadcast %cst_79 : f32 to vector<32x8xf32>
    %211 = arith.addf %209, %210 : vector<32x8xf32>
    %212 = arith.mulf %211, %181 : vector<32x8xf32>
    %cst_80 = arith.constant -0.0142647391 : f32
    %213 = vector.broadcast %cst_80 : f32 to vector<32x8xf32>
    %214 = arith.addf %212, %213 : vector<32x8xf32>
    %215 = arith.divf %201, %214 : vector<32x8xf32>
    %cst_81 = arith.constant 1.000000e+00 : f32
    %216 = vector.broadcast %cst_81 : f32 to vector<32x8xf32>
    %217 = arith.addf %216, %215 : vector<32x8xf32>
    %218 = arith.mulf %174, %217 : vector<32x8xf32>
    %cst_82 = arith.constant dense<0.000000e+00> : vector<32x8xf32>
    %219 = tpu.matmul %218, %143, %cst_82 {dimension_numbers = #tpu.dot_dimension_numbers<[1], [0], [0], [1], [0, 0, 1, 1], [], []>} : vector<32x8xf32>, vector<8x8xf32>, vector<32x8xf32> -> vector<32x8xf32>
    %220 = vector.shape_cast %145 : vector<1x8xf32> to vector<8xf32>
    %221 = vector.shape_cast %220 : vector<8xf32> to vector<1x8xf32>
    %222 = vector.broadcast %221 : vector<1x8xf32> to vector<32x8xf32>
    %223 = arith.addf %219, %222 : vector<32x8xf32>
    %224 = arith.addf %223, %141 : vector<32x8xf32>
    %225 = arith.addf %224, %0 : vector<32x8xf32>
    %c0_83 = arith.constant 0 : index
    %c0_84 = arith.constant 0 : index
    %226 = vector.load %arg14[%c0_83, %c0_84] : memref<8x32xf32, #tpu.memory_space<vmem>>, vector<8x32xf32>
    %c0_85 = arith.constant 0 : index
    %c0_86 = arith.constant 0 : index
    %227 = vector.load %arg15[%c0_85, %c0_86] : memref<32x8xf32, #tpu.memory_space<vmem>>, vector<32x8xf32>
    %c0_87 = arith.constant 0 : index
    %c0_88 = arith.constant 0 : index
    %228 = vector.load %arg16[%c0_87, %c0_88] : memref<5x32xf32, #tpu.memory_space<vmem>>, vector<5x32xf32>
    %c0_89 = arith.constant 0 : index
    %c0_90 = arith.constant 0 : index
    %229 = vector.load %arg17[%c0_89, %c0_90] : memref<1x8xf32, #tpu.memory_space<vmem>>, vector<1x8xf32>
    %cst_91 = arith.constant dense<0.000000e+00> : vector<32x32xf32>
    %230 = tpu.matmul %225, %226, %cst_91 {dimension_numbers = #tpu.dot_dimension_numbers<[1], [0], [0], [1], [0, 0, 1, 1], [], []>} : vector<32x8xf32>, vector<8x32xf32>, vector<32x32xf32> -> vector<32x32xf32>
    %231 = vector.extract_strided_slice %228 {offsets = [0, 0], sizes = [1, 32], strides = [1, 1]} : vector<5x32xf32> to vector<1x32xf32>
    %232 = vector.shape_cast %231 : vector<1x32xf32> to vector<32xf32>
    %233 = vector.shape_cast %232 : vector<32xf32> to vector<1x32xf32>
    %234 = vector.broadcast %233 : vector<1x32xf32> to vector<32x32xf32>
    %235 = arith.addf %230, %234 : vector<32x32xf32>
    %236 = vector.extract_strided_slice %228 {offsets = [1, 0], sizes = [1, 32], strides = [1, 1]} : vector<5x32xf32> to vector<1x32xf32>
    %237 = vector.shape_cast %236 : vector<1x32xf32> to vector<32xf32>
    %238 = vector.extract_strided_slice %228 {offsets = [2, 0], sizes = [1, 32], strides = [1, 1]} : vector<5x32xf32> to vector<1x32xf32>
    %239 = vector.shape_cast %238 : vector<1x32xf32> to vector<32xf32>
    %240 = vector.extract_strided_slice %228 {offsets = [3, 0], sizes = [1, 32], strides = [1, 1]} : vector<5x32xf32> to vector<1x32xf32>
    %241 = vector.shape_cast %240 : vector<1x32xf32> to vector<32xf32>
    %242 = vector.extract_strided_slice %228 {offsets = [4, 0], sizes = [1, 32], strides = [1, 1]} : vector<5x32xf32> to vector<1x32xf32>
    %243 = vector.shape_cast %242 : vector<1x32xf32> to vector<32xf32>
    %244 = vector.shape_cast %241 : vector<32xf32> to vector<1x32xf32>
    %245 = vector.broadcast %244 : vector<1x32xf32> to vector<32x32xf32>
    %246 = arith.subf %235, %245 : vector<32x32xf32>
    %cst_92 = arith.constant 9.99999974E-6 : f32
    %247 = vector.broadcast %cst_92 : f32 to vector<32xf32>
    %248 = arith.addf %243, %247 : vector<32xf32>
    %249 = math.rsqrt %248 : vector<32xf32>
    %250 = arith.mulf %237, %249 : vector<32xf32>
    %251 = vector.shape_cast %250 : vector<32xf32> to vector<1x32xf32>
    %252 = vector.broadcast %251 : vector<1x32xf32> to vector<32x32xf32>
    %253 = arith.mulf %246, %252 : vector<32x32xf32>
    %254 = vector.shape_cast %239 : vector<32xf32> to vector<1x32xf32>
    %255 = vector.broadcast %254 : vector<1x32xf32> to vector<32x32xf32>
    %256 = arith.addf %253, %255 : vector<32x32xf32>
    %cst_93 = arith.constant 5.000000e-01 : f32
    %257 = vector.broadcast %cst_93 : f32 to vector<32x32xf32>
    %258 = arith.mulf %257, %256 : vector<32x32xf32>
    %cst_94 = arith.constant 0.707106769 : f32
    %259 = vector.broadcast %cst_94 : f32 to vector<32x32xf32>
    %260 = arith.mulf %256, %259 : vector<32x32xf32>
    %cst_95 = arith.constant -3.8325069 : f32
    %cst_96 = arith.constant 3.8325069 : f32
    %261 = vector.broadcast %cst_95 : f32 to vector<32x32xf32>
    %262 = arith.maximumf %261, %260 : vector<32x32xf32>
    %263 = vector.broadcast %cst_96 : f32 to vector<32x32xf32>
    %264 = arith.minimumf %263, %262 : vector<32x32xf32>
    %265 = arith.mulf %264, %264 : vector<32x32xf32>
    %cst_97 = arith.constant -2.72614237E-10 : f32
    %266 = vector.broadcast %cst_97 : f32 to vector<32x32xf32>
    %267 = arith.mulf %266, %265 : vector<32x32xf32>
    %cst_98 = arith.constant 2.77068146E-8 : f32
    %268 = vector.broadcast %cst_98 : f32 to vector<32x32xf32>
    %269 = arith.addf %267, %268 : vector<32x32xf32>
    %270 = arith.mulf %269, %265 : vector<32x32xf32>
    %cst_99 = arith.constant -2.10102394E-6 : f32
    %271 = vector.broadcast %cst_99 : f32 to vector<32x32xf32>
    %272 = arith.addf %270, %271 : vector<32x32xf32>
    %273 = arith.mulf %272, %265 : vector<32x32xf32>
    %cst_100 = arith.constant -5.69250624E-5 : f32
    %274 = vector.broadcast %cst_100 : f32 to vector<32x32xf32>
    %275 = arith.addf %273, %274 : vector<32x32xf32>
    %276 = arith.mulf %275, %265 : vector<32x32xf32>
    %cst_101 = arith.constant -7.34990637E-4 : f32
    %277 = vector.broadcast %cst_101 : f32 to vector<32x32xf32>
    %278 = arith.addf %276, %277 : vector<32x32xf32>
    %279 = arith.mulf %278, %265 : vector<32x32xf32>
    %cst_102 = arith.constant -2.954600e-03 : f32
    %280 = vector.broadcast %cst_102 : f32 to vector<32x32xf32>
    %281 = arith.addf %279, %280 : vector<32x32xf32>
    %282 = arith.mulf %281, %265 : vector<32x32xf32>
    %cst_103 = arith.constant -0.0160960332 : f32
    %283 = vector.broadcast %cst_103 : f32 to vector<32x32xf32>
    %284 = arith.addf %282, %283 : vector<32x32xf32>
    %285 = arith.mulf %284, %264 : vector<32x32xf32>
    %cst_104 = arith.constant -1.45660715E-5 : f32
    %286 = vector.broadcast %cst_104 : f32 to vector<32x32xf32>
    %287 = arith.mulf %286, %265 : vector<32x32xf32>
    %cst_105 = arith.constant -2.13374049E-4 : f32
    %288 = vector.broadcast %cst_105 : f32 to vector<32x32xf32>
    %289 = arith.addf %287, %288 : vector<32x32xf32>
    %290 = arith.mulf %289, %265 : vector<32x32xf32>
    %cst_106 = arith.constant -0.00168282702 : f32
    %291 = vector.broadcast %cst_106 : f32 to vector<32x32xf32>
    %292 = arith.addf %290, %291 : vector<32x32xf32>
    %293 = arith.mulf %292, %265 : vector<32x32xf32>
    %cst_107 = arith.constant -0.00737332925 : f32
    %294 = vector.broadcast %cst_107 : f32 to vector<32x32xf32>
    %295 = arith.addf %293, %294 : vector<32x32xf32>
    %296 = arith.mulf %295, %265 : vector<32x32xf32>
    %cst_108 = arith.constant -0.0142647391 : f32
    %297 = vector.broadcast %cst_108 : f32 to vector<32x32xf32>
    %298 = arith.addf %296, %297 : vector<32x32xf32>
    %299 = arith.divf %285, %298 : vector<32x32xf32>
    %cst_109 = arith.constant 1.000000e+00 : f32
    %300 = vector.broadcast %cst_109 : f32 to vector<32x32xf32>
    %301 = arith.addf %300, %299 : vector<32x32xf32>
    %302 = arith.mulf %258, %301 : vector<32x32xf32>
    %cst_110 = arith.constant dense<0.000000e+00> : vector<32x8xf32>
    %303 = tpu.matmul %302, %227, %cst_110 {dimension_numbers = #tpu.dot_dimension_numbers<[1], [0], [0], [1], [0, 0, 1, 1], [], []>} : vector<32x32xf32>, vector<32x8xf32>, vector<32x8xf32> -> vector<32x8xf32>
    %304 = vector.shape_cast %229 : vector<1x8xf32> to vector<8xf32>
    %305 = vector.shape_cast %304 : vector<8xf32> to vector<1x8xf32>
    %306 = vector.broadcast %305 : vector<1x8xf32> to vector<32x8xf32>
    %307 = arith.addf %303, %306 : vector<32x8xf32>
    %308 = arith.addf %307, %225 : vector<32x8xf32>
    %cst_111 = arith.constant 5.000000e-01 : f32
    %309 = vector.broadcast %cst_111 : f32 to vector<32x8xf32>
    %310 = arith.mulf %309, %308 : vector<32x8xf32>
    %cst_112 = arith.constant 0.707106769 : f32
    %311 = vector.broadcast %cst_112 : f32 to vector<32x8xf32>
    %312 = arith.mulf %308, %311 : vector<32x8xf32>
    %cst_113 = arith.constant -3.8325069 : f32
    %cst_114 = arith.constant 3.8325069 : f32
    %313 = vector.broadcast %cst_113 : f32 to vector<32x8xf32>
    %314 = arith.maximumf %313, %312 : vector<32x8xf32>
    %315 = vector.broadcast %cst_114 : f32 to vector<32x8xf32>
    %316 = arith.minimumf %315, %314 : vector<32x8xf32>
    %317 = arith.mulf %316, %316 : vector<32x8xf32>
    %cst_115 = arith.constant -2.72614237E-10 : f32
    %318 = vector.broadcast %cst_115 : f32 to vector<32x8xf32>
    %319 = arith.mulf %318, %317 : vector<32x8xf32>
    %cst_116 = arith.constant 2.77068146E-8 : f32
    %320 = vector.broadcast %cst_116 : f32 to vector<32x8xf32>
    %321 = arith.addf %319, %320 : vector<32x8xf32>
    %322 = arith.mulf %321, %317 : vector<32x8xf32>
    %cst_117 = arith.constant -2.10102394E-6 : f32
    %323 = vector.broadcast %cst_117 : f32 to vector<32x8xf32>
    %324 = arith.addf %322, %323 : vector<32x8xf32>
    %325 = arith.mulf %324, %317 : vector<32x8xf32>
    %cst_118 = arith.constant -5.69250624E-5 : f32
    %326 = vector.broadcast %cst_118 : f32 to vector<32x8xf32>
    %327 = arith.addf %325, %326 : vector<32x8xf32>
    %328 = arith.mulf %327, %317 : vector<32x8xf32>
    %cst_119 = arith.constant -7.34990637E-4 : f32
    %329 = vector.broadcast %cst_119 : f32 to vector<32x8xf32>
    %330 = arith.addf %328, %329 : vector<32x8xf32>
    %331 = arith.mulf %330, %317 : vector<32x8xf32>
    %cst_120 = arith.constant -2.954600e-03 : f32
    %332 = vector.broadcast %cst_120 : f32 to vector<32x8xf32>
    %333 = arith.addf %331, %332 : vector<32x8xf32>
    %334 = arith.mulf %333, %317 : vector<32x8xf32>
    %cst_121 = arith.constant -0.0160960332 : f32
    %335 = vector.broadcast %cst_121 : f32 to vector<32x8xf32>
    %336 = arith.addf %334, %335 : vector<32x8xf32>
    %337 = arith.mulf %336, %316 : vector<32x8xf32>
    %cst_122 = arith.constant -1.45660715E-5 : f32
    %338 = vector.broadcast %cst_122 : f32 to vector<32x8xf32>
    %339 = arith.mulf %338, %317 : vector<32x8xf32>
    %cst_123 = arith.constant -2.13374049E-4 : f32
    %340 = vector.broadcast %cst_123 : f32 to vector<32x8xf32>
    %341 = arith.addf %339, %340 : vector<32x8xf32>
    %342 = arith.mulf %341, %317 : vector<32x8xf32>
    %cst_124 = arith.constant -0.00168282702 : f32
    %343 = vector.broadcast %cst_124 : f32 to vector<32x8xf32>
    %344 = arith.addf %342, %343 : vector<32x8xf32>
    %345 = arith.mulf %344, %317 : vector<32x8xf32>
    %cst_125 = arith.constant -0.00737332925 : f32
    %346 = vector.broadcast %cst_125 : f32 to vector<32x8xf32>
    %347 = arith.addf %345, %346 : vector<32x8xf32>
    %348 = arith.mulf %347, %317 : vector<32x8xf32>
    %cst_126 = arith.constant -0.0142647391 : f32
    %349 = vector.broadcast %cst_126 : f32 to vector<32x8xf32>
    %350 = arith.addf %348, %349 : vector<32x8xf32>
    %351 = arith.divf %337, %350 : vector<32x8xf32>
    %cst_127 = arith.constant 1.000000e+00 : f32
    %352 = vector.broadcast %cst_127 : f32 to vector<32x8xf32>
    %353 = arith.addf %352, %351 : vector<32x8xf32>
    %354 = arith.mulf %310, %353 : vector<32x8xf32>
    %c0_128 = arith.constant 0 : index
    %c0_129 = arith.constant 0 : index
    %355 = vector.load %arg18[%c0_128, %c0_129] : memref<8x32xf32, #tpu.memory_space<vmem>>, vector<8x32xf32>
    %c0_130 = arith.constant 0 : index
    %c0_131 = arith.constant 0 : index
    %356 = vector.load %arg19[%c0_130, %c0_131] : memref<32x8xf32, #tpu.memory_space<vmem>>, vector<32x8xf32>
    %c0_132 = arith.constant 0 : index
    %c0_133 = arith.constant 0 : index
    %357 = vector.load %arg20[%c0_132, %c0_133] : memref<5x32xf32, #tpu.memory_space<vmem>>, vector<5x32xf32>
    %c0_134 = arith.constant 0 : index
    %c0_135 = arith.constant 0 : index
    %358 = vector.load %arg21[%c0_134, %c0_135] : memref<1x8xf32, #tpu.memory_space<vmem>>, vector<1x8xf32>
    %cst_136 = arith.constant dense<0.000000e+00> : vector<32x32xf32>
    %359 = tpu.matmul %354, %355, %cst_136 {dimension_numbers = #tpu.dot_dimension_numbers<[1], [0], [0], [1], [0, 0, 1, 1], [], []>} : vector<32x8xf32>, vector<8x32xf32>, vector<32x32xf32> -> vector<32x32xf32>
    %360 = vector.extract_strided_slice %357 {offsets = [0, 0], sizes = [1, 32], strides = [1, 1]} : vector<5x32xf32> to vector<1x32xf32>
    %361 = vector.shape_cast %360 : vector<1x32xf32> to vector<32xf32>
    %362 = vector.shape_cast %361 : vector<32xf32> to vector<1x32xf32>
    %363 = vector.broadcast %362 : vector<1x32xf32> to vector<32x32xf32>
    %364 = arith.addf %359, %363 : vector<32x32xf32>
    %365 = vector.extract_strided_slice %357 {offsets = [1, 0], sizes = [1, 32], strides = [1, 1]} : vector<5x32xf32> to vector<1x32xf32>
    %366 = vector.shape_cast %365 : vector<1x32xf32> to vector<32xf32>
    %367 = vector.extract_strided_slice %357 {offsets = [2, 0], sizes = [1, 32], strides = [1, 1]} : vector<5x32xf32> to vector<1x32xf32>
    %368 = vector.shape_cast %367 : vector<1x32xf32> to vector<32xf32>
    %369 = vector.extract_strided_slice %357 {offsets = [3, 0], sizes = [1, 32], strides = [1, 1]} : vector<5x32xf32> to vector<1x32xf32>
    %370 = vector.shape_cast %369 : vector<1x32xf32> to vector<32xf32>
    %371 = vector.extract_strided_slice %357 {offsets = [4, 0], sizes = [1, 32], strides = [1, 1]} : vector<5x32xf32> to vector<1x32xf32>
    %372 = vector.shape_cast %371 : vector<1x32xf32> to vector<32xf32>
    %373 = vector.shape_cast %370 : vector<32xf32> to vector<1x32xf32>
    %374 = vector.broadcast %373 : vector<1x32xf32> to vector<32x32xf32>
    %375 = arith.subf %364, %374 : vector<32x32xf32>
    %cst_137 = arith.constant 9.99999974E-6 : f32
    %376 = vector.broadcast %cst_137 : f32 to vector<32xf32>
    %377 = arith.addf %372, %376 : vector<32xf32>
    %378 = math.rsqrt %377 : vector<32xf32>
    %379 = arith.mulf %366, %378 : vector<32xf32>
    %380 = vector.shape_cast %379 : vector<32xf32> to vector<1x32xf32>
    %381 = vector.broadcast %380 : vector<1x32xf32> to vector<32x32xf32>
    %382 = arith.mulf %375, %381 : vector<32x32xf32>
    %383 = vector.shape_cast %368 : vector<32xf32> to vector<1x32xf32>
    %384 = vector.broadcast %383 : vector<1x32xf32> to vector<32x32xf32>
    %385 = arith.addf %382, %384 : vector<32x32xf32>
    %cst_138 = arith.constant 5.000000e-01 : f32
    %386 = vector.broadcast %cst_138 : f32 to vector<32x32xf32>
    %387 = arith.mulf %386, %385 : vector<32x32xf32>
    %cst_139 = arith.constant 0.707106769 : f32
    %388 = vector.broadcast %cst_139 : f32 to vector<32x32xf32>
    %389 = arith.mulf %385, %388 : vector<32x32xf32>
    %cst_140 = arith.constant -3.8325069 : f32
    %cst_141 = arith.constant 3.8325069 : f32
    %390 = vector.broadcast %cst_140 : f32 to vector<32x32xf32>
    %391 = arith.maximumf %390, %389 : vector<32x32xf32>
    %392 = vector.broadcast %cst_141 : f32 to vector<32x32xf32>
    %393 = arith.minimumf %392, %391 : vector<32x32xf32>
    %394 = arith.mulf %393, %393 : vector<32x32xf32>
    %cst_142 = arith.constant -2.72614237E-10 : f32
    %395 = vector.broadcast %cst_142 : f32 to vector<32x32xf32>
    %396 = arith.mulf %395, %394 : vector<32x32xf32>
    %cst_143 = arith.constant 2.77068146E-8 : f32
    %397 = vector.broadcast %cst_143 : f32 to vector<32x32xf32>
    %398 = arith.addf %396, %397 : vector<32x32xf32>
    %399 = arith.mulf %398, %394 : vector<32x32xf32>
    %cst_144 = arith.constant -2.10102394E-6 : f32
    %400 = vector.broadcast %cst_144 : f32 to vector<32x32xf32>
    %401 = arith.addf %399, %400 : vector<32x32xf32>
    %402 = arith.mulf %401, %394 : vector<32x32xf32>
    %cst_145 = arith.constant -5.69250624E-5 : f32
    %403 = vector.broadcast %cst_145 : f32 to vector<32x32xf32>
    %404 = arith.addf %402, %403 : vector<32x32xf32>
    %405 = arith.mulf %404, %394 : vector<32x32xf32>
    %cst_146 = arith.constant -7.34990637E-4 : f32
    %406 = vector.broadcast %cst_146 : f32 to vector<32x32xf32>
    %407 = arith.addf %405, %406 : vector<32x32xf32>
    %408 = arith.mulf %407, %394 : vector<32x32xf32>
    %cst_147 = arith.constant -2.954600e-03 : f32
    %409 = vector.broadcast %cst_147 : f32 to vector<32x32xf32>
    %410 = arith.addf %408, %409 : vector<32x32xf32>
    %411 = arith.mulf %410, %394 : vector<32x32xf32>
    %cst_148 = arith.constant -0.0160960332 : f32
    %412 = vector.broadcast %cst_148 : f32 to vector<32x32xf32>
    %413 = arith.addf %411, %412 : vector<32x32xf32>
    %414 = arith.mulf %413, %393 : vector<32x32xf32>
    %cst_149 = arith.constant -1.45660715E-5 : f32
    %415 = vector.broadcast %cst_149 : f32 to vector<32x32xf32>
    %416 = arith.mulf %415, %394 : vector<32x32xf32>
    %cst_150 = arith.constant -2.13374049E-4 : f32
    %417 = vector.broadcast %cst_150 : f32 to vector<32x32xf32>
    %418 = arith.addf %416, %417 : vector<32x32xf32>
    %419 = arith.mulf %418, %394 : vector<32x32xf32>
    %cst_151 = arith.constant -0.00168282702 : f32
    %420 = vector.broadcast %cst_151 : f32 to vector<32x32xf32>
    %421 = arith.addf %419, %420 : vector<32x32xf32>
    %422 = arith.mulf %421, %394 : vector<32x32xf32>
    %cst_152 = arith.constant -0.00737332925 : f32
    %423 = vector.broadcast %cst_152 : f32 to vector<32x32xf32>
    %424 = arith.addf %422, %423 : vector<32x32xf32>
    %425 = arith.mulf %424, %394 : vector<32x32xf32>
    %cst_153 = arith.constant -0.0142647391 : f32
    %426 = vector.broadcast %cst_153 : f32 to vector<32x32xf32>
    %427 = arith.addf %425, %426 : vector<32x32xf32>
    %428 = arith.divf %414, %427 : vector<32x32xf32>
    %cst_154 = arith.constant 1.000000e+00 : f32
    %429 = vector.broadcast %cst_154 : f32 to vector<32x32xf32>
    %430 = arith.addf %429, %428 : vector<32x32xf32>
    %431 = arith.mulf %387, %430 : vector<32x32xf32>
    %cst_155 = arith.constant dense<0.000000e+00> : vector<32x8xf32>
    %432 = tpu.matmul %431, %356, %cst_155 {dimension_numbers = #tpu.dot_dimension_numbers<[1], [0], [0], [1], [0, 0, 1, 1], [], []>} : vector<32x32xf32>, vector<32x8xf32>, vector<32x8xf32> -> vector<32x8xf32>
    %433 = vector.shape_cast %358 : vector<1x8xf32> to vector<8xf32>
    %434 = vector.shape_cast %433 : vector<8xf32> to vector<1x8xf32>
    %435 = vector.broadcast %434 : vector<1x8xf32> to vector<32x8xf32>
    %436 = arith.addf %432, %435 : vector<32x8xf32>
    %437 = arith.addf %436, %354 : vector<32x8xf32>
    %438 = arith.addf %225, %437 : vector<32x8xf32>
    %c0_156 = arith.constant 0 : index
    %c0_157 = arith.constant 0 : index
    %439 = vector.load %arg22[%c0_156, %c0_157] : memref<32x8xf32, #tpu.memory_space<vmem>>, vector<32x8xf32>
    tpu.vector_store %arg22[%c0_156, %c0_157], %438 {strides = array<i32>} : memref<32x8xf32, #tpu.memory_space<vmem>>, vector<32x8xf32>,
    return
  }
  func.func @transform_0(%arg0: i32) -> (i32, i32) {
    %c0_i32 = arith.constant 0 : i32
    %c0_i32_0 = arith.constant 0 : i32
    return %arg0, %c0_i32 : i32, i32
  }
  func.func @transform_1(%arg0: i32) -> (i32, i32) {
    %c0_i32 = arith.constant 0 : i32
    %c0_i32_0 = arith.constant 0 : i32
    return %arg0, %c0_i32 : i32, i32
  }
  func.func @transform_2(%arg0: i32) -> (i32, i32) {
    %c0_i32 = arith.constant 0 : i32
    %c0_i32_0 = arith.constant 0 : i32
    %c0_i32_1 = arith.constant 0 : i32
    return %c0_i32, %c0_i32_0 : i32, i32
  }
  func.func @transform_3(%arg0: i32) -> (i32, i32) {
    %c0_i32 = arith.constant 0 : i32
    %c0_i32_0 = arith.constant 0 : i32
    %c0_i32_1 = arith.constant 0 : i32
    return %c0_i32, %c0_i32_0 : i32, i32
  }
  func.func @transform_4(%arg0: i32) -> (i32, i32) {
    %c0_i32 = arith.constant 0 : i32
    %c0_i32_0 = arith.constant 0 : i32
    %c0_i32_1 = arith.constant 0 : i32
    return %c0_i32, %c0_i32_0 : i32, i32
  }
  func.func @transform_5(%arg0: i32) -> (i32, i32) {
    %c0_i32 = arith.constant 0 : i32
    %c0_i32_0 = arith.constant 0 : i32
    %c0_i32_1 = arith.constant 0 : i32
    return %c0_i32, %c0_i32_0 : i32, i32
  }
  func.func @transform_6(%arg0: i32) -> (i32, i32) {
    %c0_i32 = arith.constant 0 : i32
    %c0_i32_0 = arith.constant 0 : i32
    %c0_i32_1 = arith.constant 0 : i32
    return %c0_i32, %c0_i32_0 : i32, i32
  }
  func.func @transform_7(%arg0: i32) -> (i32, i32) {
    %c0_i32 = arith.constant 0 : i32
    %c0_i32_0 = arith.constant 0 : i32
    %c0_i32_1 = arith.constant 0 : i32
    return %c0_i32, %c0_i32_0 : i32, i32
  }
  func.func @transform_8(%arg0: i32) -> (i32, i32) {
    %c0_i32 = arith.constant 0 : i32
    %c0_i32_0 = arith.constant 0 : i32
    %c0_i32_1 = arith.constant 0 : i32
    return %c0_i32, %c0_i32_0 : i32, i32
  }
  func.func @transform_9(%arg0: i32) -> (i32, i32) {
    %c0_i32 = arith.constant 0 : i32
    %c0_i32_0 = arith.constant 0 : i32
    %c0_i32_1 = arith.constant 0 : i32
    return %c0_i32, %c0_i32_0 : i32, i32
  }
  func.func @transform_10(%arg0: i32) -> (i32, i32) {
    %c0_i32 = arith.constant 0 : i32
    %c0_i32_0 = arith.constant 0 : i32
    %c0_i32_1 = arith.constant 0 : i32
    return %c0_i32, %c0_i32_0 : i32, i32
  }
  func.func @transform_11(%arg0: i32) -> (i32, i32) {
    %c0_i32 = arith.constant 0 : i32
    %c0_i32_0 = arith.constant 0 : i32
    %c0_i32_1 = arith.constant 0 : i32
    return %c0_i32, %c0_i32_0 : i32, i32
  }
  func.func @transform_12(%arg0: i32) -> (i32, i32) {
    %c0_i32 = arith.constant 0 : i32
    %c0_i32_0 = arith.constant 0 : i32
    %c0_i32_1 = arith.constant 0 : i32
    return %c0_i32, %c0_i32_0 : i32, i32
  }
  func.func @transform_13(%arg0: i32) -> (i32, i32) {
    %c0_i32 = arith.constant 0 : i32
    %c0_i32_0 = arith.constant 0 : i32
    %c0_i32_1 = arith.constant 0 : i32
    return %c0_i32, %c0_i32_0 : i32, i32
  }
  func.func @transform_14(%arg0: i32) -> (i32, i32) {
    %c0_i32 = arith.constant 0 : i32
    %c0_i32_0 = arith.constant 0 : i32
    %c0_i32_1 = arith.constant 0 : i32
    return %c0_i32, %c0_i32_0 : i32, i32
  }
  func.func @transform_15(%arg0: i32) -> (i32, i32) {
    %c0_i32 = arith.constant 0 : i32
    %c0_i32_0 = arith.constant 0 : i32
    %c0_i32_1 = arith.constant 0 : i32
    return %c0_i32, %c0_i32_0 : i32, i32
  }
  func.func @transform_16(%arg0: i32) -> (i32, i32) {
    %c0_i32 = arith.constant 0 : i32
    %c0_i32_0 = arith.constant 0 : i32
    %c0_i32_1 = arith.constant 0 : i32
    return %c0_i32, %c0_i32_0 : i32, i32
  }
  func.func @transform_17(%arg0: i32) -> (i32, i32) {
    %c0_i32 = arith.constant 0 : i32
    %c0_i32_0 = arith.constant 0 : i32
    %c0_i32_1 = arith.constant 0 : i32
    return %c0_i32, %c0_i32_0 : i32, i32
  }
  func.func @transform_18(%arg0: i32) -> (i32, i32) {
    %c0_i32 = arith.constant 0 : i32
    %c0_i32_0 = arith.constant 0 : i32
    %c0_i32_1 = arith.constant 0 : i32
    return %c0_i32, %c0_i32_0 : i32, i32
  }
  func.func @transform_19(%arg0: i32) -> (i32, i32) {
    %c0_i32 = arith.constant 0 : i32
    %c0_i32_0 = arith.constant 0 : i32
    %c0_i32_1 = arith.constant 0 : i32
    return %c0_i32, %c0_i32_0 : i32, i32
  }
  func.func @transform_20(%arg0: i32) -> (i32, i32) {
    %c0_i32 = arith.constant 0 : i32
    %c0_i32_0 = arith.constant 0 : i32
    %c0_i32_1 = arith.constant 0 : i32
    return %c0_i32, %c0_i32_0 : i32, i32
  }
  func.func @transform_21(%arg0: i32) -> (i32, i32) {
    %c0_i32 = arith.constant 0 : i32
    %c0_i32_0 = arith.constant 0 : i32
    return %arg0, %c0_i32 : i32, i32
  }
}

</mosaic_0001>

<llo_original>
// kernel: vig_block.5
$region0: #{vig_block.5}
  #allocation0 [shape = 'u32[]', space=smem, size = 0x4, offset = 0x4, fixed_abs, tag = 'smem constant byte address 0x4 - core index']
  #allocation1 [shape = 'u32[144,128]{1,0:T(1,128)}', space=vmem, size = 0x12000, scoped, tag = 'internal scratch']
  %s0 = inlined_call_operand.vmem [shape: f32[32,8], index: 0, kind: input, shape index: {}]
  %s1 = inlined_call_operand.vmem [shape: f32[8,8], index: 1, kind: input, shape index: {}]
  %s2 = inlined_call_operand.vmem [shape: f32[8,8], index: 2, kind: input, shape index: {}]
  %s3 = inlined_call_operand.vmem [shape: f32[5,8], index: 3, kind: input, shape index: {}]
  %s4 = inlined_call_operand.vmem [shape: f32[1,8], index: 4, kind: input, shape index: {}]
  %s5 = inlined_call_operand.vmem [shape: f32[32,8], index: 5, kind: output, shape index: {}]
  %s6 = sld [smem:[#allocation0]]
  $region30: #{vig_block.5} parent=0
    _
  %s8 = ssub.s32 1, %s6
  %s9 = scalar_select 0, %s8, %s6
  // Predicated region
  $region2: #{vig_block.5} parent=0 // pred_check
    _
  $region3: #{vig_block.5} parent=0 // pred_check_branch
    %11 = sbr.rel (0) target = $region5
  $region4: #{vig_block.5} parent=0 // pred_region
    _
  $region5: #{vig_block.5} parent=0 // pred_fallthru
    _
  // Predicated region
  $region6: #{vig_block.5} parent=0 // pred_check
    _
  $region7: #{vig_block.5} parent=0 // pred_check_branch
    %13 = sbr.rel (0) target = $region9
  $region8: #{vig_block.5} parent=0 // pred_region
    _
  $region9: #{vig_block.5} parent=0 // pred_fallthru
    _
  // Predicated region
  $region10: #{vig_block.5} parent=0 // pred_check
    _
  $region11: #{vig_block.5} parent=0 // pred_check_branch
    %15 = sbr.rel (0) target = $region13
  $region12: #{vig_block.5} parent=0 // pred_region
    _
  $region13: #{vig_block.5} parent=0 // pred_fallthru
    _
  // Predicated region
  $region14: #{vig_block.5} parent=0 // pred_check
    _
  $region15: #{vig_block.5} parent=0 // pred_check_branch
    %17 = sbr.rel (0) target = $region17
  $region16: #{vig_block.5} parent=0 // pred_region
    _
  $region17: #{vig_block.5} parent=0 // pred_fallthru
    _
  // Predicated region
  $region18: #{vig_block.5} parent=0 // pred_check
    _
  $region19: #{vig_block.5} parent=0 // pred_check_branch
    %19 = sbr.rel (0) target = $region21
  $region20: #{vig_block.5} parent=0 // pred_region
    _
  $region21: #{vig_block.5} parent=0 // pred_fallthru
    _
  %v20 = vld [vmem:[%s0] sm:$0xff]
  %v21 = vld [vmem:[%s0 + $0x8] sm:$0xff]
  %v22 = vld [vmem:[%s0 + $0x10] sm:$0xff]
  %v23 = vld [vmem:[%s0 + $0x18] sm:$0xff]
  %v24 = vld [vmem:[%s1] sm:$0xff]
  %v25 = vld [vmem:[%s2] sm:$0xff]
  %v26 = vld [vmem:[%s3] sm:$0x1f]
  %v27 = vld [vmem:[%s4] sm:$0x1]
  %v28 = vlaneseq
  %v29 = vshrl.u32 %v28, 7
  %v30 = vsub.s32 0, %v29
  %v31 = vrot.slane %v26, %v30
  %vm32 = vcmask 64512
  %v34 = vsel %vm32, %v20, 0
  %v37 = vsel %vm32, %v21, 0
  %v40 = vsel %vm32, %v22, 0
  %v43 = vsel %vm32, %v23, 0
  %45 = vmatprep.subr.mxu0 0.0
  %46 = vmatpush1.msra.mxu0 %v24
  %47 = vmatprep.subr.mxu0 0.0
  %48 = vmatpush1.msra.mxu0 0.0
  %49 = vmatprep.subr.mxu0 0.0
  %50 = vmatpush1.msra.mxu0 0.0
  %51 = vmatprep.subr.mxu0 0.0
  %52 = vmatpush1.msra.mxu0 0.0
  %53 = vmatprep.subr.mxu0 0.0
  %54 = vmatpush1.msra.mxu0 0.0
  %55 = vmatprep.subr.mxu0 0.0
  %56 = vmatpush1.msra.mxu0 0.0
  %57 = vmatprep.subr.mxu0 0.0
  %58 = vmatpush1.msra.mxu0 0.0
  %59 = vmatprep.subr.mxu0 0.0
  %60 = vmatpush1.msra.mxu0 0.0
  %61 = vmatprep.subr.mxu0 0.0
  %62 = vmatpush1.msra.mxu0 0.0
  %63 = vmatprep.subr.mxu0 0.0
  %64 = vmatpush1.msra.mxu0 0.0
  %65 = vmatprep.subr.mxu0 0.0
  %66 = vmatpush1.msra.mxu0 0.0
  %67 = vmatprep.subr.mxu0 0.0
  %68 = vmatpush1.msra.mxu0 0.0
  %69 = vmatprep.subr.mxu0 0.0
  %70 = vmatpush1.msra.mxu0 0.0
  %71 = vmatprep.subr.mxu0 0.0
  %72 = vmatpush1.msra.mxu0 0.0
  %73 = vmatprep.subr.mxu0 0.0
  %74 = vmatpush1.msra.mxu0 0.0
  %75 = vmatprep.subr.mxu0 0.0
  %76 = vmatpush1.msra.mxu0 0.0
  %77 = vmatprep.subr.mxu0 0.0
  %78 = vmatpush1.msra.mxu0 0.0
  %79 = vmatprep.subr.mxu0 0.0
  %80 = vmatpush1.msra.mxu0 0.0
  %81 = vmatprep.subr.mxu0 0.0
  %82 = vmatpush1.msra.mxu0 0.0
  %83 = vmatprep.subr.mxu0 0.0
  %84 = vmatpush1.msra.mxu0 0.0
  %85 = vmatprep.subr.mxu0 0.0
  %86 = vmatpush1.msra.mxu0 0.0
  %87 = vmatprep.subr.mxu0 0.0
  %88 = vmatpush1.msra.mxu0 0.0
  %89 = vmatprep.subr.mxu0 0.0
  %90 = vmatpush1.msra.mxu0 0.0
  %91 = vmatprep.subr.mxu0 0.0
  %92 = vmatpush1.msra.mxu0 0.0
  %93 = vmatprep.subr.mxu0 0.0
  %94 = vmatpush1.msra.mxu0 0.0
  %95 = vmatprep.subr.mxu0 0.0
  %96 = vmatpush1.msra.mxu0 0.0
  %97 = vmatprep.subr.mxu0 0.0
  %98 = vmatpush1.msra.mxu0 0.0
  %99 = vmatprep.subr.mxu0 0.0
  %100 = vmatpush1.msra.mxu0 0.0
  %101 = vmatprep.subr.mxu0 0.0
  %102 = vmatpush1.msra.mxu0 0.0
  %103 = vmatprep.subr.mxu0 0.0
  %104 = vmatpush1.msra.mxu0 0.0
  %105 = vmatprep.subr.mxu0 0.0
  %106 = vmatpush1.msra.mxu0 0.0
  %107 = vmatprep.subr.mxu0 0.0
  %108 = vmatpush1.msra.mxu0 0.0
  %109 = vmatprep.mubr.f32.mxu0 0.0
  %110 = vmatmul.mubr.f32.gmra.mrb[0].mxu0 %v34
  %v111 = vpop.f32.mrb[0].mxu0
  %v112 = vadd.f32 %v31, %v111
  %v113 = vpop.f32.mrb[0].mxu0
  %114 = vmatprep.mubr.f32.mxu0 0.0
  %115 = vmatmul.mubr.f32.gmra.mrb[0].mxu0 %v37
  %v116 = vpop.f32.mrb[0].mxu0
  %v117 = vadd.f32 %v31, %v116
  %v118 = vpop.f32.mrb[0].mxu0
  %119 = vmatprep.mubr.f32.mxu0 0.0
  %120 = vmatmul.mubr.f32.gmra.mrb[0].mxu0 %v40
  %v121 = vpop.f32.mrb[0].mxu0
  %v122 = vadd.f32 %v31, %v121
  %v123 = vpop.f32.mrb[0].mxu0
  %124 = vmatprep.mubr.f32.mxu0 0.0
  %125 = vmatmul.mubr.f32.gmra.mrb[0].mxu0 %v43
  %v126 = vpop.f32.mrb[0].mxu0
  %v127 = vadd.f32 %v31, %v126
  %v128 = vpop.f32.mrb[0].mxu0
  %129 = vdwg.mxu0
  %v130 = vlaneseq
  %v131 = vshrl.u32 %v130, 7
  %v132 = vsub.s32 3, %v131
  %v133 = vrot.slane %v26, %v132
  %v134 = vsub.f32 %v112, %v133
  %v135 = vsub.f32 %v117, %v133
  %v136 = vsub.f32 %v122, %v133
  %v137 = vsub.f32 %v127, %v133
  %v138 = vadd.f32 %v26, 1e-05
  %v139 = vrsqrt.pop %v138
  %v141 = vrot.slane %v139, 3
  %v143 = vmul.f32 %v26, %v141
  %v144 = vlaneseq
  %v145 = vshrl.u32 %v144, 7
  %v146 = vsub.s32 1, %v145
  %v147 = vrot.slane %v143, %v146
  %v148 = vmul.f32 %v134, %v147
  %v149 = vmul.f32 %v135, %v147
  %v150 = vmul.f32 %v136, %v147
  %v151 = vmul.f32 %v137, %v147
  %v152 = vlaneseq
  %v153 = vshrl.u32 %v152, 7
  %v154 = vsub.s32 2, %v153
  %v155 = vrot.slane %v26, %v154
  %v156 = vadd.f32 %v148, %v155
  %v157 = vadd.f32 %v149, %v155
  %v158 = vadd.f32 %v150, %v155
  %v159 = vadd.f32 %v151, %v155
  %v160 = vmul.f32 %v156, 0.5
  %v161 = vmul.f32 %v157, 0.5
  %v162 = vmul.f32 %v158, 0.5
  %v163 = vmul.f32 %v159, 0.5
  %v164 = vmul.f32 %v156, 0.70710677
  %v165 = vmul.f32 %v157, 0.70710677
  %v166 = vmul.f32 %v158, 0.70710677
  %v167 = vmul.f32 %v159, 0.70710677
  %v168 = vmax.f32 %v164, -3.832507
  %v169 = vmax.f32 %v165, -3.832507
  %v170 = vmax.f32 %v166, -3.832507
  %v171 = vmax.f32 %v167, -3.832507
  %v172 = vmin.f32 %v168, 3.832507
  %v173 = vmin.f32 %v169, 3.832507
  %v174 = vmin.f32 %v170, 3.832507
  %v175 = vmin.f32 %v171, 3.832507
  %v176 = vmul.f32 %v172, %v172
  %v177 = vmul.f32 %v173, %v173
  %v178 = vmul.f32 %v174, %v174
  %v179 = vmul.f32 %v175, %v175
  %v180 = vmul.f32 %v176, -2.7261424e-10
  %v181 = vmul.f32 %v177, -2.7261424e-10
  %v182 = vmul.f32 %v178, -2.7261424e-10
  %v183 = vmul.f32 %v179, -2.7261424e-10
  %v184 = vadd.f32 %v180, 2.7706815e-08
  %v185 = vadd.f32 %v181, 2.7706815e-08
  %v186 = vadd.f32 %v182, 2.7706815e-08
  %v187 = vadd.f32 %v183, 2.7706815e-08
  %v188 = vmul.f32 %v184, %v176
  %v189 = vmul.f32 %v185, %v177
  %v190 = vmul.f32 %v186, %v178
  %v191 = vmul.f32 %v187, %v179
  %v192 = vadd.f32 %v188, -2.101024e-06
  %v193 = vadd.f32 %v189, -2.101024e-06
  %v194 = vadd.f32 %v190, -2.101024e-06
  %v195 = vadd.f32 %v191, -2.101024e-06
  %v196 = vmul.f32 %v192, %v176
  %v197 = vmul.f32 %v193, %v177
  %v198 = vmul.f32 %v194, %v178
  %v199 = vmul.f32 %v195, %v179
  %v200 = vadd.f32 %v196, -5.6925062e-05
  %v201 = vadd.f32 %v197, -5.6925062e-05
  %v202 = vadd.f32 %v198, -5.6925062e-05
  %v203 = vadd.f32 %v199, -5.6925062e-05
  %v204 = vmul.f32 %v200, %v176
  %v205 = vmul.f32 %v201, %v177
  %v206 = vmul.f32 %v202, %v178
  %v207 = vmul.f32 %v203, %v179
  %v208 = vadd.f32 %v204, -0.00073499064
  %v209 = vadd.f32 %v205, -0.00073499064
  %v210 = vadd.f32 %v206, -0.00073499064
  %v211 = vadd.f32 %v207, -0.00073499064
  %v212 = vmul.f32 %v208, %v176
  %v213 = vmul.f32 %v209, %v177
  %v214 = vmul.f32 %v210, %v178
  %v215 = vmul.f32 %v211, %v179
  %v216 = vadd.f32 %v212, -0.0029546
  %v217 = vadd.f32 %v213, -0.0029546
  %v218 = vadd.f32 %v214, -0.0029546
  %v219 = vadd.f32 %v215, -0.0029546
  %v220 = vmul.f32 %v216, %v176
  %v221 = vmul.f32 %v217, %v177
  %v222 = vmul.f32 %v218, %v178
  %v223 = vmul.f32 %v219, %v179
  %v224 = vadd.f32 %v220, -0.016096033
  %v225 = vadd.f32 %v221, -0.016096033
  %v226 = vadd.f32 %v222, -0.016096033
  %v227 = vadd.f32 %v223, -0.016096033
  %v228 = vmul.f32 %v224, %v172
  %v229 = vmul.f32 %v225, %v173
  %v230 = vmul.f32 %v226, %v174
  %v231 = vmul.f32 %v227, %v175
  %v232 = vmul.f32 %v176, -1.45660715e-05
  %v233 = vmul.f32 %v177, -1.45660715e-05
  %v234 = vmul.f32 %v178, -1.45660715e-05
  %v235 = vmul.f32 %v179, -1.45660715e-05
  %v236 = vadd.f32 %v232, -0.00021337405
  %v237 = vadd.f32 %v233, -0.00021337405
  %v238 = vadd.f32 %v234, -0.00021337405
  %v239 = vadd.f32 %v235, -0.00021337405
  %v240 = vmul.f32 %v236, %v176
  %v241 = vmul.f32 %v237, %v177
  %v242 = vmul.f32 %v238, %v178
  %v243 = vmul.f32 %v239, %v179
  %v244 = vadd.f32 %v240, -0.001682827
  %v245 = vadd.f32 %v241, -0.001682827
  %v246 = vadd.f32 %v242, -0.001682827
  %v247 = vadd.f32 %v243, -0.001682827
  %v248 = vmul.f32 %v244, %v176
  %v249 = vmul.f32 %v245, %v177
  %v250 = vmul.f32 %v246, %v178
  %v251 = vmul.f32 %v247, %v179
  %v252 = vadd.f32 %v248, -0.0073733293
  %v253 = vadd.f32 %v249, -0.0073733293
  %v254 = vadd.f32 %v250, -0.0073733293
  %v255 = vadd.f32 %v251, -0.0073733293
  %v256 = vmul.f32 %v252, %v176
  %v257 = vmul.f32 %v253, %v177
  %v258 = vmul.f32 %v254, %v178
  %v259 = vmul.f32 %v255, %v179
  %v260 = vadd.f32 %v256, -0.014264739
  %v261 = vadd.f32 %v257, -0.014264739
  %v262 = vadd.f32 %v258, -0.014264739
  %v263 = vadd.f32 %v259, -0.014264739
  %v264 = vrcp.pop %v260
  %v265 = vmul.f32 %v228, %v264
  %v266 = vrcp.pop %v261
  %v267 = vmul.f32 %v229, %v266
  %v268 = vrcp.pop %v262
  %v269 = vmul.f32 %v230, %v268
  %v270 = vrcp.pop %v263
  %v271 = vmul.f32 %v231, %v270
  %v272 = vadd.f32 %v265, 1.0
  %v273 = vadd.f32 %v267, 1.0
  %v274 = vadd.f32 %v269, 1.0
  %v275 = vadd.f32 %v271, 1.0
  %v276 = vmul.f32 %v160, %v272
  %v277 = vmul.f32 %v161, %v273
  %v278 = vmul.f32 %v162, %v274
  %v279 = vmul.f32 %v163, %v275
  %v281 = vlaneseq
  %v282 = vshrl.u32 %v281, 7
  %v283 = vsub.s32 0, %v282
  %v284 = vrot.slane %v27, %v283
  %v287 = vsel %vm32, %v276, 0
  %v290 = vsel %vm32, %v277, 0
  %v293 = vsel %vm32, %v278, 0
  %v296 = vsel %vm32, %v279, 0
  %298 = vmatprep.subr.mxu0 0.0
  %299 = vmatpush1.msra.mxu0 %v25
  %300 = vmatprep.subr.mxu0 0.0
  %301 = vmatpush1.msra.mxu0 0.0
  %302 = vmatprep.subr.mxu0 0.0
  %303 = vmatpush1.msra.mxu0 0.0
  %304 = vmatprep.subr.mxu0 0.0
  %305 = vmatpush1.msra.mxu0 0.0
  %306 = vmatprep.subr.mxu0 0.0
  %307 = vmatpush1.msra.mxu0 0.0
  %308 = vmatprep.subr.mxu0 0.0
  %309 = vmatpush1.msra.mxu0 0.0
  %310 = vmatprep.subr.mxu0 0.0
  %311 = vmatpush1.msra.mxu0 0.0
  %312 = vmatprep.subr.mxu0 0.0
  %313 = vmatpush1.msra.mxu0 0.0
  %314 = vmatprep.subr.mxu0 0.0
  %315 = vmatpush1.msra.mxu0 0.0
  %316 = vmatprep.subr.mxu0 0.0
  %317 = vmatpush1.msra.mxu0 0.0
  %318 = vmatprep.subr.mxu0 0.0
  %319 = vmatpush1.msra.mxu0 0.0
  %320 = vmatprep.subr.mxu0 0.0
  %321 = vmatpush1.msra.mxu0 0.0
  %322 = vmatprep.subr.mxu0 0.0
  %323 = vmatpush1.msra.mxu0 0.0
  %324 = vmatprep.subr.mxu0 0.0
  %325 = vmatpush1.msra.mxu0 0.0
  %326 = vmatprep.subr.mxu0 0.0
  %327 = vmatpush1.msra.mxu0 0.0
  %328 = vmatprep.subr.mxu0 0.0
  %329 = vmatpush1.msra.mxu0 0.0
  %330 = vmatprep.subr.mxu0 0.0
  %331 = vmatpush1.msra.mxu0 0.0
  %332 = vmatprep.subr.mxu0 0.0
  %333 = vmatpush1.msra.mxu0 0.0
  %334 = vmatprep.subr.mxu0 0.0
  %335 = vmatpush1.msra.mxu0 0.0
  %336 = vmatprep.subr.mxu0 0.0
  %337 = vmatpush1.msra.mxu0 0.0
  %338 = vmatprep.subr.mxu0 0.0
  %339 = vmatpush1.msra.mxu0 0.0
  %340 = vmatprep.subr.mxu0 0.0
  %341 = vmatpush1.msra.mxu0 0.0
  %342 = vmatprep.subr.mxu0 0.0
  %343 = vmatpush1.msra.mxu0 0.0
  %344 = vmatprep.subr.mxu0 0.0
  %345 = vmatpush1.msra.mxu0 0.0
  %346 = vmatprep.subr.mxu0 0.0
  %347 = vmatpush1.msra.mxu0 0.0
  %348 = vmatprep.subr.mxu0 0.0
  %349 = vmatpush1.msra.mxu0 0.0
  %350 = vmatprep.subr.mxu0 0.0
  %351 = vmatpush1.msra.mxu0 0.0
  %352 = vmatprep.subr.mxu0 0.0
  %353 = vmatpush1.msra.mxu0 0.0
  %354 = vmatprep.subr.mxu0 0.0
  %355 = vmatpush1.msra.mxu0 0.0
  %356 = vmatprep.subr.mxu0 0.0
  %357 = vmatpush1.msra.mxu0 0.0
  %358 = vmatprep.subr.mxu0 0.0
  %359 = vmatpush1.msra.mxu0 0.0
  %360 = vmatprep.subr.mxu0 0.0
  %361 = vmatpush1.msra.mxu0 0.0
  %362 = vmatprep.mubr.f32.mxu0 0.0
  %363 = vmatmul.mubr.f32.gmra.mrb[0].mxu0 %v287
  %v364 = vpop.f32.mrb[0].mxu0
  %v365 = vadd.f32 %v284, %v364
  %v366 = vpop.f32.mrb[0].mxu0
  %367 = vmatprep.mubr.f32.mxu0 0.0
  %368 = vmatmul.mubr.f32.gmra.mrb[0].mxu0 %v290
  %v369 = vpop.f32.mrb[0].mxu0
  %v370 = vadd.f32 %v284, %v369
  %v371 = vpop.f32.mrb[0].mxu0
  %372 = vmatprep.mubr.f32.mxu0 0.0
  %373 = vmatmul.mubr.f32.gmra.mrb[0].mxu0 %v293
  %v374 = vpop.f32.mrb[0].mxu0
  %v375 = vadd.f32 %v284, %v374
  %v376 = vpop.f32.mrb[0].mxu0
  %377 = vmatprep.mubr.f32.mxu0 0.0
  %378 = vmatmul.mubr.f32.gmra.mrb[0].mxu0 %v296
  %v379 = vpop.f32.mrb[0].mxu0
  %v380 = vadd.f32 %v284, %v379
  %v381 = vpop.f32.mrb[0].mxu0
  %382 = vdwg.mxu0
  %v383 = vadd.f32 %v365, %v20
  %v384 = vadd.f32 %v370, %v21
  %v385 = vadd.f32 %v375, %v22
  %v386 = vadd.f32 %v380, %v23
  %387 = vst.msk [vmem:[%s5] sm:$0xff] %vm32, %v383
  %388 = vst.msk [vmem:[%s5 + $0x8] sm:$0xff] %vm32, %v384
  %389 = vst.msk [vmem:[%s5 + $0x10] sm:$0xff] %vm32, %v385
  %390 = vst.msk [vmem:[%s5 + $0x18] sm:$0xff] %vm32, %v386
  // Predicated region
  $region22: #{vig_block.5} parent=0 // pred_check
    _
  $region23: #{vig_block.5} parent=0 // pred_check_branch
    %392 = sbr.rel (0) target = $region25
  $region24: #{vig_block.5} parent=0 // pred_region
    _
  $region25: #{vig_block.5} parent=0 // pred_fallthru
    _
  // Predicated region
  $region26: #{vig_block.5} parent=0 // pred_check
    _
  $region27: #{vig_block.5} parent=0 // pred_check_branch
    %394 = sbr.rel (0) target = $region29
  $region28: #{vig_block.5} parent=0 // pred_region
    _
  $region29: #{vig_block.5} parent=0 // pred_fallthru
    _

// kernel: vig_block.4
$region0: #{vig_block.4}
  #allocation0 [shape = 'u32[]', space=smem, size = 0x4, offset = 0x4, fixed_abs, tag = 'smem constant byte address 0x4 - core index']
  #allocation1 [shape = 'u32[144,128]{1,0:T(1,128)}', space=vmem, size = 0x12000, scoped, tag = 'internal scratch']
  %s0 = inlined_call_operand.vmem [shape: f32[2,16,8], index: 0, kind: input, shape index: {}, may-alias: {0,1}]
  %s1 = inlined_call_operand.vmem [shape: f32[2,16,8], index: 1, kind: input, shape index: {}, may-alias: {0,1}]
  %s2 = inlined_call_operand.vmem [shape: f32[2,16,16], index: 2, kind: output, shape index: {}]
  %s3 = sld [smem:[#allocation0]]
  $region41: #{vig_block.4} parent=0
    _
  %s5 = ssub.s32 1, %s3
  %s6 = scalar_select 0, %s5, %s3
  loop: start=0, step=1, limit=4
  $region2: #{vig_block.4} parent=0 // loop_pre_header
    _
  $region3: #{vig_block.4} parent=0 // loop_header
    %s8 = sphi 0, %s12
    %p9 = scmp.ge.s32.totalorder %s8, 4
    %s15 = sphi 0, %s27
    %s16 = sphi 0, %s23
    %s17 = sphi 0, %s15
    %s18 = sphi 0, %s16
    %s19 = sphi 0, %s17
    %s20 = sphi 0, %s18
    %s32 = sphi 0, %s34
    %s35 = sphi 0, %s32
    %s36 = sphi 0, %s35
    %s52 = sphi 0, %s36
    %s58 = sphi 0, %s60
    %s61 = sphi 0, %s58
    %s62 = sphi 0, %s61
    %s78 = sphi 0, %s62
    %s86 = sphi 0, %s88
    %s89 = sphi 0, %s86
    %s90 = sphi 0, %s89
    %s106 = sphi 0, %s90
  $region4: #{vig_block.4} parent=0 // loop_header_branch
    %11 = sbr.rel (%p9) target = $region8
  $region5: #{vig_block.4} parent=0 // loop_body
    %s13 = ssub.s32 %s8, 1
    %s14 = ssub.s32 %s8, 2
    %s21 = sadd.s32 1, %s16
    %p22 = scmp.ge.s32.totalorder %s21, 1
    %s23 = scalar_select %p22, 0, %s21
    %s24 = sadd.s32 1, %s15
    %s25 = scalar_select %p22, %s24, %s15
    %p26 = scmp.ge.s32.totalorder %s25, 2
    %s27 = scalar_select %p26, 0, %s25
    %s28 = ssub.s32 %s15, %s27
    %s29 = ssub.s32 %s16, %s23
    %s30 = sor.u32 %s28, %s29
    %p31 = scmp.eq.s32.totalorder %s30, 0
    %s33 = sadd.s32 %s32, 1
    %s34 = scalar_select %p31, %s32, %s33
    %p37 = pneg %p31
    %p38 = scmp.eq.s32.totalorder %s8, 1
    %p39 = por %p37, %p38
    %p40 = scmp.ne.s32.totalorder %s32, %s35
    %p41 = scmp.eq.s32.totalorder %s8, 0
    %p42 = por %p40, %p41
    %p43 = scmp.ne.s32.totalorder %s32, %s35
    %p44 = scmp.eq.s32.totalorder %s13, 1
    %p45 = por %p43, %p44
    %p46 = scmp.ne.s32.totalorder %s35, %s36
    %p47 = scmp.eq.s32.totalorder %s13, 0
    %p48 = por %p46, %p47
    %p49 = scmp.ne.s32.totalorder %s35, %s36
    %p50 = scmp.eq.s32.totalorder %s14, 1
    %p51 = por %p49, %p50
    %p53 = scmp.ne.s32.totalorder %s36, %s52
    %p54 = scmp.eq.s32.totalorder %s14, 0
    %p55 = por %p53, %p54
    %s56 = ssub.s32 %s15, %s27
    %p57 = scmp.eq.s32.totalorder %s56, 0
    %s59 = sadd.s32 %s58, 1
    %s60 = scalar_select %p57, %s58, %s59
    %p63 = pneg %p57
    %p64 = scmp.eq.s32.totalorder %s8, 1
    %p65 = por %p63, %p64
    %p66 = scmp.ne.s32.totalorder %s58, %s61
    %p67 = scmp.eq.s32.totalorder %s8, 0
    %p68 = por %p66, %p67
    %p69 = scmp.ne.s32.totalorder %s58, %s61
    %p70 = scmp.eq.s32.totalorder %s13, 1
    %p71 = por %p69, %p70
    %p72 = scmp.ne.s32.totalorder %s61, %s62
    %p73 = scmp.eq.s32.totalorder %s13, 0
    %p74 = por %p72, %p73
    %p75 = scmp.ne.s32.totalorder %s61, %s62
    %p76 = scmp.eq.s32.totalorder %s14, 1
    %p77 = por %p75, %p76
    %p79 = scmp.ne.s32.totalorder %s62, %s78
    %p80 = scmp.eq.s32.totalorder %s14, 0
    %p81 = por %p79, %p80
    %s82 = ssub.s32 %s15, %s27
    %s83 = ssub.s32 %s16, %s23
    %s84 = sor.u32 %s82, %s83
    %p85 = scmp.eq.s32.totalorder %s84, 0
    %s87 = sadd.s32 %s86, 1
    %s88 = scalar_select %p85, %s86, %s87
    %p91 = pneg %p85
    %p92 = scmp.eq.s32.totalorder %s8, 1
    %p93 = por %p91, %p92
    %p94 = scmp.ne.s32.totalorder %s86, %s89
    %p95 = scmp.eq.s32.totalorder %s8, 0
    %p96 = por %p94, %p95
    %p97 = scmp.ne.s32.totalorder %s86, %s89
    %p98 = scmp.eq.s32.totalorder %s13, 1
    %p99 = por %p97, %p98
    %p100 = scmp.ne.s32.totalorder %s89, %s90
    %p101 = scmp.eq.s32.totalorder %s13, 0
    %p102 = por %p100, %p101
    %p103 = scmp.ne.s32.totalorder %s89, %s90
    %p104 = scmp.eq.s32.totalorder %s14, 1
    %p105 = por %p103, %p104
    %p107 = scmp.ne.s32.totalorder %s90, %s106
    %p108 = scmp.eq.s32.totalorder %s14, 0
    %p109 = por %p107, %p108
    %p110 = scmp.le.s32.totalorder 1, %s8
    %p111 = scmp.lt.s32.totalorder %s8, 3
    %p112 = pnand %p110, %p111
    %p113 = pneg %p112
    // Predicated region
    $region9: #{vig_block.4} parent=5 // pred_check
      _
    $region10: #{vig_block.4} parent=5 // pred_check_branch
      %115 = sbr.rel (%p112) target = $region12
    $region11: #{vig_block.4} parent=5 // pred_region
      %s116 = ssub.s32 %s8, 1
    $region12: #{vig_block.4} parent=5 // pred_fallthru
      _
    %p117 = scmp.lt.s32.totalorder %s8, 2
    // Predicated region
    $region13: #{vig_block.4} parent=5 // pred_check
      %p118 = pneg %p117
    $region14: #{vig_block.4} parent=5 // pred_check_branch
      %120 = sbr.rel (%p118) target = $region16
    $region15: #{vig_block.4} parent=5 // pred_region
      // Predicated region
      $region17: #{vig_block.4} parent=15 // pred_check
        %p121 = pneg %p42
      $region18: #{vig_block.4} parent=15 // pred_check_branch
        %123 = sbr.rel (%p121) target = $region20
      $region19: #{vig_block.4} parent=15 // pred_region
        %s124 = smul.u32 2, %s16
        %p125 = scmp.lt.s32.totalorder %s15, 1
        %s126 = scalar_select %p125, %s15, 1
        %p127 = scmp.lt.s32.totalorder %s124, 1
        %s128 = scalar_select %p127, %s124, 1
        %s129 = smul.addr %s126, 2
        %s130 = sadd.s32 %s128, %s129
        %s131 = smul.addr %s130, 8
        %s132 = scalar_lea.vmem %s0, %s131
        %s133 = smul.u32 2, %s16
      $region20: #{vig_block.4} parent=15 // pred_fallthru
        _
      // Predicated region
      $region21: #{vig_block.4} parent=15 // pred_check
        %p134 = pneg %p68
      $region22: #{vig_block.4} parent=15 // pred_check_branch
        %136 = sbr.rel (%p134) target = $region24
      $region23: #{vig_block.4} parent=15 // pred_region
        %p137 = scmp.lt.s32.totalorder %s15, 1
        %s138 = scalar_select %p137, %s15, 1
        %s139 = smul.addr %s138, 2
        %s140 = smul.addr %s139, 8
        %s141 = scalar_lea.vmem %s1, %s140
      $region24: #{vig_block.4} parent=15 // pred_fallthru
        _
    $region16: #{vig_block.4} parent=5 // pred_fallthru
      _
    %p142 = scmp.le.s32.totalorder 1, %s8
    %p143 = scmp.lt.s32.totalorder %s8, 3
    %p144 = pnand %p142, %p143
    %p145 = pneg %p144
    // Predicated region
    $region25: #{vig_block.4} parent=5 // pred_check
      _
    $region26: #{vig_block.4} parent=5 // pred_check_branch
      %147 = sbr.rel (%p144) target = $region28
    $region27: #{vig_block.4} parent=5 // pred_region
      %s148 = ssub.s32 %s8, 1
      %s149 = smul.u32 2, %s18
      %p150 = scmp.lt.s32.totalorder %s17, 1
      %s151 = scalar_select %p150, %s17, 1
      %p152 = scmp.lt.s32.totalorder %s149, 1
      %s153 = scalar_select %p152, %s149, 1
      %s154 = smul.addr %s151, 2
      %s155 = sadd.s32 %s153, %s154
      %s156 = smul.addr %s155, 8
      %s157 = scalar_lea.vmem %s0, %s156
      %p158 = pneg %p48
      %p159 = pneg %p45
      %p160 = scmp.lt.s32.totalorder %s17, 1
      %s161 = scalar_select %p160, %s17, 1
      %s162 = smul.addr %s161, 2
      %s163 = smul.addr %s162, 8
      %s164 = scalar_lea.vmem %s1, %s163
      %p165 = pneg %p74
      %p166 = pneg %p71
      %p167 = pneg %p102
      %p168 = pneg %p99
      %s169 = smul.u32 2, %s18
      %p170 = scmp.lt.s32.totalorder %s17, 1
      %s171 = scalar_select %p170, %s17, 1
      %p172 = scmp.lt.s32.totalorder %s169, 1
      %s173 = scalar_select %p172, %s169, 1
      %s174 = smul.addr %s171, 2
      %s175 = sadd.s32 %s173, %s174
      %s176 = smul.addr %s175, 8
      %s177 = scalar_lea.vmem %s2, %s176
      %s178 = smul.u32 2, %s18
      %p179 = scmp.lt.s32.totalorder %s17, 1
      %s180 = scalar_select %p179, %s17, 1
      %p181 = scmp.lt.s32.totalorder %s178, 1
      %s182 = scalar_select %p181, %s178, 1
      %s183 = smul.addr %s180, 2
      %s184 = sadd.s32 %s182, %s183
      %s185 = smul.addr %s184, 8
      %s186 = scalar_lea.vmem %s0, %s185
      %s187 = smul.u32 2, %s18
      %p188 = scmp.lt.s32.totalorder %s17, 1
      %s189 = scalar_select %p188, %s17, 1
      %s190 = smul.addr %s189, 2
      %s191 = smul.addr %s190, 8
      %s192 = scalar_lea.vmem %s1, %s191
      %s193 = smul.u32 2, %s18
      %p194 = scmp.lt.s32.totalorder %s17, 1
      %s195 = scalar_select %p194, %s17, 1
      %p196 = scmp.lt.s32.totalorder %s193, 1
      %s197 = scalar_select %p196, %s193, 1
      %s198 = smul.addr %s195, 2
      %s199 = sadd.s32 %s197, %s198
      %s200 = smul.addr %s199, 8
      %s201 = scalar_lea.vmem %s2, %s200
      %s202 = smul.u32 2, %s18
      %v203 = vld [vmem:[%s186] sm:$0xff]
      %v204 = vld [vmem:[%s186 + $0x8] sm:$0xff]
      %v205 = vld [vmem:[%s192] sm:$0xff]
      %v206 = vld [vmem:[%s192 + $0x8] sm:$0xff]
      %vm207 = vcmask 64512
      %v209 = vsel %vm207, %v203, 0
      %v212 = vsel %vm207, %v204, 0
      %v215 = vsel %vm207, %v205, 0
      %v218 = vsel %vm207, %v206, 0
      %220 = vmatprep.subr.mxu0 0.0
      %221 = vmatpush1.xpose.msra.mxu0 %v215
      %222 = vmatprep.subr.mxu0 0.0
      %223 = vmatpush1.xpose.msra.mxu0 %v218
      %224 = vmatprep.subr.mxu0 0.0
      %225 = vmatpush1.xpose.msra.mxu0 0.0
      %226 = vmatprep.subr.mxu0 0.0
      %227 = vmatpush1.xpose.msra.mxu0 0.0
      %228 = vmatprep.subr.mxu0 0.0
      %229 = vmatpush1.xpose.msra.mxu0 0.0
      %230 = vmatprep.subr.mxu0 0.0
      %231 = vmatpush1.xpose.msra.mxu0 0.0
      %232 = vmatprep.subr.mxu0 0.0
      %233 = vmatpush1.xpose.msra.mxu0 0.0
      %234 = vmatprep.subr.mxu0 0.0
      %235 = vmatpush1.xpose.msra.mxu0 0.0
      %236 = vmatprep.subr.mxu0 0.0
      %237 = vmatpush1.xpose.msra.mxu0 0.0
      %238 = vmatprep.subr.mxu0 0.0
      %239 = vmatpush1.xpose.msra.mxu0 0.0
      %240 = vmatprep.subr.mxu0 0.0
      %241 = vmatpush1.xpose.msra.mxu0 0.0
      %242 = vmatprep.subr.mxu0 0.0
      %243 = vmatpush1.xpose.msra.mxu0 0.0
      %244 = vmatprep.subr.mxu0 0.0
      %245 = vmatpush1.xpose.msra.mxu0 0.0
      %246 = vmatprep.subr.mxu0 0.0
      %247 = vmatpush1.xpose.msra.mxu0 0.0
      %248 = vmatprep.subr.mxu0 0.0
      %249 = vmatpush1.xpose.msra.mxu0 0.0
      %250 = vmatprep.subr.mxu0 0.0
      %251 = vmatpush1.xpose.msra.mxu0 0.0
      %252 = vmatprep.subr.mxu0 0.0
      %253 = vmatpush1.xpose.msra.mxu0 0.0
      %254 = vmatprep.subr.mxu0 0.0
      %255 = vmatpush1.xpose.msra.mxu0 0.0
      %256 = vmatprep.subr.mxu0 0.0
      %257 = vmatpush1.xpose.msra.mxu0 0.0
      %258 = vmatprep.subr.mxu0 0.0
      %259 = vmatpush1.xpose.msra.mxu0 0.0
      %260 = vmatprep.subr.mxu0 0.0
      %261 = vmatpush1.xpose.msra.mxu0 0.0
      %262 = vmatprep.subr.mxu0 0.0
      %263 = vmatpush1.xpose.msra.mxu0 0.0
      %264 = vmatprep.subr.mxu0 0.0
      %265 = vmatpush1.xpose.msra.mxu0 0.0
      %266 = vmatprep.subr.mxu0 0.0
      %267 = vmatpush1.xpose.msra.mxu0 0.0
      %268 = vmatprep.subr.mxu0 0.0
      %269 = vmatpush1.xpose.msra.mxu0 0.0
      %270 = vmatprep.subr.mxu0 0.0
      %271 = vmatpush1.xpose.msra.mxu0 0.0
      %272 = vmatprep.subr.mxu0 0.0
      %273 = vmatpush1.xpose.msra.mxu0 0.0
      %274 = vmatprep.subr.mxu0 0.0
      %275 = vmatpush1.xpose.msra.mxu0 0.0
      %276 = vmatprep.subr.mxu0 0.0
      %277 = vmatpush1.xpose.msra.mxu0 0.0
      %278 = vmatprep.subr.mxu0 0.0
      %279 = vmatpush1.xpose.msra.mxu0 0.0
      %280 = vmatprep.subr.mxu0 0.0
      %281 = vmatpush1.xpose.msra.mxu0 0.0
      %282 = vmatprep.subr.mxu0 0.0
      %283 = vmatpush1.xpose.msra.mxu0 0.0
      %284 = vmatprep.mubr.f32.mxu0 0.0
      %285 = vmatmul.mubr.f32.gmra.mrb[0].mxu0 %v209
      %v286 = vpop.f32.mrb[0].mxu0
      %v287 = vadd.f32 0.0, %v286
      %v288 = vpop.f32.mrb[0].mxu0
      %289 = vmatprep.mubr.f32.mxu0 0.0
      %290 = vmatmul.mubr.f32.gmra.mrb[0].mxu0 %v212
      %v291 = vpop.f32.mrb[0].mxu0
      %v292 = vadd.f32 0.0, %v291
      %v293 = vpop.f32.mrb[0].mxu0
      %294 = vdwg.mxu0
      %vm295 = vcmask 130048
      %296 = vst.msk [vmem:[%s201] sm:$0xff] %vm295, %v287
      %297 = vst.msk [vmem:[%s201 + $0x8] sm:$0xff] %vm295, %v292
      %s298 = smul.u32 2, %s18
      %p299 = scmp.lt.s32.totalorder %s17, 1
      %s300 = scalar_select %p299, %s17, 1
      %p301 = scmp.lt.s32.totalorder %s298, 1
      %s302 = scalar_select %p301, %s298, 1
      %s303 = smul.addr %s300, 2
      %s304 = sadd.s32 %s302, %s303
      %s305 = smul.addr %s304, 8
      %s306 = scalar_lea.vmem %s2, %s305
      // Predicated region
      $region29: #{vig_block.4} parent=27 // pred_check
        %p307 = pneg %p99
      $region30: #{vig_block.4} parent=27 // pred_check_branch
        %309 = sbr.rel (%p307) target = $region32
      $region31: #{vig_block.4} parent=27 // pred_region
        %s310 = smul.u32 2, %s18
      $region32: #{vig_block.4} parent=27 // pred_fallthru
        _
    $region28: #{vig_block.4} parent=5 // pred_fallthru
      _
    %p311 = scmp.le.s32.totalorder 2, %s8
    // Predicated region
    $region33: #{vig_block.4} parent=5 // pred_check
      %p312 = pneg %p311
    $region34: #{vig_block.4} parent=5 // pred_check_branch
      %314 = sbr.rel (%p312) target = $region36
    $region35: #{vig_block.4} parent=5 // pred_region
      %s315 = ssub.s32 %s8, 2
      // Predicated region
      $region37: #{vig_block.4} parent=35 // pred_check
        %p316 = pneg %p105
      $region38: #{vig_block.4} parent=35 // pred_check_branch
        %318 = sbr.rel (%p316) target = $region40
      $region39: #{vig_block.4} parent=35 // pred_region
        %s319 = smul.u32 2, %s20
        %p320 = scmp.lt.s32.totalorder %s19, 1
        %s321 = scalar_select %p320, %s19, 1
        %p322 = scmp.lt.s32.totalorder %s319, 1
        %s323 = scalar_select %p322, %s319, 1
        %s324 = smul.addr %s321, 2
        %s325 = sadd.s32 %s323, %s324
        %s326 = smul.addr %s325, 8
        %s327 = scalar_lea.vmem %s2, %s326
      $region40: #{vig_block.4} parent=35 // pred_fallthru
        _
    $region36: #{vig_block.4} parent=5 // pred_fallthru
      _
  $region6: #{vig_block.4} parent=0 // loop_footer
    %s12 = sadd.s32 1, %s8
  $region7: #{vig_block.4} parent=0 // loop_footer_branch
    %7 = sbr.rel target = $region3
  $region8: #{vig_block.4} parent=0 // loop_exit
    _

// kernel: vig_block.6
$region0: #{vig_block.6}
  #allocation0 [shape = 'u32[]', space=smem, size = 0x4, offset = 0x4, fixed_abs, tag = 'smem constant byte address 0x4 - core index']
  #allocation1 [shape = 'u32[144,128]{1,0:T(1,128)}', space=vmem, size = 0x12000, scoped, tag = 'internal scratch']
  %s0 = inlined_call_operand.vmem [shape: s32[2,16,9], index: 0, kind: input, shape index: {}]
  %s1 = inlined_call_operand.vmem [shape: f32[2,16,8], index: 1, kind: input, shape index: {}]
  %s2 = inlined_call_operand.vmem [shape: f32[2,16,8], index: 2, kind: output, shape index: {}]
  %s3 = sld [smem:[#allocation0]]
  $region41: #{vig_block.6} parent=0
    _
  %s5 = ssub.s32 1, %s3
  %s6 = scalar_select 0, %s5, %s3
  loop: start=0, step=1, limit=4
  $region2: #{vig_block.6} parent=0 // loop_pre_header
    _
  $region3: #{vig_block.6} parent=0 // loop_header
    %s8 = sphi 0, %s12
    %p9 = scmp.ge.s32.totalorder %s8, 4
    %s15 = sphi 0, %s27
    %s16 = sphi 0, %s23
    %s17 = sphi 0, %s15
    %s18 = sphi 0, %s16
    %s19 = sphi 0, %s17
    %s20 = sphi 0, %s18
    %s32 = sphi 0, %s34
    %s35 = sphi 0, %s32
    %s36 = sphi 0, %s35
    %s52 = sphi 0, %s36
    %s58 = sphi 0, %s60
    %s61 = sphi 0, %s58
    %s62 = sphi 0, %s61
    %s78 = sphi 0, %s62
    %s86 = sphi 0, %s88
    %s89 = sphi 0, %s86
    %s90 = sphi 0, %s89
    %s106 = sphi 0, %s90
  $region4: #{vig_block.6} parent=0 // loop_header_branch
    %11 = sbr.rel (%p9) target = $region8
  $region5: #{vig_block.6} parent=0 // loop_body
    %s13 = ssub.s32 %s8, 1
    %s14 = ssub.s32 %s8, 2
    %s21 = sadd.s32 1, %s16
    %p22 = scmp.ge.s32.totalorder %s21, 1
    %s23 = scalar_select %p22, 0, %s21
    %s24 = sadd.s32 1, %s15
    %s25 = scalar_select %p22, %s24, %s15
    %p26 = scmp.ge.s32.totalorder %s25, 2
    %s27 = scalar_select %p26, 0, %s25
    %s28 = ssub.s32 %s15, %s27
    %s29 = ssub.s32 %s16, %s23
    %s30 = sor.u32 %s28, %s29
    %p31 = scmp.eq.s32.totalorder %s30, 0
    %s33 = sadd.s32 %s32, 1
    %s34 = scalar_select %p31, %s32, %s33
    %p37 = pneg %p31
    %p38 = scmp.eq.s32.totalorder %s8, 1
    %p39 = por %p37, %p38
    %p40 = scmp.ne.s32.totalorder %s32, %s35
    %p41 = scmp.eq.s32.totalorder %s8, 0
    %p42 = por %p40, %p41
    %p43 = scmp.ne.s32.totalorder %s32, %s35
    %p44 = scmp.eq.s32.totalorder %s13, 1
    %p45 = por %p43, %p44
    %p46 = scmp.ne.s32.totalorder %s35, %s36
    %p47 = scmp.eq.s32.totalorder %s13, 0
    %p48 = por %p46, %p47
    %p49 = scmp.ne.s32.totalorder %s35, %s36
    %p50 = scmp.eq.s32.totalorder %s14, 1
    %p51 = por %p49, %p50
    %p53 = scmp.ne.s32.totalorder %s36, %s52
    %p54 = scmp.eq.s32.totalorder %s14, 0
    %p55 = por %p53, %p54
    %s56 = ssub.s32 %s15, %s27
    %p57 = scmp.eq.s32.totalorder %s56, 0
    %s59 = sadd.s32 %s58, 1
    %s60 = scalar_select %p57, %s58, %s59
    %p63 = pneg %p57
    %p64 = scmp.eq.s32.totalorder %s8, 1
    %p65 = por %p63, %p64
    %p66 = scmp.ne.s32.totalorder %s58, %s61
    %p67 = scmp.eq.s32.totalorder %s8, 0
    %p68 = por %p66, %p67
    %p69 = scmp.ne.s32.totalorder %s58, %s61
    %p70 = scmp.eq.s32.totalorder %s13, 1
    %p71 = por %p69, %p70
    %p72 = scmp.ne.s32.totalorder %s61, %s62
    %p73 = scmp.eq.s32.totalorder %s13, 0
    %p74 = por %p72, %p73
    %p75 = scmp.ne.s32.totalorder %s61, %s62
    %p76 = scmp.eq.s32.totalorder %s14, 1
    %p77 = por %p75, %p76
    %p79 = scmp.ne.s32.totalorder %s62, %s78
    %p80 = scmp.eq.s32.totalorder %s14, 0
    %p81 = por %p79, %p80
    %s82 = ssub.s32 %s15, %s27
    %s83 = ssub.s32 %s16, %s23
    %s84 = sor.u32 %s82, %s83
    %p85 = scmp.eq.s32.totalorder %s84, 0
    %s87 = sadd.s32 %s86, 1
    %s88 = scalar_select %p85, %s86, %s87
    %p91 = pneg %p85
    %p92 = scmp.eq.s32.totalorder %s8, 1
    %p93 = por %p91, %p92
    %p94 = scmp.ne.s32.totalorder %s86, %s89
    %p95 = scmp.eq.s32.totalorder %s8, 0
    %p96 = por %p94, %p95
    %p97 = scmp.ne.s32.totalorder %s86, %s89
    %p98 = scmp.eq.s32.totalorder %s13, 1
    %p99 = por %p97, %p98
    %p100 = scmp.ne.s32.totalorder %s89, %s90
    %p101 = scmp.eq.s32.totalorder %s13, 0
    %p102 = por %p100, %p101
    %p103 = scmp.ne.s32.totalorder %s89, %s90
    %p104 = scmp.eq.s32.totalorder %s14, 1
    %p105 = por %p103, %p104
    %p107 = scmp.ne.s32.totalorder %s90, %s106
    %p108 = scmp.eq.s32.totalorder %s14, 0
    %p109 = por %p107, %p108
    %p110 = scmp.le.s32.totalorder 1, %s8
    %p111 = scmp.lt.s32.totalorder %s8, 3
    %p112 = pnand %p110, %p111
    %p113 = pneg %p112
    // Predicated region
    $region9: #{vig_block.6} parent=5 // pred_check
      _
    $region10: #{vig_block.6} parent=5 // pred_check_branch
      %115 = sbr.rel (%p112) target = $region12
    $region11: #{vig_block.6} parent=5 // pred_region
      %s116 = ssub.s32 %s8, 1
    $region12: #{vig_block.6} parent=5 // pred_fallthru
      _
    %p117 = scmp.lt.s32.totalorder %s8, 2
    // Predicated region
    $region13: #{vig_block.6} parent=5 // pred_check
      %p118 = pneg %p117
    $region14: #{vig_block.6} parent=5 // pred_check_branch
      %120 = sbr.rel (%p118) target = $region16
    $region15: #{vig_block.6} parent=5 // pred_region
      // Predicated region
      $region17: #{vig_block.6} parent=15 // pred_check
        %p121 = pneg %p42
      $region18: #{vig_block.6} parent=15 // pred_check_branch
        %123 = sbr.rel (%p121) target = $region20
      $region19: #{vig_block.6} parent=15 // pred_region
        %s124 = smul.u32 2, %s16
        %p125 = scmp.lt.s32.totalorder %s15, 1
        %s126 = scalar_select %p125, %s15, 1
        %p127 = scmp.lt.s32.totalorder %s124, 1
        %s128 = scalar_select %p127, %s124, 1
        %s129 = smul.addr %s126, 2
        %s130 = sadd.s32 %s128, %s129
        %s131 = smul.addr %s130, 8
        %s132 = scalar_lea.vmem %s0, %s131
        %s133 = smul.u32 2, %s16
      $region20: #{vig_block.6} parent=15 // pred_fallthru
        _
      // Predicated region
      $region21: #{vig_block.6} parent=15 // pred_check
        %p134 = pneg %p68
      $region22: #{vig_block.6} parent=15 // pred_check_branch
        %136 = sbr.rel (%p134) target = $region24
      $region23: #{vig_block.6} parent=15 // pred_region
        %p137 = scmp.lt.s32.totalorder %s15, 1
        %s138 = scalar_select %p137, %s15, 1
        %s139 = smul.addr %s138, 2
        %s140 = smul.addr %s139, 8
        %s141 = scalar_lea.vmem %s1, %s140
      $region24: #{vig_block.6} parent=15 // pred_fallthru
        _
    $region16: #{vig_block.6} parent=5 // pred_fallthru
      _
    %p142 = scmp.le.s32.totalorder 1, %s8
    %p143 = scmp.lt.s32.totalorder %s8, 3
    %p144 = pnand %p142, %p143
    %p145 = pneg %p144
    // Predicated region
    $region25: #{vig_block.6} parent=5 // pred_check
      _
    $region26: #{vig_block.6} parent=5 // pred_check_branch
      %147 = sbr.rel (%p144) target = $region28
    $region27: #{vig_block.6} parent=5 // pred_region
      %s148 = ssub.s32 %s8, 1
      %s149 = smul.u32 2, %s18
      %p150 = scmp.lt.s32.totalorder %s17, 1
      %s151 = scalar_select %p150, %s17, 1
      %p152 = scmp.lt.s32.totalorder %s149, 1
      %s153 = scalar_select %p152, %s149, 1
      %s154 = smul.addr %s151, 2
      %s155 = sadd.s32 %s153, %s154
      %s156 = smul.addr %s155, 8
      %s157 = scalar_lea.vmem %s0, %s156
      %p158 = pneg %p48
      %p159 = pneg %p45
      %p160 = scmp.lt.s32.totalorder %s17, 1
      %s161 = scalar_select %p160, %s17, 1
      %s162 = smul.addr %s161, 2
      %s163 = smul.addr %s162, 8
      %s164 = scalar_lea.vmem %s1, %s163
      %p165 = pneg %p74
      %p166 = pneg %p71
      %p167 = pneg %p102
      %p168 = pneg %p99
      %s169 = smul.u32 2, %s18
      %p170 = scmp.lt.s32.totalorder %s17, 1
      %s171 = scalar_select %p170, %s17, 1
      %p172 = scmp.lt.s32.totalorder %s169, 1
      %s173 = scalar_select %p172, %s169, 1
      %s174 = smul.addr %s171, 2
      %s175 = sadd.s32 %s173, %s174
      %s176 = smul.addr %s175, 8
      %s177 = scalar_lea.vmem %s2, %s176
      %s178 = smul.u32 2, %s18
      %p179 = scmp.lt.s32.totalorder %s17, 1
      %s180 = scalar_select %p179, %s17, 1
      %p181 = scmp.lt.s32.totalorder %s178, 1
      %s182 = scalar_select %p181, %s178, 1
      %s183 = smul.addr %s180, 2
      %s184 = sadd.s32 %s182, %s183
      %s185 = smul.addr %s184, 8
      %s186 = scalar_lea.vmem %s0, %s185
      %s187 = smul.u32 2, %s18
      %p188 = scmp.lt.s32.totalorder %s17, 1
      %s189 = scalar_select %p188, %s17, 1
      %s190 = smul.addr %s189, 2
      %s191 = smul.addr %s190, 8
      %s192 = scalar_lea.vmem %s1, %s191
      %s193 = smul.u32 2, %s18
      %p194 = scmp.lt.s32.totalorder %s17, 1
      %s195 = scalar_select %p194, %s17, 1
      %p196 = scmp.lt.s32.totalorder %s193, 1
      %s197 = scalar_select %p196, %s193, 1
      %s198 = smul.addr %s195, 2
      %s199 = sadd.s32 %s197, %s198
      %s200 = smul.addr %s199, 8
      %s201 = scalar_lea.vmem %s2, %s200
      %s202 = smul.u32 2, %s18
      %v203 = vld [vmem:[%s186] sm:$0xff]
      %v204 = vld [vmem:[%s186 + $0x8] sm:$0xff]
      %v205 = vld [vmem:[%s192] sm:$0xff]
      %v206 = vld [vmem:[%s192 + $0x8] sm:$0xff]
      %v207 = vlaneseq
      %v208 = vand.u32 %v207, 127
      %209 = vset.pattern.permute.xlu0 0
      %210 = vperm.xlu0 %209, %v203
      %v211 = vpop.permute.xlu0 %210
      %212 = vset.pattern.permute.xlu0 0
      %213 = vperm.xlu0 %212, %v204
      %v214 = vpop.permute.xlu0 %213
      %vm215 = vcmp.eq.s32.totalorder %v208, %v211
      %vm216 = vcmp.eq.s32.totalorder %v208, %v214
      %v217 = vsel %vm215, 1, 0
      %v218 = vsel %vm216, 1, 0
      %v219 = vcvt.s32.f32 %v217
      %v220 = vcvt.s32.f32 %v218
      %vm221 = vcmask 130048
      %v223 = vsel %vm221, %v219, 0
      %v226 = vsel %vm221, %v220, 0
      %228 = vmatprep.subr.mxu0 0.0
      %229 = vmatpush1.msra.mxu0 %v205
      %230 = vmatprep.subr.mxu0 0.0
      %231 = vmatpush1.msra.mxu0 %v206
      %232 = vmatprep.subr.mxu0 0.0
      %233 = vmatpush1.msra.mxu0 0.0
      %234 = vmatprep.subr.mxu0 0.0
      %235 = vmatpush1.msra.mxu0 0.0
      %236 = vmatprep.subr.mxu0 0.0
      %237 = vmatpush1.msra.mxu0 0.0
      %238 = vmatprep.subr.mxu0 0.0
      %239 = vmatpush1.msra.mxu0 0.0
      %240 = vmatprep.subr.mxu0 0.0
      %241 = vmatpush1.msra.mxu0 0.0
      %242 = vmatprep.subr.mxu0 0.0
      %243 = vmatpush1.msra.mxu0 0.0
      %244 = vmatprep.subr.mxu0 0.0
      %245 = vmatpush1.msra.mxu0 0.0
      %246 = vmatprep.subr.mxu0 0.0
      %247 = vmatpush1.msra.mxu0 0.0
      %248 = vmatprep.subr.mxu0 0.0
      %249 = vmatpush1.msra.mxu0 0.0
      %250 = vmatprep.subr.mxu0 0.0
      %251 = vmatpush1.msra.mxu0 0.0
      %252 = vmatprep.subr.mxu0 0.0
      %253 = vmatpush1.msra.mxu0 0.0
      %254 = vmatprep.subr.mxu0 0.0
      %255 = vmatpush1.msra.mxu0 0.0
      %256 = vmatprep.subr.mxu0 0.0
      %257 = vmatpush1.msra.mxu0 0.0
      %258 = vmatprep.subr.mxu0 0.0
      %259 = vmatpush1.msra.mxu0 0.0
      %260 = vmatprep.subr.mxu0 0.0
      %261 = vmatpush1.msra.mxu0 0.0
      %262 = vmatprep.subr.mxu0 0.0
      %263 = vmatpush1.msra.mxu0 0.0
      %264 = vmatprep.subr.mxu0 0.0
      %265 = vmatpush1.msra.mxu0 0.0
      %266 = vmatprep.subr.mxu0 0.0
      %267 = vmatpush1.msra.mxu0 0.0
      %268 = vmatprep.subr.mxu0 0.0
      %269 = vmatpush1.msra.mxu0 0.0
      %270 = vmatprep.subr.mxu0 0.0
      %271 = vmatpush1.msra.mxu0 0.0
      %272 = vmatprep.subr.mxu0 0.0
      %273 = vmatpush1.msra.mxu0 0.0
      %274 = vmatprep.subr.mxu0 0.0
      %275 = vmatpush1.msra.mxu0 0.0
      %276 = vmatprep.subr.mxu0 0.0
      %277 = vmatpush1.msra.mxu0 0.0
      %278 = vmatprep.subr.mxu0 0.0
      %279 = vmatpush1.msra.mxu0 0.0
      %280 = vmatprep.subr.mxu0 0.0
      %281 = vmatpush1.msra.mxu0 0.0
      %282 = vmatprep.subr.mxu0 0.0
      %283 = vmatpush1.msra.mxu0 0.0
      %284 = vmatprep.subr.mxu0 0.0
      %285 = vmatpush1.msra.mxu0 0.0
      %286 = vmatprep.subr.mxu0 0.0
      %287 = vmatpush1.msra.mxu0 0.0
      %288 = vmatprep.subr.mxu0 0.0
      %289 = vmatpush1.msra.mxu0 0.0
      %290 = vmatprep.subr.mxu0 0.0
      %291 = vmatpush1.msra.mxu0 0.0
      %292 = vmatprep.mubr.f32.mxu0 0.0
      %293 = vmatmul.mubr.f32.gmra.mrb[0].mxu0 %v223
      %v294 = vpop.f32.mrb[0].mxu0
      %v295 = vadd.f32 0.0, %v294
      %v296 = vpop.f32.mrb[0].mxu0
      %297 = vmatprep.mubr.f32.mxu0 0.0
      %298 = vmatmul.mubr.f32.gmra.mrb[0].mxu0 %v226
      %v299 = vpop.f32.mrb[0].mxu0
      %v300 = vadd.f32 0.0, %v299
      %v301 = vpop.f32.mrb[0].mxu0
      %302 = vdwg.mxu0
      %303 = vset.pattern.permute.xlu0 1
      %304 = vperm.xlu0 %303, %v203
      %v305 = vpop.permute.xlu0 %304
      %306 = vset.pattern.permute.xlu0 1
      %307 = vperm.xlu0 %306, %v204
      %v308 = vpop.permute.xlu0 %307
      %vm309 = vcmp.eq.s32.totalorder %v208, %v305
      %vm310 = vcmp.eq.s32.totalorder %v208, %v308
      %v311 = vsel %vm309, 1, 0
      %v312 = vsel %vm310, 1, 0
      %v313 = vcvt.s32.f32 %v311
      %v314 = vcvt.s32.f32 %v312
      %v316 = vsel %vm221, %v313, 0
      %v319 = vsel %vm221, %v314, 0
      %321 = vmatprep.subr.mxu0 0.0
      %322 = vmatpush1.msra.mxu0 %v205
      %323 = vmatprep.subr.mxu0 0.0
      %324 = vmatpush1.msra.mxu0 %v206
      %325 = vmatprep.subr.mxu0 0.0
      %326 = vmatpush1.msra.mxu0 0.0
      %327 = vmatprep.subr.mxu0 0.0
      %328 = vmatpush1.msra.mxu0 0.0
      %329 = vmatprep.subr.mxu0 0.0
      %330 = vmatpush1.msra.mxu0 0.0
      %331 = vmatprep.subr.mxu0 0.0
      %332 = vmatpush1.msra.mxu0 0.0
      %333 = vmatprep.subr.mxu0 0.0
      %334 = vmatpush1.msra.mxu0 0.0
      %335 = vmatprep.subr.mxu0 0.0
      %336 = vmatpush1.msra.mxu0 0.0
      %337 = vmatprep.subr.mxu0 0.0
      %338 = vmatpush1.msra.mxu0 0.0
      %339 = vmatprep.subr.mxu0 0.0
      %340 = vmatpush1.msra.mxu0 0.0
      %341 = vmatprep.subr.mxu0 0.0
      %342 = vmatpush1.msra.mxu0 0.0
      %343 = vmatprep.subr.mxu0 0.0
      %344 = vmatpush1.msra.mxu0 0.0
      %345 = vmatprep.subr.mxu0 0.0
      %346 = vmatpush1.msra.mxu0 0.0
      %347 = vmatprep.subr.mxu0 0.0
      %348 = vmatpush1.msra.mxu0 0.0
      %349 = vmatprep.subr.mxu0 0.0
      %350 = vmatpush1.msra.mxu0 0.0
      %351 = vmatprep.subr.mxu0 0.0
      %352 = vmatpush1.msra.mxu0 0.0
      %353 = vmatprep.subr.mxu0 0.0
      %354 = vmatpush1.msra.mxu0 0.0
      %355 = vmatprep.subr.mxu0 0.0
      %356 = vmatpush1.msra.mxu0 0.0
      %357 = vmatprep.subr.mxu0 0.0
      %358 = vmatpush1.msra.mxu0 0.0
      %359 = vmatprep.subr.mxu0 0.0
      %360 = vmatpush1.msra.mxu0 0.0
      %361 = vmatprep.subr.mxu0 0.0
      %362 = vmatpush1.msra.mxu0 0.0
      %363 = vmatprep.subr.mxu0 0.0
      %364 = vmatpush1.msra.mxu0 0.0
      %365 = vmatprep.subr.mxu0 0.0
      %366 = vmatpush1.msra.mxu0 0.0
      %367 = vmatprep.subr.mxu0 0.0
      %368 = vmatpush1.msra.mxu0 0.0
      %369 = vmatprep.subr.mxu0 0.0
      %370 = vmatpush1.msra.mxu0 0.0
      %371 = vmatprep.subr.mxu0 0.0
      %372 = vmatpush1.msra.mxu0 0.0
      %373 = vmatprep.subr.mxu0 0.0
      %374 = vmatpush1.msra.mxu0 0.0
      %375 = vmatprep.subr.mxu0 0.0
      %376 = vmatpush1.msra.mxu0 0.0
      %377 = vmatprep.subr.mxu0 0.0
      %378 = vmatpush1.msra.mxu0 0.0
      %379 = vmatprep.subr.mxu0 0.0
      %380 = vmatpush1.msra.mxu0 0.0
      %381 = vmatprep.subr.mxu0 0.0
      %382 = vmatpush1.msra.mxu0 0.0
      %383 = vmatprep.subr.mxu0 0.0
      %384 = vmatpush1.msra.mxu0 0.0
      %385 = vmatprep.mubr.f32.mxu0 0.0
      %386 = vmatmul.mubr.f32.gmra.mrb[0].mxu0 %v316
      %v387 = vpop.f32.mrb[0].mxu0
      %v388 = vadd.f32 0.0, %v387
      %v389 = vpop.f32.mrb[0].mxu0
      %390 = vmatprep.mubr.f32.mxu0 0.0
      %391 = vmatmul.mubr.f32.gmra.mrb[0].mxu0 %v319
      %v392 = vpop.f32.mrb[0].mxu0
      %v393 = vadd.f32 0.0, %v392
      %v394 = vpop.f32.mrb[0].mxu0
      %395 = vdwg.mxu0
      %v396 = vmax.f32 %v295, %v388
      %v397 = vmax.f32 %v300, %v393
      %398 = vset.pattern.permute.xlu0 2
      %399 = vperm.xlu0 %398, %v203
      %v400 = vpop.permute.xlu0 %399
      %401 = vset.pattern.permute.xlu0 2
      %402 = vperm.xlu0 %401, %v204
      %v403 = vpop.permute.xlu0 %402
      %vm404 = vcmp.eq.s32.totalorder %v208, %v400
      %vm405 = vcmp.eq.s32.totalorder %v208, %v403
      %v406 = vsel %vm404, 1, 0
      %v407 = vsel %vm405, 1, 0
      %v408 = vcvt.s32.f32 %v406
      %v409 = vcvt.s32.f32 %v407
      %v411 = vsel %vm221, %v408, 0
      %v414 = vsel %vm221, %v409, 0
      %416 = vmatprep.subr.mxu0 0.0
      %417 = vmatpush1.msra.mxu0 %v205
      %418 = vmatprep.subr.mxu0 0.0
      %419 = vmatpush1.msra.mxu0 %v206
      %420 = vmatprep.subr.mxu0 0.0
      %421 = vmatpush1.msra.mxu0 0.0
      %422 = vmatprep.subr.mxu0 0.0
      %423 = vmatpush1.msra.mxu0 0.0
      %424 = vmatprep.subr.mxu0 0.0
      %425 = vmatpush1.msra.mxu0 0.0
      %426 = vmatprep.subr.mxu0 0.0
      %427 = vmatpush1.msra.mxu0 0.0
      %428 = vmatprep.subr.mxu0 0.0
      %429 = vmatpush1.msra.mxu0 0.0
      %430 = vmatprep.subr.mxu0 0.0
      %431 = vmatpush1.msra.mxu0 0.0
      %432 = vmatprep.subr.mxu0 0.0
      %433 = vmatpush1.msra.mxu0 0.0
      %434 = vmatprep.subr.mxu0 0.0
      %435 = vmatpush1.msra.mxu0 0.0
      %436 = vmatprep.subr.mxu0 0.0
      %437 = vmatpush1.msra.mxu0 0.0
      %438 = vmatprep.subr.mxu0 0.0
      %439 = vmatpush1.msra.mxu0 0.0
      %440 = vmatprep.subr.mxu0 0.0
      %441 = vmatpush1.msra.mxu0 0.0
      %442 = vmatprep.subr.mxu0 0.0
      %443 = vmatpush1.msra.mxu0 0.0
      %444 = vmatprep.subr.mxu0 0.0
      %445 = vmatpush1.msra.mxu0 0.0
      %446 = vmatprep.subr.mxu0 0.0
      %447 = vmatpush1.msra.mxu0 0.0
      %448 = vmatprep.subr.mxu0 0.0
      %449 = vmatpush1.msra.mxu0 0.0
      %450 = vmatprep.subr.mxu0 0.0
      %451 = vmatpush1.msra.mxu0 0.0
      %452 = vmatprep.subr.mxu0 0.0
      %453 = vmatpush1.msra.mxu0 0.0
      %454 = vmatprep.subr.mxu0 0.0
      %455 = vmatpush1.msra.mxu0 0.0
      %456 = vmatprep.subr.mxu0 0.0
      %457 = vmatpush1.msra.mxu0 0.0
      %458 = vmatprep.subr.mxu0 0.0
      %459 = vmatpush1.msra.mxu0 0.0
      %460 = vmatprep.subr.mxu0 0.0
      %461 = vmatpush1.msra.mxu0 0.0
      %462 = vmatprep.subr.mxu0 0.0
      %463 = vmatpush1.msra.mxu0 0.0
      %464 = vmatprep.subr.mxu0 0.0
      %465 = vmatpush1.msra.mxu0 0.0
      %466 = vmatprep.subr.mxu0 0.0
      %467 = vmatpush1.msra.mxu0 0.0
      %468 = vmatprep.subr.mxu0 0.0
      %469 = vmatpush1.msra.mxu0 0.0
      %470 = vmatprep.subr.mxu0 0.0
      %471 = vmatpush1.msra.mxu0 0.0
      %472 = vmatprep.subr.mxu0 0.0
      %473 = vmatpush1.msra.mxu0 0.0
      %474 = vmatprep.subr.mxu0 0.0
      %475 = vmatpush1.msra.mxu0 0.0
      %476 = vmatprep.subr.mxu0 0.0
      %477 = vmatpush1.msra.mxu0 0.0
      %478 = vmatprep.subr.mxu0 0.0
      %479 = vmatpush1.msra.mxu0 0.0
      %480 = vmatprep.mubr.f32.mxu0 0.0
      %481 = vmatmul.mubr.f32.gmra.mrb[0].mxu0 %v411
      %v482 = vpop.f32.mrb[0].mxu0
      %v483 = vadd.f32 0.0, %v482
      %v484 = vpop.f32.mrb[0].mxu0
      %485 = vmatprep.mubr.f32.mxu0 0.0
      %486 = vmatmul.mubr.f32.gmra.mrb[0].mxu0 %v414
      %v487 = vpop.f32.mrb[0].mxu0
      %v488 = vadd.f32 0.0, %v487
      %v489 = vpop.f32.mrb[0].mxu0
      %490 = vdwg.mxu0
      %v491 = vmax.f32 %v396, %v483
      %v492 = vmax.f32 %v397, %v488
      %493 = vset.pattern.permute.xlu0 3
      %494 = vperm.xlu0 %493, %v203
      %v495 = vpop.permute.xlu0 %494
      %496 = vset.pattern.permute.xlu0 3
      %497 = vperm.xlu0 %496, %v204
      %v498 = vpop.permute.xlu0 %497
      %vm499 = vcmp.eq.s32.totalorder %v208, %v495
      %vm500 = vcmp.eq.s32.totalorder %v208, %v498
      %v501 = vsel %vm499, 1, 0
      %v502 = vsel %vm500, 1, 0
      %v503 = vcvt.s32.f32 %v501
      %v504 = vcvt.s32.f32 %v502
      %v506 = vsel %vm221, %v503, 0
      %v509 = vsel %vm221, %v504, 0
      %511 = vmatprep.subr.mxu0 0.0
      %512 = vmatpush1.msra.mxu0 %v205
      %513 = vmatprep.subr.mxu0 0.0
      %514 = vmatpush1.msra.mxu0 %v206
      %515 = vmatprep.subr.mxu0 0.0
      %516 = vmatpush1.msra.mxu0 0.0
      %517 = vmatprep.subr.mxu0 0.0
      %518 = vmatpush1.msra.mxu0 0.0
      %519 = vmatprep.subr.mxu0 0.0
      %520 = vmatpush1.msra.mxu0 0.0
      %521 = vmatprep.subr.mxu0 0.0
      %522 = vmatpush1.msra.mxu0 0.0
      %523 = vmatprep.subr.mxu0 0.0
      %524 = vmatpush1.msra.mxu0 0.0
      %525 = vmatprep.subr.mxu0 0.0
      %526 = vmatpush1.msra.mxu0 0.0
      %527 = vmatprep.subr.mxu0 0.0
      %528 = vmatpush1.msra.mxu0 0.0
      %529 = vmatprep.subr.mxu0 0.0
      %530 = vmatpush1.msra.mxu0 0.0
      %531 = vmatprep.subr.mxu0 0.0
      %532 = vmatpush1.msra.mxu0 0.0
      %533 = vmatprep.subr.mxu0 0.0
      %534 = vmatpush1.msra.mxu0 0.0
      %535 = vmatprep.subr.mxu0 0.0
      %536 = vmatpush1.msra.mxu0 0.0
      %537 = vmatprep.subr.mxu0 0.0
      %538 = vmatpush1.msra.mxu0 0.0
      %539 = vmatprep.subr.mxu0 0.0
      %540 = vmatpush1.msra.mxu0 0.0
      %541 = vmatprep.subr.mxu0 0.0
      %542 = vmatpush1.msra.mxu0 0.0
      %543 = vmatprep.subr.mxu0 0.0
      %544 = vmatpush1.msra.mxu0 0.0
      %545 = vmatprep.subr.mxu0 0.0
      %546 = vmatpush1.msra.mxu0 0.0
      %547 = vmatprep.subr.mxu0 0.0
      %548 = vmatpush1.msra.mxu0 0.0
      %549 = vmatprep.subr.mxu0 0.0
      %550 = vmatpush1.msra.mxu0 0.0
      %551 = vmatprep.subr.mxu0 0.0
      %552 = vmatpush1.msra.mxu0 0.0
      %553 = vmatprep.subr.mxu0 0.0
      %554 = vmatpush1.msra.mxu0 0.0
      %555 = vmatprep.subr.mxu0 0.0
      %556 = vmatpush1.msra.mxu0 0.0
      %557 = vmatprep.subr.mxu0 0.0
      %558 = vmatpush1.msra.mxu0 0.0
      %559 = vmatprep.subr.mxu0 0.0
      %560 = vmatpush1.msra.mxu0 0.0
      %561 = vmatprep.subr.mxu0 0.0
      %562 = vmatpush1.msra.mxu0 0.0
      %563 = vmatprep.subr.mxu0 0.0
      %564 = vmatpush1.msra.mxu0 0.0
      %565 = vmatprep.subr.mxu0 0.0
      %566 = vmatpush1.msra.mxu0 0.0
      %567 = vmatprep.subr.mxu0 0.0
      %568 = vmatpush1.msra.mxu0 0.0
      %569 = vmatprep.subr.mxu0 0.0
      %570 = vmatpush1.msra.mxu0 0.0
      %571 = vmatprep.subr.mxu0 0.0
      %572 = vmatpush1.msra.mxu0 0.0
      %573 = vmatprep.subr.mxu0 0.0
      %574 = vmatpush1.msra.mxu0 0.0
      %575 = vmatprep.mubr.f32.mxu0 0.0
      %576 = vmatmul.mubr.f32.gmra.mrb[0].mxu0 %v506
      %v577 = vpop.f32.mrb[0].mxu0
      %v578 = vadd.f32 0.0, %v577
      %v579 = vpop.f32.mrb[0].mxu0
      %580 = vmatprep.mubr.f32.mxu0 0.0
      %581 = vmatmul.mubr.f32.gmra.mrb[0].mxu0 %v509
      %v582 = vpop.f32.mrb[0].mxu0
      %v583 = vadd.f32 0.0, %v582
      %v584 = vpop.f32.mrb[0].mxu0
      %585 = vdwg.mxu0
      %v586 = vmax.f32 %v491, %v578
      %v587 = vmax.f32 %v492, %v583
      %588 = vset.pattern.permute.xlu0 4
      %589 = vperm.xlu0 %588, %v203
      %v590 = vpop.permute.xlu0 %589
      %591 = vset.pattern.permute.xlu0 4
      %592 = vperm.xlu0 %591, %v204
      %v593 = vpop.permute.xlu0 %592
      %vm594 = vcmp.eq.s32.totalorder %v208, %v590
      %vm595 = vcmp.eq.s32.totalorder %v208, %v593
      %v596 = vsel %vm594, 1, 0
      %v597 = vsel %vm595, 1, 0
      %v598 = vcvt.s32.f32 %v596
      %v599 = vcvt.s32.f32 %v597
      %v601 = vsel %vm221, %v598, 0
      %v604 = vsel %vm221, %v599, 0
      %606 = vmatprep.subr.mxu0 0.0
      %607 = vmatpush1.msra.mxu0 %v205
      %608 = vmatprep.subr.mxu0 0.0
      %609 = vmatpush1.msra.mxu0 %v206
      %610 = vmatprep.subr.mxu0 0.0
      %611 = vmatpush1.msra.mxu0 0.0
      %612 = vmatprep.subr.mxu0 0.0
      %613 = vmatpush1.msra.mxu0 0.0
      %614 = vmatprep.subr.mxu0 0.0
      %615 = vmatpush1.msra.mxu0 0.0
      %616 = vmatprep.subr.mxu0 0.0
      %617 = vmatpush1.msra.mxu0 0.0
      %618 = vmatprep.subr.mxu0 0.0
      %619 = vmatpush1.msra.mxu0 0.0
      %620 = vmatprep.subr.mxu0 0.0
      %621 = vmatpush1.msra.mxu0 0.0
      %622 = vmatprep.subr.mxu0 0.0
      %623 = vmatpush1.msra.mxu0 0.0
      %624 = vmatprep.subr.mxu0 0.0
      %625 = vmatpush1.msra.mxu0 0.0
      %626 = vmatprep.subr.mxu0 0.0
      %627 = vmatpush1.msra.mxu0 0.0
      %628 = vmatprep.subr.mxu0 0.0
      %629 = vmatpush1.msra.mxu0 0.0
      %630 = vmatprep.subr.mxu0 0.0
      %631 = vmatpush1.msra.mxu0 0.0
      %632 = vmatprep.subr.mxu0 0.0
      %633 = vmatpush1.msra.mxu0 0.0
      %634 = vmatprep.subr.mxu0 0.0
      %635 = vmatpush1.msra.mxu0 0.0
      %636 = vmatprep.subr.mxu0 0.0
      %637 = vmatpush1.msra.mxu0 0.0
      %638 = vmatprep.subr.mxu0 0.0
      %639 = vmatpush1.msra.mxu0 0.0
      %640 = vmatprep.subr.mxu0 0.0
      %641 = vmatpush1.msra.mxu0 0.0
      %642 = vmatprep.subr.mxu0 0.0
      %643 = vmatpush1.msra.mxu0 0.0
      %644 = vmatprep.subr.mxu0 0.0
      %645 = vmatpush1.msra.mxu0 0.0
      %646 = vmatprep.subr.mxu0 0.0
      %647 = vmatpush1.msra.mxu0 0.0
      %648 = vmatprep.subr.mxu0 0.0
      %649 = vmatpush1.msra.mxu0 0.0
      %650 = vmatprep.subr.mxu0 0.0
      %651 = vmatpush1.msra.mxu0 0.0
      %652 = vmatprep.subr.mxu0 0.0
      %653 = vmatpush1.msra.mxu0 0.0
      %654 = vmatprep.subr.mxu0 0.0
      %655 = vmatpush1.msra.mxu0 0.0
      %656 = vmatprep.subr.mxu0 0.0
      %657 = vmatpush1.msra.mxu0 0.0
      %658 = vmatprep.subr.mxu0 0.0
      %659 = vmatpush1.msra.mxu0 0.0
      %660 = vmatprep.subr.mxu0 0.0
      %661 = vmatpush1.msra.mxu0 0.0
      %662 = vmatprep.subr.mxu0 0.0
      %663 = vmatpush1.msra.mxu0 0.0
      %664 = vmatprep.subr.mxu0 0.0
      %665 = vmatpush1.msra.mxu0 0.0
      %666 = vmatprep.subr.mxu0 0.0
      %667 = vmatpush1.msra.mxu0 0.0
      %668 = vmatprep.subr.mxu0 0.0
      %669 = vmatpush1.msra.mxu0 0.0
      %670 = vmatprep.mubr.f32.mxu0 0.0
      %671 = vmatmul.mubr.f32.gmra.mrb[0].mxu0 %v601
      %v672 = vpop.f32.mrb[0].mxu0
      %v673 = vadd.f32 0.0, %v672
      %v674 = vpop.f32.mrb[0].mxu0
      %675 = vmatprep.mubr.f32.mxu0 0.0
      %676 = vmatmul.mubr.f32.gmra.mrb[0].mxu0 %v604
      %v677 = vpop.f32.mrb[0].mxu0
      %v678 = vadd.f32 0.0, %v677
      %v679 = vpop.f32.mrb[0].mxu0
      %680 = vdwg.mxu0
      %v681 = vmax.f32 %v586, %v673
      %v682 = vmax.f32 %v587, %v678
      %683 = vset.pattern.permute.xlu0 5
      %684 = vperm.xlu0 %683, %v203
      %v685 = vpop.permute.xlu0 %684
      %686 = vset.pattern.permute.xlu0 5
      %687 = vperm.xlu0 %686, %v204
      %v688 = vpop.permute.xlu0 %687
      %vm689 = vcmp.eq.s32.totalorder %v208, %v685
      %vm690 = vcmp.eq.s32.totalorder %v208, %v688
      %v691 = vsel %vm689, 1, 0
      %v692 = vsel %vm690, 1, 0
      %v693 = vcvt.s32.f32 %v691
      %v694 = vcvt.s32.f32 %v692
      %v696 = vsel %vm221, %v693, 0
      %v699 = vsel %vm221, %v694, 0
      %701 = vmatprep.subr.mxu0 0.0
      %702 = vmatpush1.msra.mxu0 %v205
      %703 = vmatprep.subr.mxu0 0.0
      %704 = vmatpush1.msra.mxu0 %v206
      %705 = vmatprep.subr.mxu0 0.0
      %706 = vmatpush1.msra.mxu0 0.0
      %707 = vmatprep.subr.mxu0 0.0
      %708 = vmatpush1.msra.mxu0 0.0
      %709 = vmatprep.subr.mxu0 0.0
      %710 = vmatpush1.msra.mxu0 0.0
      %711 = vmatprep.subr.mxu0 0.0
      %712 = vmatpush1.msra.mxu0 0.0
      %713 = vmatprep.subr.mxu0 0.0
      %714 = vmatpush1.msra.mxu0 0.0
      %715 = vmatprep.subr.mxu0 0.0
      %716 = vmatpush1.msra.mxu0 0.0
      %717 = vmatprep.subr.mxu0 0.0
      %718 = vmatpush1.msra.mxu0 0.0
      %719 = vmatprep.subr.mxu0 0.0
      %720 = vmatpush1.msra.mxu0 0.0
      %721 = vmatprep.subr.mxu0 0.0
      %722 = vmatpush1.msra.mxu0 0.0
      %723 = vmatprep.subr.mxu0 0.0
      %724 = vmatpush1.msra.mxu0 0.0
      %725 = vmatprep.subr.mxu0 0.0
      %726 = vmatpush1.msra.mxu0 0.0
      %727 = vmatprep.subr.mxu0 0.0
      %728 = vmatpush1.msra.mxu0 0.0
      %729 = vmatprep.subr.mxu0 0.0
      %730 = vmatpush1.msra.mxu0 0.0
      %731 = vmatprep.subr.mxu0 0.0
      %732 = vmatpush1.msra.mxu0 0.0
      %733 = vmatprep.subr.mxu0 0.0
      %734 = vmatpush1.msra.mxu0 0.0
      %735 = vmatprep.subr.mxu0 0.0
      %736 = vmatpush1.msra.mxu0 0.0
      %737 = vmatprep.subr.mxu0 0.0
      %738 = vmatpush1.msra.mxu0 0.0
      %739 = vmatprep.subr.mxu0 0.0
      %740 = vmatpush1.msra.mxu0 0.0
      %741 = vmatprep.subr.mxu0 0.0
      %742 = vmatpush1.msra.mxu0 0.0
      %743 = vmatprep.subr.mxu0 0.0
      %744 = vmatpush1.msra.mxu0 0.0
      %745 = vmatprep.subr.mxu0 0.0
      %746 = vmatpush1.msra.mxu0 0.0
      %747 = vmatprep.subr.mxu0 0.0
      %748 = vmatpush1.msra.mxu0 0.0
      %749 = vmatprep.subr.mxu0 0.0
      %750 = vmatpush1.msra.mxu0 0.0
      %751 = vmatprep.subr.mxu0 0.0
      %752 = vmatpush1.msra.mxu0 0.0
      %753 = vmatprep.subr.mxu0 0.0
      %754 = vmatpush1.msra.mxu0 0.0
      %755 = vmatprep.subr.mxu0 0.0
      %756 = vmatpush1.msra.mxu0 0.0
      %757 = vmatprep.subr.mxu0 0.0
      %758 = vmatpush1.msra.mxu0 0.0
      %759 = vmatprep.subr.mxu0 0.0
      %760 = vmatpush1.msra.mxu0 0.0
      %761 = vmatprep.subr.mxu0 0.0
      %762 = vmatpush1.msra.mxu0 0.0
      %763 = vmatprep.subr.mxu0 0.0
      %764 = vmatpush1.msra.mxu0 0.0
      %765 = vmatprep.mubr.f32.mxu0 0.0
      %766 = vmatmul.mubr.f32.gmra.mrb[0].mxu0 %v696
      %v767 = vpop.f32.mrb[0].mxu0
      %v768 = vadd.f32 0.0, %v767
      %v769 = vpop.f32.mrb[0].mxu0
      %770 = vmatprep.mubr.f32.mxu0 0.0
      %771 = vmatmul.mubr.f32.gmra.mrb[0].mxu0 %v699
      %v772 = vpop.f32.mrb[0].mxu0
      %v773 = vadd.f32 0.0, %v772
      %v774 = vpop.f32.mrb[0].mxu0
      %775 = vdwg.mxu0
      %v776 = vmax.f32 %v681, %v768
      %v777 = vmax.f32 %v682, %v773
      %778 = vset.pattern.permute.xlu0 6
      %779 = vperm.xlu0 %778, %v203
      %v780 = vpop.permute.xlu0 %779
      %781 = vset.pattern.permute.xlu0 6
      %782 = vperm.xlu0 %781, %v204
      %v783 = vpop.permute.xlu0 %782
      %vm784 = vcmp.eq.s32.totalorder %v208, %v780
      %vm785 = vcmp.eq.s32.totalorder %v208, %v783
      %v786 = vsel %vm784, 1, 0
      %v787 = vsel %vm785, 1, 0
      %v788 = vcvt.s32.f32 %v786
      %v789 = vcvt.s32.f32 %v787
      %v791 = vsel %vm221, %v788, 0
      %v794 = vsel %vm221, %v789, 0
      %796 = vmatprep.subr.mxu0 0.0
      %797 = vmatpush1.msra.mxu0 %v205
      %798 = vmatprep.subr.mxu0 0.0
      %799 = vmatpush1.msra.mxu0 %v206
      %800 = vmatprep.subr.mxu0 0.0
      %801 = vmatpush1.msra.mxu0 0.0
      %802 = vmatprep.subr.mxu0 0.0
      %803 = vmatpush1.msra.mxu0 0.0
      %804 = vmatprep.subr.mxu0 0.0
      %805 = vmatpush1.msra.mxu0 0.0
      %806 = vmatprep.subr.mxu0 0.0
      %807 = vmatpush1.msra.mxu0 0.0
      %808 = vmatprep.subr.mxu0 0.0
      %809 = vmatpush1.msra.mxu0 0.0
      %810 = vmatprep.subr.mxu0 0.0
      %811 = vmatpush1.msra.mxu0 0.0
      %812 = vmatprep.subr.mxu0 0.0
      %813 = vmatpush1.msra.mxu0 0.0
      %814 = vmatprep.subr.mxu0 0.0
      %815 = vmatpush1.msra.mxu0 0.0
      %816 = vmatprep.subr.mxu0 0.0
      %817 = vmatpush1.msra.mxu0 0.0
      %818 = vmatprep.subr.mxu0 0.0
      %819 = vmatpush1.msra.mxu0 0.0
      %820 = vmatprep.subr.mxu0 0.0
      %821 = vmatpush1.msra.mxu0 0.0
      %822 = vmatprep.subr.mxu0 0.0
      %823 = vmatpush1.msra.mxu0 0.0
      %824 = vmatprep.subr.mxu0 0.0
      %825 = vmatpush1.msra.mxu0 0.0
      %826 = vmatprep.subr.mxu0 0.0
      %827 = vmatpush1.msra.mxu0 0.0
      %828 = vmatprep.subr.mxu0 0.0
      %829 = vmatpush1.msra.mxu0 0.0
      %830 = vmatprep.subr.mxu0 0.0
      %831 = vmatpush1.msra.mxu0 0.0
      %832 = vmatprep.subr.mxu0 0.0
      %833 = vmatpush1.msra.mxu0 0.0
      %834 = vmatprep.subr.mxu0 0.0
      %835 = vmatpush1.msra.mxu0 0.0
      %836 = vmatprep.subr.mxu0 0.0
      %837 = vmatpush1.msra.mxu0 0.0
      %838 = vmatprep.subr.mxu0 0.0
      %839 = vmatpush1.msra.mxu0 0.0
      %840 = vmatprep.subr.mxu0 0.0
      %841 = vmatpush1.msra.mxu0 0.0
      %842 = vmatprep.subr.mxu0 0.0
      %843 = vmatpush1.msra.mxu0 0.0
      %844 = vmatprep.subr.mxu0 0.0
      %845 = vmatpush1.msra.mxu0 0.0
      %846 = vmatprep.subr.mxu0 0.0
      %847 = vmatpush1.msra.mxu0 0.0
      %848 = vmatprep.subr.mxu0 0.0
      %849 = vmatpush1.msra.mxu0 0.0
      %850 = vmatprep.subr.mxu0 0.0
      %851 = vmatpush1.msra.mxu0 0.0
      %852 = vmatprep.subr.mxu0 0.0
      %853 = vmatpush1.msra.mxu0 0.0
      %854 = vmatprep.subr.mxu0 0.0
      %855 = vmatpush1.msra.mxu0 0.0
      %856 = vmatprep.subr.mxu0 0.0
      %857 = vmatpush1.msra.mxu0 0.0
      %858 = vmatprep.subr.mxu0 0.0
      %859 = vmatpush1.msra.mxu0 0.0
      %860 = vmatprep.mubr.f32.mxu0 0.0
      %861 = vmatmul.mubr.f32.gmra.mrb[0].mxu0 %v791
      %v862 = vpop.f32.mrb[0].mxu0
      %v863 = vadd.f32 0.0, %v862
      %v864 = vpop.f32.mrb[0].mxu0
      %865 = vmatprep.mubr.f32.mxu0 0.0
      %866 = vmatmul.mubr.f32.gmra.mrb[0].mxu0 %v794
      %v867 = vpop.f32.mrb[0].mxu0
      %v868 = vadd.f32 0.0, %v867
      %v869 = vpop.f32.mrb[0].mxu0
      %870 = vdwg.mxu0
      %v871 = vmax.f32 %v776, %v863
      %v872 = vmax.f32 %v777, %v868
      %873 = vset.pattern.permute.xlu0 7
      %874 = vperm.xlu0 %873, %v203
      %v875 = vpop.permute.xlu0 %874
      %876 = vset.pattern.permute.xlu0 7
      %877 = vperm.xlu0 %876, %v204
      %v878 = vpop.permute.xlu0 %877
      %vm879 = vcmp.eq.s32.totalorder %v208, %v875
      %vm880 = vcmp.eq.s32.totalorder %v208, %v878
      %v881 = vsel %vm879, 1, 0
      %v882 = vsel %vm880, 1, 0
      %v883 = vcvt.s32.f32 %v881
      %v884 = vcvt.s32.f32 %v882
      %v886 = vsel %vm221, %v883, 0
      %v889 = vsel %vm221, %v884, 0
      %891 = vmatprep.subr.mxu0 0.0
      %892 = vmatpush1.msra.mxu0 %v205
      %893 = vmatprep.subr.mxu0 0.0
      %894 = vmatpush1.msra.mxu0 %v206
      %895 = vmatprep.subr.mxu0 0.0
      %896 = vmatpush1.msra.mxu0 0.0
      %897 = vmatprep.subr.mxu0 0.0
      %898 = vmatpush1.msra.mxu0 0.0
      %899 = vmatprep.subr.mxu0 0.0
      %900 = vmatpush1.msra.mxu0 0.0
      %901 = vmatprep.subr.mxu0 0.0
      %902 = vmatpush1.msra.mxu0 0.0
      %903 = vmatprep.subr.mxu0 0.0
      %904 = vmatpush1.msra.mxu0 0.0
      %905 = vmatprep.subr.mxu0 0.0
      %906 = vmatpush1.msra.mxu0 0.0
      %907 = vmatprep.subr.mxu0 0.0
      %908 = vmatpush1.msra.mxu0 0.0
      %909 = vmatprep.subr.mxu0 0.0
      %910 = vmatpush1.msra.mxu0 0.0
      %911 = vmatprep.subr.mxu0 0.0
      %912 = vmatpush1.msra.mxu0 0.0
      %913 = vmatprep.subr.mxu0 0.0
      %914 = vmatpush1.msra.mxu0 0.0
      %915 = vmatprep.subr.mxu0 0.0
      %916 = vmatpush1.msra.mxu0 0.0
      %917 = vmatprep.subr.mxu0 0.0
      %918 = vmatpush1.msra.mxu0 0.0
      %919 = vmatprep.subr.mxu0 0.0
      %920 = vmatpush1.msra.mxu0 0.0
      %921 = vmatprep.subr.mxu0 0.0
      %922 = vmatpush1.msra.mxu0 0.0
      %923 = vmatprep.subr.mxu0 0.0
      %924 = vmatpush1.msra.mxu0 0.0
      %925 = vmatprep.subr.mxu0 0.0
      %926 = vmatpush1.msra.mxu0 0.0
      %927 = vmatprep.subr.mxu0 0.0
      %928 = vmatpush1.msra.mxu0 0.0
      %929 = vmatprep.subr.mxu0 0.0
      %930 = vmatpush1.msra.mxu0 0.0
      %931 = vmatprep.subr.mxu0 0.0
      %932 = vmatpush1.msra.mxu0 0.0
      %933 = vmatprep.subr.mxu0 0.0
      %934 = vmatpush1.msra.mxu0 0.0
      %935 = vmatprep.subr.mxu0 0.0
      %936 = vmatpush1.msra.mxu0 0.0
      %937 = vmatprep.subr.mxu0 0.0
      %938 = vmatpush1.msra.mxu0 0.0
      %939 = vmatprep.subr.mxu0 0.0
      %940 = vmatpush1.msra.mxu0 0.0
      %941 = vmatprep.subr.mxu0 0.0
      %942 = vmatpush1.msra.mxu0 0.0
      %943 = vmatprep.subr.mxu0 0.0
      %944 = vmatpush1.msra.mxu0 0.0
      %945 = vmatprep.subr.mxu0 0.0
      %946 = vmatpush1.msra.mxu0 0.0
      %947 = vmatprep.subr.mxu0 0.0
      %948 = vmatpush1.msra.mxu0 0.0
      %949 = vmatprep.subr.mxu0 0.0
      %950 = vmatpush1.msra.mxu0 0.0
      %951 = vmatprep.subr.mxu0 0.0
      %952 = vmatpush1.msra.mxu0 0.0
      %953 = vmatprep.subr.mxu0 0.0
      %954 = vmatpush1.msra.mxu0 0.0
      %955 = vmatprep.mubr.f32.mxu0 0.0
      %956 = vmatmul.mubr.f32.gmra.mrb[0].mxu0 %v886
      %v957 = vpop.f32.mrb[0].mxu0
      %v958 = vadd.f32 0.0, %v957
      %v959 = vpop.f32.mrb[0].mxu0
      %960 = vmatprep.mubr.f32.mxu0 0.0
      %961 = vmatmul.mubr.f32.gmra.mrb[0].mxu0 %v889
      %v962 = vpop.f32.mrb[0].mxu0
      %v963 = vadd.f32 0.0, %v962
      %v964 = vpop.f32.mrb[0].mxu0
      %965 = vdwg.mxu0
      %v966 = vmax.f32 %v871, %v958
      %v967 = vmax.f32 %v872, %v963
      %968 = vset.pattern.permute.xlu0 8
      %969 = vperm.xlu0 %968, %v203
      %v970 = vpop.permute.xlu0 %969
      %971 = vset.pattern.permute.xlu0 8
      %972 = vperm.xlu0 %971, %v204
      %v973 = vpop.permute.xlu0 %972
      %vm974 = vcmp.eq.s32.totalorder %v208, %v970
      %vm975 = vcmp.eq.s32.totalorder %v208, %v973
      %v976 = vsel %vm974, 1, 0
      %v977 = vsel %vm975, 1, 0
      %v978 = vcvt.s32.f32 %v976
      %v979 = vcvt.s32.f32 %v977
      %v981 = vsel %vm221, %v978, 0
      %v984 = vsel %vm221, %v979, 0
      %986 = vmatprep.subr.mxu0 0.0
      %987 = vmatpush1.msra.mxu0 %v205
      %988 = vmatprep.subr.mxu0 0.0
      %989 = vmatpush1.msra.mxu0 %v206
      %990 = vmatprep.subr.mxu0 0.0
      %991 = vmatpush1.msra.mxu0 0.0
      %992 = vmatprep.subr.mxu0 0.0
      %993 = vmatpush1.msra.mxu0 0.0
      %994 = vmatprep.subr.mxu0 0.0
      %995 = vmatpush1.msra.mxu0 0.0
      %996 = vmatprep.subr.mxu0 0.0
      %997 = vmatpush1.msra.mxu0 0.0
      %998 = vmatprep.subr.mxu0 0.0
      %999 = vmatpush1.msra.mxu0 0.0
      %1000 = vmatprep.subr.mxu0 0.0
      %1001 = vmatpush1.msra.mxu0 0.0
      %1002 = vmatprep.subr.mxu0 0.0
      %1003 = vmatpush1.msra.mxu0 0.0
      %1004 = vmatprep.subr.mxu0 0.0
      %1005 = vmatpush1.msra.mxu0 0.0
      %1006 = vmatprep.subr.mxu0 0.0
      %1007 = vmatpush1.msra.mxu0 0.0
      %1008 = vmatprep.subr.mxu0 0.0
      %1009 = vmatpush1.msra.mxu0 0.0
      %1010 = vmatprep.subr.mxu0 0.0
      %1011 = vmatpush1.msra.mxu0 0.0
      %1012 = vmatprep.subr.mxu0 0.0
      %1013 = vmatpush1.msra.mxu0 0.0
      %1014 = vmatprep.subr.mxu0 0.0
      %1015 = vmatpush1.msra.mxu0 0.0
      %1016 = vmatprep.subr.mxu0 0.0
      %1017 = vmatpush1.msra.mxu0 0.0
      %1018 = vmatprep.subr.mxu0 0.0
      %1019 = vmatpush1.msra.mxu0 0.0
      %1020 = vmatprep.subr.mxu0 0.0
      %1021 = vmatpush1.msra.mxu0 0.0
      %1022 = vmatprep.subr.mxu0 0.0
      %1023 = vmatpush1.msra.mxu0 0.0
      %1024 = vmatprep.subr.mxu0 0.0
      %1025 = vmatpush1.msra.mxu0 0.0
      %1026 = vmatprep.subr.mxu0 0.0
      %1027 = vmatpush1.msra.mxu0 0.0
      %1028 = vmatprep.subr.mxu0 0.0
      %1029 = vmatpush1.msra.mxu0 0.0
      %1030 = vmatprep.subr.mxu0 0.0
      %1031 = vmatpush1.msra.mxu0 0.0
      %1032 = vmatprep.subr.mxu0 0.0
      %1033 = vmatpush1.msra.mxu0 0.0
      %1034 = vmatprep.subr.mxu0 0.0
      %1035 = vmatpush1.msra.mxu0 0.0
      %1036 = vmatprep.subr.mxu0 0.0
      %1037 = vmatpush1.msra.mxu0 0.0
      %1038 = vmatprep.subr.mxu0 0.0
      %1039 = vmatpush1.msra.mxu0 0.0
      %1040 = vmatprep.subr.mxu0 0.0
      %1041 = vmatpush1.msra.mxu0 0.0
      %1042 = vmatprep.subr.mxu0 0.0
      %1043 = vmatpush1.msra.mxu0 0.0
      %1044 = vmatprep.subr.mxu0 0.0
      %1045 = vmatpush1.msra.mxu0 0.0
      %1046 = vmatprep.subr.mxu0 0.0
      %1047 = vmatpush1.msra.mxu0 0.0
      %1048 = vmatprep.subr.mxu0 0.0
      %1049 = vmatpush1.msra.mxu0 0.0
      %1050 = vmatprep.mubr.f32.mxu0 0.0
      %1051 = vmatmul.mubr.f32.gmra.mrb[0].mxu0 %v981
      %v1052 = vpop.f32.mrb[0].mxu0
      %v1053 = vadd.f32 0.0, %v1052
      %v1054 = vpop.f32.mrb[0].mxu0
      %1055 = vmatprep.mubr.f32.mxu0 0.0
      %1056 = vmatmul.mubr.f32.gmra.mrb[0].mxu0 %v984
      %v1057 = vpop.f32.mrb[0].mxu0
      %v1058 = vadd.f32 0.0, %v1057
      %v1059 = vpop.f32.mrb[0].mxu0
      %1060 = vdwg.mxu0
      %v1061 = vmax.f32 %v966, %v1053
      %v1062 = vmax.f32 %v967, %v1058
      %vm1063 = vcmask 64512
      %1064 = vst.msk [vmem:[%s201] sm:$0xff] %vm1063, %v1061
      %1065 = vst.msk [vmem:[%s201 + $0x8] sm:$0xff] %vm1063, %v1062
      %s1066 = smul.u32 2, %s18
      %p1067 = scmp.lt.s32.totalorder %s17, 1
      %s1068 = scalar_select %p1067, %s17, 1
      %p1069 = scmp.lt.s32.totalorder %s1066, 1
      %s1070 = scalar_select %p1069, %s1066, 1
      %s1071 = smul.addr %s1068, 2
      %s1072 = sadd.s32 %s1070, %s1071
      %s1073 = smul.addr %s1072, 8
      %s1074 = scalar_lea.vmem %s2, %s1073
      // Predicated region
      $region29: #{vig_block.6} parent=27 // pred_check
        %p1075 = pneg %p99
      $region30: #{vig_block.6} parent=27 // pred_check_branch
        %1077 = sbr.rel (%p1075) target = $region32
      $region31: #{vig_block.6} parent=27 // pred_region
        %s1078 = smul.u32 2, %s18
      $region32: #{vig_block.6} parent=27 // pred_fallthru
        _
    $region28: #{vig_block.6} parent=5 // pred_fallthru
      _
    %p1079 = scmp.le.s32.totalorder 2, %s8
    // Predicated region
    $region33: #{vig_block.6} parent=5 // pred_check
      %p1080 = pneg %p1079
    $region34: #{vig_block.6} parent=5 // pred_check_branch
      %1082 = sbr.rel (%p1080) target = $region36
    $region35: #{vig_block.6} parent=5 // pred_region
      %s1083 = ssub.s32 %s8, 2
      // Predicated region
      $region37: #{vig_block.6} parent=35 // pred_check
        %p1084 = pneg %p105
      $region38: #{vig_block.6} parent=35 // pred_check_branch
        %1086 = sbr.rel (%p1084) target = $region40
      $region39: #{vig_block.6} parent=35 // pred_region
        %s1087 = smul.u32 2, %s20
        %p1088 = scmp.lt.s32.totalorder %s19, 1
        %s1089 = scalar_select %p1088, %s19, 1
        %p1090 = scmp.lt.s32.totalorder %s1087, 1
        %s1091 = scalar_select %p1090, %s1087, 1
        %s1092 = smul.addr %s1089, 2
        %s1093 = sadd.s32 %s1091, %s1092
        %s1094 = smul.addr %s1093, 8
        %s1095 = scalar_lea.vmem %s2, %s1094
      $region40: #{vig_block.6} parent=35 // pred_fallthru
        _
    $region36: #{vig_block.6} parent=5 // pred_fallthru
      _
  $region6: #{vig_block.6} parent=0 // loop_footer
    %s12 = sadd.s32 1, %s8
  $region7: #{vig_block.6} parent=0 // loop_footer_branch
    %7 = sbr.rel target = $region3
  $region8: #{vig_block.6} parent=0 // loop_exit
    _

// kernel: vig_block.7
$region0: #{vig_block.7}
  #allocation0 [shape = 'u32[]', space=smem, size = 0x4, offset = 0x4, fixed_abs, tag = 'smem constant byte address 0x4 - core index']
  #allocation1 [shape = 'u32[144,128]{1,0:T(1,128)}', space=vmem, size = 0x12000, scoped, tag = 'internal scratch']
  %s0 = inlined_call_operand.vmem [shape: f32[32,8], index: 0, kind: input, shape index: {}]
  %s1 = inlined_call_operand.vmem [shape: f32[32,8], index: 1, kind: input, shape index: {}]
  %s2 = inlined_call_operand.vmem [shape: f32[8,8], index: 2, kind: input, shape index: {}]
  %s3 = inlined_call_operand.vmem [shape: f32[8,8], index: 3, kind: input, shape index: {}]
  %s4 = inlined_call_operand.vmem [shape: f32[5,8], index: 4, kind: input, shape index: {}]
  %s5 = inlined_call_operand.vmem [shape: f32[1,8], index: 5, kind: input, shape index: {}]
  %s6 = inlined_call_operand.vmem [shape: f32[8,8], index: 6, kind: input, shape index: {}]
  %s7 = inlined_call_operand.vmem [shape: f32[8,8], index: 7, kind: input, shape index: {}]
  %s8 = inlined_call_operand.vmem [shape: f32[1,8], index: 8, kind: input, shape index: {}]
  %s9 = inlined_call_operand.vmem [shape: f32[8,8], index: 9, kind: input, shape index: {}]
  %s10 = inlined_call_operand.vmem [shape: f32[8,8], index: 10, kind: input, shape index: {}]
  %s11 = inlined_call_operand.vmem [shape: f32[5,8], index: 11, kind: input, shape index: {}]
  %s12 = inlined_call_operand.vmem [shape: f32[1,8], index: 12, kind: input, shape index: {}]
  %s13 = inlined_call_operand.vmem [shape: f32[8,32], index: 13, kind: input, shape index: {}]
  %s14 = inlined_call_operand.vmem [shape: f32[32,8], index: 14, kind: input, shape index: {}]
  %s15 = inlined_call_operand.vmem [shape: f32[5,32], index: 15, kind: input, shape index: {}]
  %s16 = inlined_call_operand.vmem [shape: f32[1,8], index: 16, kind: input, shape index: {}]
  %s17 = inlined_call_operand.vmem [shape: f32[8,32], index: 17, kind: input, shape index: {}]
  %s18 = inlined_call_operand.vmem [shape: f32[32,8], index: 18, kind: input, shape index: {}]
  %s19 = inlined_call_operand.vmem [shape: f32[5,32], index: 19, kind: input, shape index: {}]
  %s20 = inlined_call_operand.vmem [shape: f32[1,8], index: 20, kind: input, shape index: {}]
  %s21 = inlined_call_operand.vmem [shape: f32[32,8], index: 21, kind: output, shape index: {}]
  %s22 = sld [smem:[#allocation0]]
  $region94: #{vig_block.7} parent=0
    _
  %s24 = ssub.s32 1, %s22
  %s25 = scalar_select 0, %s24, %s22
  // Predicated region
  $region2: #{vig_block.7} parent=0 // pred_check
    _
  $region3: #{vig_block.7} parent=0 // pred_check_branch
    %27 = sbr.rel (0) target = $region5
  $region4: #{vig_block.7} parent=0 // pred_region
    _
  $region5: #{vig_block.7} parent=0 // pred_fallthru
    _
  // Predicated region
  $region6: #{vig_block.7} parent=0 // pred_check
    _
  $region7: #{vig_block.7} parent=0 // pred_check_branch
    %29 = sbr.rel (0) target = $region9
  $region8: #{vig_block.7} parent=0 // pred_region
    _
  $region9: #{vig_block.7} parent=0 // pred_fallthru
    _
  // Predicated region
  $region10: #{vig_block.7} parent=0 // pred_check
    _
  $region11: #{vig_block.7} parent=0 // pred_check_branch
    %31 = sbr.rel (0) target = $region13
  $region12: #{vig_block.7} parent=0 // pred_region
    _
  $region13: #{vig_block.7} parent=0 // pred_fallthru
    _
  // Predicated region
  $region14: #{vig_block.7} parent=0 // pred_check
    _
  $region15: #{vig_block.7} parent=0 // pred_check_branch
    %33 = sbr.rel (0) target = $region17
  $region16: #{vig_block.7} parent=0 // pred_region
    _
  $region17: #{vig_block.7} parent=0 // pred_fallthru
    _
  // Predicated region
  $region18: #{vig_block.7} parent=0 // pred_check
    _
  $region19: #{vig_block.7} parent=0 // pred_check_branch
    %35 = sbr.rel (0) target = $region21
  $region20: #{vig_block.7} parent=0 // pred_region
    _
  $region21: #{vig_block.7} parent=0 // pred_fallthru
    _
  // Predicated region
  $region22: #{vig_block.7} parent=0 // pred_check
    _
  $region23: #{vig_block.7} parent=0 // pred_check_branch
    %37 = sbr.rel (0) target = $region25
  $region24: #{vig_block.7} parent=0 // pred_region
    _
  $region25: #{vig_block.7} parent=0 // pred_fallthru
    _
  // Predicated region
  $region26: #{vig_block.7} parent=0 // pred_check
    _
  $region27: #{vig_block.7} parent=0 // pred_check_branch
    %39 = sbr.rel (0) target = $region29
  $region28: #{vig_block.7} parent=0 // pred_region
    _
  $region29: #{vig_block.7} parent=0 // pred_fallthru
    _
  // Predicated region
  $region30: #{vig_block.7} parent=0 // pred_check
    _
  $region31: #{vig_block.7} parent=0 // pred_check_branch
    %41 = sbr.rel (0) target = $region33
  $region32: #{vig_block.7} parent=0 // pred_region
    _
  $region33: #{vig_block.7} parent=0 // pred_fallthru
    _
  // Predicated region
  $region34: #{vig_block.7} parent=0 // pred_check
    _
  $region35: #{vig_block.7} parent=0 // pred_check_branch
    %43 = sbr.rel (0) target = $region37
  $region36: #{vig_block.7} parent=0 // pred_region
    _
  $region37: #{vig_block.7} parent=0 // pred_fallthru
    _
  // Predicated region
  $region38: #{vig_block.7} parent=0 // pred_check
    _
  $region39: #{vig_block.7} parent=0 // pred_check_branch
    %45 = sbr.rel (0) target = $region41
  $region40: #{vig_block.7} parent=0 // pred_region
    _
  $region41: #{vig_block.7} parent=0 // pred_fallthru
    _
  // Predicated region
  $region42: #{vig_block.7} parent=0 // pred_check
    _
  $region43: #{vig_block.7} parent=0 // pred_check_branch
    %47 = sbr.rel (0) target = $region45
  $region44: #{vig_block.7} parent=0 // pred_region
    _
  $region45: #{vig_block.7} parent=0 // pred_fallthru
    _
  // Predicated region
  $region46: #{vig_block.7} parent=0 // pred_check
    _
  $region47: #{vig_block.7} parent=0 // pred_check_branch
    %49 = sbr.rel (0) target = $region49
  $region48: #{vig_block.7} parent=0 // pred_region
    _
  $region49: #{vig_block.7} parent=0 // pred_fallthru
    _
  // Predicated region
  $region50: #{vig_block.7} parent=0 // pred_check
    _
  $region51: #{vig_block.7} parent=0 // pred_check_branch
    %51 = sbr.rel (0) target = $region53
  $region52: #{vig_block.7} parent=0 // pred_region
    _
  $region53: #{vig_block.7} parent=0 // pred_fallthru
    _
  // Predicated region
  $region54: #{vig_block.7} parent=0 // pred_check
    _
  $region55: #{vig_block.7} parent=0 // pred_check_branch
    %53 = sbr.rel (0) target = $region57
  $region56: #{vig_block.7} parent=0 // pred_region
    _
  $region57: #{vig_block.7} parent=0 // pred_fallthru
    _
  // Predicated region
  $region58: #{vig_block.7} parent=0 // pred_check
    _
  $region59: #{vig_block.7} parent=0 // pred_check_branch
    %55 = sbr.rel (0) target = $region61
  $region60: #{vig_block.7} parent=0 // pred_region
    _
  $region61: #{vig_block.7} parent=0 // pred_fallthru
    _
  // Predicated region
  $region62: #{vig_block.7} parent=0 // pred_check
    _
  $region63: #{vig_block.7} parent=0 // pred_check_branch
    %57 = sbr.rel (0) target = $region65
  $region64: #{vig_block.7} parent=0 // pred_region
    _
  $region65: #{vig_block.7} parent=0 // pred_fallthru
    _
  // Predicated region
  $region66: #{vig_block.7} parent=0 // pred_check
    _
  $region67: #{vig_block.7} parent=0 // pred_check_branch
    %59 = sbr.rel (0) target = $region69
  $region68: #{vig_block.7} parent=0 // pred_region
    _
  $region69: #{vig_block.7} parent=0 // pred_fallthru
    _
  // Predicated region
  $region70: #{vig_block.7} parent=0 // pred_check
    _
  $region71: #{vig_block.7} parent=0 // pred_check_branch
    %61 = sbr.rel (0) target = $region73
  $region72: #{vig_block.7} parent=0 // pred_region
    _
  $region73: #{vig_block.7} parent=0 // pred_fallthru
    _
  // Predicated region
  $region74: #{vig_block.7} parent=0 // pred_check
    _
  $region75: #{vig_block.7} parent=0 // pred_check_branch
    %63 = sbr.rel (0) target = $region77
  $region76: #{vig_block.7} parent=0 // pred_region
    _
  $region77: #{vig_block.7} parent=0 // pred_fallthru
    _
  // Predicated region
  $region78: #{vig_block.7} parent=0 // pred_check
    _
  $region79: #{vig_block.7} parent=0 // pred_check_branch
    %65 = sbr.rel (0) target = $region81
  $region80: #{vig_block.7} parent=0 // pred_region
    _
  $region81: #{vig_block.7} parent=0 // pred_fallthru
    _
  // Predicated region
  $region82: #{vig_block.7} parent=0 // pred_check
    _
  $region83: #{vig_block.7} parent=0 // pred_check_branch
    %67 = sbr.rel (0) target = $region85
  $region84: #{vig_block.7} parent=0 // pred_region
    _
  $region85: #{vig_block.7} parent=0 // pred_fallthru
    _
  %v68 = vld [vmem:[%s1] sm:$0xff]
  %v69 = vld [vmem:[%s1 + $0x8] sm:$0xff]
  %v70 = vld [vmem:[%s1 + $0x10] sm:$0xff]
  %v71 = vld [vmem:[%s1 + $0x18] sm:$0xff]
  %v72 = vld [vmem:[%s2] sm:$0xff]
  %v73 = vld [vmem:[%s3] sm:$0xff]
  %v74 = vld [vmem:[%s4] sm:$0x1f]
  %v75 = vld [vmem:[%s5] sm:$0x1]
  %v76 = vlaneseq
  %v77 = vshrl.u32 %v76, 7
  %v78 = vsub.s32 0, %v77
  %v79 = vrot.slane %v74, %v78
  %vm80 = vcmask 64512
  %v82 = vsel %vm80, %v68, 0
  %v85 = vsel %vm80, %v69, 0
  %v88 = vsel %vm80, %v70, 0
  %v91 = vsel %vm80, %v71, 0
  %93 = vmatprep.subr.mxu0 0.0
  %94 = vmatpush1.msra.mxu0 %v72
  %95 = vmatprep.subr.mxu0 0.0
  %96 = vmatpush1.msra.mxu0 0.0
  %97 = vmatprep.subr.mxu0 0.0
  %98 = vmatpush1.msra.mxu0 0.0
  %99 = vmatprep.subr.mxu0 0.0
  %100 = vmatpush1.msra.mxu0 0.0
  %101 = vmatprep.subr.mxu0 0.0
  %102 = vmatpush1.msra.mxu0 0.0
  %103 = vmatprep.subr.mxu0 0.0
  %104 = vmatpush1.msra.mxu0 0.0
  %105 = vmatprep.subr.mxu0 0.0
  %106 = vmatpush1.msra.mxu0 0.0
  %107 = vmatprep.subr.mxu0 0.0
  %108 = vmatpush1.msra.mxu0 0.0
  %109 = vmatprep.subr.mxu0 0.0
  %110 = vmatpush1.msra.mxu0 0.0
  %111 = vmatprep.subr.mxu0 0.0
  %112 = vmatpush1.msra.mxu0 0.0
  %113 = vmatprep.subr.mxu0 0.0
  %114 = vmatpush1.msra.mxu0 0.0
  %115 = vmatprep.subr.mxu0 0.0
  %116 = vmatpush1.msra.mxu0 0.0
  %117 = vmatprep.subr.mxu0 0.0
  %118 = vmatpush1.msra.mxu0 0.0
  %119 = vmatprep.subr.mxu0 0.0
  %120 = vmatpush1.msra.mxu0 0.0
  %121 = vmatprep.subr.mxu0 0.0
  %122 = vmatpush1.msra.mxu0 0.0
  %123 = vmatprep.subr.mxu0 0.0
  %124 = vmatpush1.msra.mxu0 0.0
  %125 = vmatprep.subr.mxu0 0.0
  %126 = vmatpush1.msra.mxu0 0.0
  %127 = vmatprep.subr.mxu0 0.0
  %128 = vmatpush1.msra.mxu0 0.0
  %129 = vmatprep.subr.mxu0 0.0
  %130 = vmatpush1.msra.mxu0 0.0
  %131 = vmatprep.subr.mxu0 0.0
  %132 = vmatpush1.msra.mxu0 0.0
  %133 = vmatprep.subr.mxu0 0.0
  %134 = vmatpush1.msra.mxu0 0.0
  %135 = vmatprep.subr.mxu0 0.0
  %136 = vmatpush1.msra.mxu0 0.0
  %137 = vmatprep.subr.mxu0 0.0
  %138 = vmatpush1.msra.mxu0 0.0
  %139 = vmatprep.subr.mxu0 0.0
  %140 = vmatpush1.msra.mxu0 0.0
  %141 = vmatprep.subr.mxu0 0.0
  %142 = vmatpush1.msra.mxu0 0.0
  %143 = vmatprep.subr.mxu0 0.0
  %144 = vmatpush1.msra.mxu0 0.0
  %145 = vmatprep.subr.mxu0 0.0
  %146 = vmatpush1.msra.mxu0 0.0
  %147 = vmatprep.subr.mxu0 0.0
  %148 = vmatpush1.msra.mxu0 0.0
  %149 = vmatprep.subr.mxu0 0.0
  %150 = vmatpush1.msra.mxu0 0.0
  %151 = vmatprep.subr.mxu0 0.0
  %152 = vmatpush1.msra.mxu0 0.0
  %153 = vmatprep.subr.mxu0 0.0
  %154 = vmatpush1.msra.mxu0 0.0
  %155 = vmatprep.subr.mxu0 0.0
  %156 = vmatpush1.msra.mxu0 0.0
  %157 = vmatprep.mubr.f32.mxu0 0.0
  %158 = vmatmul.mubr.f32.gmra.mrb[0].mxu0 %v82
  %v159 = vpop.f32.mrb[0].mxu0
  %v160 = vadd.f32 %v79, %v159
  %v161 = vpop.f32.mrb[0].mxu0
  %162 = vmatprep.mubr.f32.mxu0 0.0
  %163 = vmatmul.mubr.f32.gmra.mrb[0].mxu0 %v85
  %v164 = vpop.f32.mrb[0].mxu0
  %v165 = vadd.f32 %v79, %v164
  %v166 = vpop.f32.mrb[0].mxu0
  %167 = vmatprep.mubr.f32.mxu0 0.0
  %168 = vmatmul.mubr.f32.gmra.mrb[0].mxu0 %v88
  %v169 = vpop.f32.mrb[0].mxu0
  %v170 = vadd.f32 %v79, %v169
  %v171 = vpop.f32.mrb[0].mxu0
  %172 = vmatprep.mubr.f32.mxu0 0.0
  %173 = vmatmul.mubr.f32.gmra.mrb[0].mxu0 %v91
  %v174 = vpop.f32.mrb[0].mxu0
  %v175 = vadd.f32 %v79, %v174
  %v176 = vpop.f32.mrb[0].mxu0
  %177 = vdwg.mxu0
  %v178 = vlaneseq
  %v179 = vshrl.u32 %v178, 7
  %v180 = vsub.s32 3, %v179
  %v181 = vrot.slane %v74, %v180
  %v182 = vsub.f32 %v160, %v181
  %v183 = vsub.f32 %v165, %v181
  %v184 = vsub.f32 %v170, %v181
  %v185 = vsub.f32 %v175, %v181
  %v186 = vadd.f32 %v74, 1e-05
  %v187 = vrsqrt.pop %v186
  %v189 = vrot.slane %v187, 3
  %v191 = vmul.f32 %v74, %v189
  %v192 = vlaneseq
  %v193 = vshrl.u32 %v192, 7
  %v194 = vsub.s32 1, %v193
  %v195 = vrot.slane %v191, %v194
  %v196 = vmul.f32 %v182, %v195
  %v197 = vmul.f32 %v183, %v195
  %v198 = vmul.f32 %v184, %v195
  %v199 = vmul.f32 %v185, %v195
  %v200 = vlaneseq
  %v201 = vshrl.u32 %v200, 7
  %v202 = vsub.s32 2, %v201
  %v203 = vrot.slane %v74, %v202
  %v204 = vadd.f32 %v196, %v203
  %v205 = vadd.f32 %v197, %v203
  %v206 = vadd.f32 %v198, %v203
  %v207 = vadd.f32 %v199, %v203
  %v208 = vmul.f32 %v204, 0.5
  %v209 = vmul.f32 %v205, 0.5
  %v210 = vmul.f32 %v206, 0.5
  %v211 = vmul.f32 %v207, 0.5
  %v212 = vmul.f32 %v204, 0.70710677
  %v213 = vmul.f32 %v205, 0.70710677
  %v214 = vmul.f32 %v206, 0.70710677
  %v215 = vmul.f32 %v207, 0.70710677
  %v216 = vmax.f32 %v212, -3.832507
  %v217 = vmax.f32 %v213, -3.832507
  %v218 = vmax.f32 %v214, -3.832507
  %v219 = vmax.f32 %v215, -3.832507
  %v220 = vmin.f32 %v216, 3.832507
  %v221 = vmin.f32 %v217, 3.832507
  %v222 = vmin.f32 %v218, 3.832507
  %v223 = vmin.f32 %v219, 3.832507
  %v224 = vmul.f32 %v220, %v220
  %v225 = vmul.f32 %v221, %v221
  %v226 = vmul.f32 %v222, %v222
  %v227 = vmul.f32 %v223, %v223
  %v228 = vmul.f32 %v224, -2.7261424e-10
  %v229 = vmul.f32 %v225, -2.7261424e-10
  %v230 = vmul.f32 %v226, -2.7261424e-10
  %v231 = vmul.f32 %v227, -2.7261424e-10
  %v232 = vadd.f32 %v228, 2.7706815e-08
  %v233 = vadd.f32 %v229, 2.7706815e-08
  %v234 = vadd.f32 %v230, 2.7706815e-08
  %v235 = vadd.f32 %v231, 2.7706815e-08
  %v236 = vmul.f32 %v232, %v224
  %v237 = vmul.f32 %v233, %v225
  %v238 = vmul.f32 %v234, %v226
  %v239 = vmul.f32 %v235, %v227
  %v240 = vadd.f32 %v236, -2.101024e-06
  %v241 = vadd.f32 %v237, -2.101024e-06
  %v242 = vadd.f32 %v238, -2.101024e-06
  %v243 = vadd.f32 %v239, -2.101024e-06
  %v244 = vmul.f32 %v240, %v224
  %v245 = vmul.f32 %v241, %v225
  %v246 = vmul.f32 %v242, %v226
  %v247 = vmul.f32 %v243, %v227
  %v248 = vadd.f32 %v244, -5.6925062e-05
  %v249 = vadd.f32 %v245, -5.6925062e-05
  %v250 = vadd.f32 %v246, -5.6925062e-05
  %v251 = vadd.f32 %v247, -5.6925062e-05
  %v252 = vmul.f32 %v248, %v224
  %v253 = vmul.f32 %v249, %v225
  %v254 = vmul.f32 %v250, %v226
  %v255 = vmul.f32 %v251, %v227
  %v256 = vadd.f32 %v252, -0.00073499064
  %v257 = vadd.f32 %v253, -0.00073499064
  %v258 = vadd.f32 %v254, -0.00073499064
  %v259 = vadd.f32 %v255, -0.00073499064
  %v260 = vmul.f32 %v256, %v224
  %v261 = vmul.f32 %v257, %v225
  %v262 = vmul.f32 %v258, %v226
  %v263 = vmul.f32 %v259, %v227
  %v264 = vadd.f32 %v260, -0.0029546
  %v265 = vadd.f32 %v261, -0.0029546
  %v266 = vadd.f32 %v262, -0.0029546
  %v267 = vadd.f32 %v263, -0.0029546
  %v268 = vmul.f32 %v264, %v224
  %v269 = vmul.f32 %v265, %v225
  %v270 = vmul.f32 %v266, %v226
  %v271 = vmul.f32 %v267, %v227
  %v272 = vadd.f32 %v268, -0.016096033
  %v273 = vadd.f32 %v269, -0.016096033
  %v274 = vadd.f32 %v270, -0.016096033
  %v275 = vadd.f32 %v271, -0.016096033
  %v276 = vmul.f32 %v272, %v220
  %v277 = vmul.f32 %v273, %v221
  %v278 = vmul.f32 %v274, %v222
  %v279 = vmul.f32 %v275, %v223
  %v280 = vmul.f32 %v224, -1.45660715e-05
  %v281 = vmul.f32 %v225, -1.45660715e-05
  %v282 = vmul.f32 %v226, -1.45660715e-05
  %v283 = vmul.f32 %v227, -1.45660715e-05
  %v284 = vadd.f32 %v280, -0.00021337405
  %v285 = vadd.f32 %v281, -0.00021337405
  %v286 = vadd.f32 %v282, -0.00021337405
  %v287 = vadd.f32 %v283, -0.00021337405
  %v288 = vmul.f32 %v284, %v224
  %v289 = vmul.f32 %v285, %v225
  %v290 = vmul.f32 %v286, %v226
  %v291 = vmul.f32 %v287, %v227
  %v292 = vadd.f32 %v288, -0.001682827
  %v293 = vadd.f32 %v289, -0.001682827
  %v294 = vadd.f32 %v290, -0.001682827
  %v295 = vadd.f32 %v291, -0.001682827
  %v296 = vmul.f32 %v292, %v224
  %v297 = vmul.f32 %v293, %v225
  %v298 = vmul.f32 %v294, %v226
  %v299 = vmul.f32 %v295, %v227
  %v300 = vadd.f32 %v296, -0.0073733293
  %v301 = vadd.f32 %v297, -0.0073733293
  %v302 = vadd.f32 %v298, -0.0073733293
  %v303 = vadd.f32 %v299, -0.0073733293
  %v304 = vmul.f32 %v300, %v224
  %v305 = vmul.f32 %v301, %v225
  %v306 = vmul.f32 %v302, %v226
  %v307 = vmul.f32 %v303, %v227
  %v308 = vadd.f32 %v304, -0.014264739
  %v309 = vadd.f32 %v305, -0.014264739
  %v310 = vadd.f32 %v306, -0.014264739
  %v311 = vadd.f32 %v307, -0.014264739
  %v312 = vrcp.pop %v308
  %v313 = vmul.f32 %v276, %v312
  %v314 = vrcp.pop %v309
  %v315 = vmul.f32 %v277, %v314
  %v316 = vrcp.pop %v310
  %v317 = vmul.f32 %v278, %v316
  %v318 = vrcp.pop %v311
  %v319 = vmul.f32 %v279, %v318
  %v320 = vadd.f32 %v313, 1.0
  %v321 = vadd.f32 %v315, 1.0
  %v322 = vadd.f32 %v317, 1.0
  %v323 = vadd.f32 %v319, 1.0
  %v324 = vmul.f32 %v208, %v320
  %v325 = vmul.f32 %v209, %v321
  %v326 = vmul.f32 %v210, %v322
  %v327 = vmul.f32 %v211, %v323
  %v329 = vlaneseq
  %v330 = vshrl.u32 %v329, 7
  %v331 = vsub.s32 0, %v330
  %v332 = vrot.slane %v75, %v331
  %v335 = vsel %vm80, %v324, 0
  %v338 = vsel %vm80, %v325, 0
  %v341 = vsel %vm80, %v326, 0
  %v344 = vsel %vm80, %v327, 0
  %346 = vmatprep.subr.mxu0 0.0
  %347 = vmatpush1.msra.mxu0 %v73
  %348 = vmatprep.subr.mxu0 0.0
  %349 = vmatpush1.msra.mxu0 0.0
  %350 = vmatprep.subr.mxu0 0.0
  %351 = vmatpush1.msra.mxu0 0.0
  %352 = vmatprep.subr.mxu0 0.0
  %353 = vmatpush1.msra.mxu0 0.0
  %354 = vmatprep.subr.mxu0 0.0
  %355 = vmatpush1.msra.mxu0 0.0
  %356 = vmatprep.subr.mxu0 0.0
  %357 = vmatpush1.msra.mxu0 0.0
  %358 = vmatprep.subr.mxu0 0.0
  %359 = vmatpush1.msra.mxu0 0.0
  %360 = vmatprep.subr.mxu0 0.0
  %361 = vmatpush1.msra.mxu0 0.0
  %362 = vmatprep.subr.mxu0 0.0
  %363 = vmatpush1.msra.mxu0 0.0
  %364 = vmatprep.subr.mxu0 0.0
  %365 = vmatpush1.msra.mxu0 0.0
  %366 = vmatprep.subr.mxu0 0.0
  %367 = vmatpush1.msra.mxu0 0.0
  %368 = vmatprep.subr.mxu0 0.0
  %369 = vmatpush1.msra.mxu0 0.0
  %370 = vmatprep.subr.mxu0 0.0
  %371 = vmatpush1.msra.mxu0 0.0
  %372 = vmatprep.subr.mxu0 0.0
  %373 = vmatpush1.msra.mxu0 0.0
  %374 = vmatprep.subr.mxu0 0.0
  %375 = vmatpush1.msra.mxu0 0.0
  %376 = vmatprep.subr.mxu0 0.0
  %377 = vmatpush1.msra.mxu0 0.0
  %378 = vmatprep.subr.mxu0 0.0
  %379 = vmatpush1.msra.mxu0 0.0
  %380 = vmatprep.subr.mxu0 0.0
  %381 = vmatpush1.msra.mxu0 0.0
  %382 = vmatprep.subr.mxu0 0.0
  %383 = vmatpush1.msra.mxu0 0.0
  %384 = vmatprep.subr.mxu0 0.0
  %385 = vmatpush1.msra.mxu0 0.0
  %386 = vmatprep.subr.mxu0 0.0
  %387 = vmatpush1.msra.mxu0 0.0
  %388 = vmatprep.subr.mxu0 0.0
  %389 = vmatpush1.msra.mxu0 0.0
  %390 = vmatprep.subr.mxu0 0.0
  %391 = vmatpush1.msra.mxu0 0.0
  %392 = vmatprep.subr.mxu0 0.0
  %393 = vmatpush1.msra.mxu0 0.0
  %394 = vmatprep.subr.mxu0 0.0
  %395 = vmatpush1.msra.mxu0 0.0
  %396 = vmatprep.subr.mxu0 0.0
  %397 = vmatpush1.msra.mxu0 0.0
  %398 = vmatprep.subr.mxu0 0.0
  %399 = vmatpush1.msra.mxu0 0.0
  %400 = vmatprep.subr.mxu0 0.0
  %401 = vmatpush1.msra.mxu0 0.0
  %402 = vmatprep.subr.mxu0 0.0
  %403 = vmatpush1.msra.mxu0 0.0
  %404 = vmatprep.subr.mxu0 0.0
  %405 = vmatpush1.msra.mxu0 0.0
  %406 = vmatprep.subr.mxu0 0.0
  %407 = vmatpush1.msra.mxu0 0.0
  %408 = vmatprep.subr.mxu0 0.0
  %409 = vmatpush1.msra.mxu0 0.0
  %410 = vmatprep.mubr.f32.mxu0 0.0
  %411 = vmatmul.mubr.f32.gmra.mrb[0].mxu0 %v335
  %v412 = vpop.f32.mrb[0].mxu0
  %v413 = vadd.f32 %v332, %v412
  %v414 = vpop.f32.mrb[0].mxu0
  %415 = vmatprep.mubr.f32.mxu0 0.0
  %416 = vmatmul.mubr.f32.gmra.mrb[0].mxu0 %v338
  %v417 = vpop.f32.mrb[0].mxu0
  %v418 = vadd.f32 %v332, %v417
  %v419 = vpop.f32.mrb[0].mxu0
  %420 = vmatprep.mubr.f32.mxu0 0.0
  %421 = vmatmul.mubr.f32.gmra.mrb[0].mxu0 %v341
  %v422 = vpop.f32.mrb[0].mxu0
  %v423 = vadd.f32 %v332, %v422
  %v424 = vpop.f32.mrb[0].mxu0
  %425 = vmatprep.mubr.f32.mxu0 0.0
  %426 = vmatmul.mubr.f32.gmra.mrb[0].mxu0 %v344
  %v427 = vpop.f32.mrb[0].mxu0
  %v428 = vadd.f32 %v332, %v427
  %v429 = vpop.f32.mrb[0].mxu0
  %430 = vdwg.mxu0
  %v431 = vadd.f32 %v413, %v68
  %v432 = vadd.f32 %v418, %v69
  %v433 = vadd.f32 %v423, %v70
  %v434 = vadd.f32 %v428, %v71
  %v435 = vld [vmem:[%s0] sm:$0xff]
  %v436 = vld [vmem:[%s0 + $0x8] sm:$0xff]
  %v437 = vld [vmem:[%s0 + $0x10] sm:$0xff]
  %v438 = vld [vmem:[%s0 + $0x18] sm:$0xff]
  %v439 = vsub.f32 %v435, %v431
  %v440 = vsub.f32 %v436, %v432
  %v441 = vsub.f32 %v437, %v433
  %v442 = vsub.f32 %v438, %v434
  %v443 = vld [vmem:[%s6] sm:$0xff]
  %v444 = vld [vmem:[%s7] sm:$0xff]
  %v446 = vsel %vm80, %v439, 0
  %v449 = vsel %vm80, %v440, 0
  %v452 = vsel %vm80, %v441, 0
  %v455 = vsel %vm80, %v442, 0
  %457 = vmatprep.subr.mxu0 0.0
  %458 = vmatpush1.msra.mxu0 %v444
  %459 = vmatprep.subr.mxu0 0.0
  %460 = vmatpush1.msra.mxu0 0.0
  %461 = vmatprep.subr.mxu0 0.0
  %462 = vmatpush1.msra.mxu0 0.0
  %463 = vmatprep.subr.mxu0 0.0
  %464 = vmatpush1.msra.mxu0 0.0
  %465 = vmatprep.subr.mxu0 0.0
  %466 = vmatpush1.msra.mxu0 0.0
  %467 = vmatprep.subr.mxu0 0.0
  %468 = vmatpush1.msra.mxu0 0.0
  %469 = vmatprep.subr.mxu0 0.0
  %470 = vmatpush1.msra.mxu0 0.0
  %471 = vmatprep.subr.mxu0 0.0
  %472 = vmatpush1.msra.mxu0 0.0
  %473 = vmatprep.subr.mxu0 0.0
  %474 = vmatpush1.msra.mxu0 0.0
  %475 = vmatprep.subr.mxu0 0.0
  %476 = vmatpush1.msra.mxu0 0.0
  %477 = vmatprep.subr.mxu0 0.0
  %478 = vmatpush1.msra.mxu0 0.0
  %479 = vmatprep.subr.mxu0 0.0
  %480 = vmatpush1.msra.mxu0 0.0
  %481 = vmatprep.subr.mxu0 0.0
  %482 = vmatpush1.msra.mxu0 0.0
  %483 = vmatprep.subr.mxu0 0.0
  %484 = vmatpush1.msra.mxu0 0.0
  %485 = vmatprep.subr.mxu0 0.0
  %486 = vmatpush1.msra.mxu0 0.0
  %487 = vmatprep.subr.mxu0 0.0
  %488 = vmatpush1.msra.mxu0 0.0
  %489 = vmatprep.subr.mxu0 0.0
  %490 = vmatpush1.msra.mxu0 0.0
  %491 = vmatprep.subr.mxu0 0.0
  %492 = vmatpush1.msra.mxu0 0.0
  %493 = vmatprep.subr.mxu0 0.0
  %494 = vmatpush1.msra.mxu0 0.0
  %495 = vmatprep.subr.mxu0 0.0
  %496 = vmatpush1.msra.mxu0 0.0
  %497 = vmatprep.subr.mxu0 0.0
  %498 = vmatpush1.msra.mxu0 0.0
  %499 = vmatprep.subr.mxu0 0.0
  %500 = vmatpush1.msra.mxu0 0.0
  %501 = vmatprep.subr.mxu0 0.0
  %502 = vmatpush1.msra.mxu0 0.0
  %503 = vmatprep.subr.mxu0 0.0
  %504 = vmatpush1.msra.mxu0 0.0
  %505 = vmatprep.subr.mxu0 0.0
  %506 = vmatpush1.msra.mxu0 0.0
  %507 = vmatprep.subr.mxu0 0.0
  %508 = vmatpush1.msra.mxu0 0.0
  %509 = vmatprep.subr.mxu0 0.0
  %510 = vmatpush1.msra.mxu0 0.0
  %511 = vmatprep.subr.mxu0 0.0
  %512 = vmatpush1.msra.mxu0 0.0
  %513 = vmatprep.subr.mxu0 0.0
  %514 = vmatpush1.msra.mxu0 0.0
  %515 = vmatprep.subr.mxu0 0.0
  %516 = vmatpush1.msra.mxu0 0.0
  %517 = vmatprep.subr.mxu0 0.0
  %518 = vmatpush1.msra.mxu0 0.0
  %519 = vmatprep.subr.mxu0 0.0
  %520 = vmatpush1.msra.mxu0 0.0
  %521 = vmatprep.mubr.f32.mxu0 0.0
  %522 = vmatmul.mubr.f32.gmra.mrb[0].mxu0 %v446
  %v523 = vpop.f32.mrb[0].mxu0
  %v524 = vadd.f32 0.0, %v523
  %v525 = vpop.f32.mrb[0].mxu0
  %526 = vmatprep.mubr.f32.mxu0 0.0
  %527 = vmatmul.mubr.f32.gmra.mrb[0].mxu0 %v449
  %v528 = vpop.f32.mrb[0].mxu0
  %v529 = vadd.f32 0.0, %v528
  %v530 = vpop.f32.mrb[0].mxu0
  %531 = vmatprep.mubr.f32.mxu0 0.0
  %532 = vmatmul.mubr.f32.gmra.mrb[0].mxu0 %v452
  %v533 = vpop.f32.mrb[0].mxu0
  %v534 = vadd.f32 0.0, %v533
  %v535 = vpop.f32.mrb[0].mxu0
  %536 = vmatprep.mubr.f32.mxu0 0.0
  %537 = vmatmul.mubr.f32.gmra.mrb[0].mxu0 %v455
  %v538 = vpop.f32.mrb[0].mxu0
  %v539 = vadd.f32 0.0, %v538
  %v540 = vpop.f32.mrb[0].mxu0
  %541 = vdwg.mxu0
  %v543 = vsel %vm80, %v431, 0
  %v546 = vsel %vm80, %v432, 0
  %v549 = vsel %vm80, %v433, 0
  %v552 = vsel %vm80, %v434, 0
  %554 = vmatprep.subr.mxu0 0.0
  %555 = vmatpush1.msra.mxu0 %v443
  %556 = vmatprep.subr.mxu0 0.0
  %557 = vmatpush1.msra.mxu0 0.0
  %558 = vmatprep.subr.mxu0 0.0
  %559 = vmatpush1.msra.mxu0 0.0
  %560 = vmatprep.subr.mxu0 0.0
  %561 = vmatpush1.msra.mxu0 0.0
  %562 = vmatprep.subr.mxu0 0.0
  %563 = vmatpush1.msra.mxu0 0.0
  %564 = vmatprep.subr.mxu0 0.0
  %565 = vmatpush1.msra.mxu0 0.0
  %566 = vmatprep.subr.mxu0 0.0
  %567 = vmatpush1.msra.mxu0 0.0
  %568 = vmatprep.subr.mxu0 0.0
  %569 = vmatpush1.msra.mxu0 0.0
  %570 = vmatprep.subr.mxu0 0.0
  %571 = vmatpush1.msra.mxu0 0.0
  %572 = vmatprep.subr.mxu0 0.0
  %573 = vmatpush1.msra.mxu0 0.0
  %574 = vmatprep.subr.mxu0 0.0
  %575 = vmatpush1.msra.mxu0 0.0
  %576 = vmatprep.subr.mxu0 0.0
  %577 = vmatpush1.msra.mxu0 0.0
  %578 = vmatprep.subr.mxu0 0.0
  %579 = vmatpush1.msra.mxu0 0.0
  %580 = vmatprep.subr.mxu0 0.0
  %581 = vmatpush1.msra.mxu0 0.0
  %582 = vmatprep.subr.mxu0 0.0
  %583 = vmatpush1.msra.mxu0 0.0
  %584 = vmatprep.subr.mxu0 0.0
  %585 = vmatpush1.msra.mxu0 0.0
  %586 = vmatprep.subr.mxu0 0.0
  %587 = vmatpush1.msra.mxu0 0.0
  %588 = vmatprep.subr.mxu0 0.0
  %589 = vmatpush1.msra.mxu0 0.0
  %590 = vmatprep.subr.mxu0 0.0
  %591 = vmatpush1.msra.mxu0 0.0
  %592 = vmatprep.subr.mxu0 0.0
  %593 = vmatpush1.msra.mxu0 0.0
  %594 = vmatprep.subr.mxu0 0.0
  %595 = vmatpush1.msra.mxu0 0.0
  %596 = vmatprep.subr.mxu0 0.0
  %597 = vmatpush1.msra.mxu0 0.0
  %598 = vmatprep.subr.mxu0 0.0
  %599 = vmatpush1.msra.mxu0 0.0
  %600 = vmatprep.subr.mxu0 0.0
  %601 = vmatpush1.msra.mxu0 0.0
  %602 = vmatprep.subr.mxu0 0.0
  %603 = vmatpush1.msra.mxu0 0.0
  %604 = vmatprep.subr.mxu0 0.0
  %605 = vmatpush1.msra.mxu0 0.0
  %606 = vmatprep.subr.mxu0 0.0
  %607 = vmatpush1.msra.mxu0 0.0
  %608 = vmatprep.subr.mxu0 0.0
  %609 = vmatpush1.msra.mxu0 0.0
  %610 = vmatprep.subr.mxu0 0.0
  %611 = vmatpush1.msra.mxu0 0.0
  %612 = vmatprep.subr.mxu0 0.0
  %613 = vmatpush1.msra.mxu0 0.0
  %614 = vmatprep.subr.mxu0 0.0
  %615 = vmatpush1.msra.mxu0 0.0
  %616 = vmatprep.subr.mxu0 0.0
  %617 = vmatpush1.msra.mxu0 0.0
  %618 = vmatprep.mubr.f32.mxu0 0.0
  %619 = vmatmul.mubr.f32.gmra.mrb[0].mxu0 %v543
  %v620 = vpop.f32.mrb[0].mxu0
  %v621 = vadd.f32 %v524, %v620
  %v622 = vpop.f32.mrb[0].mxu0
  %623 = vmatprep.mubr.f32.mxu0 0.0
  %624 = vmatmul.mubr.f32.gmra.mrb[0].mxu0 %v546
  %v625 = vpop.f32.mrb[0].mxu0
  %v626 = vadd.f32 %v529, %v625
  %v627 = vpop.f32.mrb[0].mxu0
  %628 = vmatprep.mubr.f32.mxu0 0.0
  %629 = vmatmul.mubr.f32.gmra.mrb[0].mxu0 %v549
  %v630 = vpop.f32.mrb[0].mxu0
  %v631 = vadd.f32 %v534, %v630
  %v632 = vpop.f32.mrb[0].mxu0
  %633 = vmatprep.mubr.f32.mxu0 0.0
  %634 = vmatmul.mubr.f32.gmra.mrb[0].mxu0 %v552
  %v635 = vpop.f32.mrb[0].mxu0
  %v636 = vadd.f32 %v539, %v635
  %v637 = vpop.f32.mrb[0].mxu0
  %638 = vdwg.mxu0
  %v639 = vld [vmem:[%s8] sm:$0x1]
  %v641 = vlaneseq
  %v642 = vshrl.u32 %v641, 7
  %v643 = vsub.s32 0, %v642
  %v644 = vrot.slane %v639, %v643
  %v646 = vadd.f32 %v621, %v644
  %v647 = vadd.f32 %v626, %v644
  %v648 = vadd.f32 %v631, %v644
  %v649 = vadd.f32 %v636, %v644
  %v650 = vmul.f32 %v646, 0.5
  %v651 = vmul.f32 %v647, 0.5
  %v652 = vmul.f32 %v648, 0.5
  %v653 = vmul.f32 %v649, 0.5
  %v654 = vmul.f32 %v646, 0.70710677
  %v655 = vmul.f32 %v647, 0.70710677
  %v656 = vmul.f32 %v648, 0.70710677
  %v657 = vmul.f32 %v649, 0.70710677
  %v658 = vmax.f32 %v654, -3.832507
  %v659 = vmax.f32 %v655, -3.832507
  %v660 = vmax.f32 %v656, -3.832507
  %v661 = vmax.f32 %v657, -3.832507
  %v662 = vmin.f32 %v658, 3.832507
  %v663 = vmin.f32 %v659, 3.832507
  %v664 = vmin.f32 %v660, 3.832507
  %v665 = vmin.f32 %v661, 3.832507
  %v666 = vmul.f32 %v662, %v662
  %v667 = vmul.f32 %v663, %v663
  %v668 = vmul.f32 %v664, %v664
  %v669 = vmul.f32 %v665, %v665
  %v670 = vmul.f32 %v666, -2.7261424e-10
  %v671 = vmul.f32 %v667, -2.7261424e-10
  %v672 = vmul.f32 %v668, -2.7261424e-10
  %v673 = vmul.f32 %v669, -2.7261424e-10
  %v674 = vadd.f32 %v670, 2.7706815e-08
  %v675 = vadd.f32 %v671, 2.7706815e-08
  %v676 = vadd.f32 %v672, 2.7706815e-08
  %v677 = vadd.f32 %v673, 2.7706815e-08
  %v678 = vmul.f32 %v674, %v666
  %v679 = vmul.f32 %v675, %v667
  %v680 = vmul.f32 %v676, %v668
  %v681 = vmul.f32 %v677, %v669
  %v682 = vadd.f32 %v678, -2.101024e-06
  %v683 = vadd.f32 %v679, -2.101024e-06
  %v684 = vadd.f32 %v680, -2.101024e-06
  %v685 = vadd.f32 %v681, -2.101024e-06
  %v686 = vmul.f32 %v682, %v666
  %v687 = vmul.f32 %v683, %v667
  %v688 = vmul.f32 %v684, %v668
  %v689 = vmul.f32 %v685, %v669
  %v690 = vadd.f32 %v686, -5.6925062e-05
  %v691 = vadd.f32 %v687, -5.6925062e-05
  %v692 = vadd.f32 %v688, -5.6925062e-05
  %v693 = vadd.f32 %v689, -5.6925062e-05
  %v694 = vmul.f32 %v690, %v666
  %v695 = vmul.f32 %v691, %v667
  %v696 = vmul.f32 %v692, %v668
  %v697 = vmul.f32 %v693, %v669
  %v698 = vadd.f32 %v694, -0.00073499064
  %v699 = vadd.f32 %v695, -0.00073499064
  %v700 = vadd.f32 %v696, -0.00073499064
  %v701 = vadd.f32 %v697, -0.00073499064
  %v702 = vmul.f32 %v698, %v666
  %v703 = vmul.f32 %v699, %v667
  %v704 = vmul.f32 %v700, %v668
  %v705 = vmul.f32 %v701, %v669
  %v706 = vadd.f32 %v702, -0.0029546
  %v707 = vadd.f32 %v703, -0.0029546
  %v708 = vadd.f32 %v704, -0.0029546
  %v709 = vadd.f32 %v705, -0.0029546
  %v710 = vmul.f32 %v706, %v666
  %v711 = vmul.f32 %v707, %v667
  %v712 = vmul.f32 %v708, %v668
  %v713 = vmul.f32 %v709, %v669
  %v714 = vadd.f32 %v710, -0.016096033
  %v715 = vadd.f32 %v711, -0.016096033
  %v716 = vadd.f32 %v712, -0.016096033
  %v717 = vadd.f32 %v713, -0.016096033
  %v718 = vmul.f32 %v714, %v662
  %v719 = vmul.f32 %v715, %v663
  %v720 = vmul.f32 %v716, %v664
  %v721 = vmul.f32 %v717, %v665
  %v722 = vmul.f32 %v666, -1.45660715e-05
  %v723 = vmul.f32 %v667, -1.45660715e-05
  %v724 = vmul.f32 %v668, -1.45660715e-05
  %v725 = vmul.f32 %v669, -1.45660715e-05
  %v726 = vadd.f32 %v722, -0.00021337405
  %v727 = vadd.f32 %v723, -0.00021337405
  %v728 = vadd.f32 %v724, -0.00021337405
  %v729 = vadd.f32 %v725, -0.00021337405
  %v730 = vmul.f32 %v726, %v666
  %v731 = vmul.f32 %v727, %v667
  %v732 = vmul.f32 %v728, %v668
  %v733 = vmul.f32 %v729, %v669
  %v734 = vadd.f32 %v730, -0.001682827
  %v735 = vadd.f32 %v731, -0.001682827
  %v736 = vadd.f32 %v732, -0.001682827
  %v737 = vadd.f32 %v733, -0.001682827
  %v738 = vmul.f32 %v734, %v666
  %v739 = vmul.f32 %v735, %v667
  %v740 = vmul.f32 %v736, %v668
  %v741 = vmul.f32 %v737, %v669
  %v742 = vadd.f32 %v738, -0.0073733293
  %v743 = vadd.f32 %v739, -0.0073733293
  %v744 = vadd.f32 %v740, -0.0073733293
  %v745 = vadd.f32 %v741, -0.0073733293
  %v746 = vmul.f32 %v742, %v666
  %v747 = vmul.f32 %v743, %v667
  %v748 = vmul.f32 %v744, %v668
  %v749 = vmul.f32 %v745, %v669
  %v750 = vadd.f32 %v746, -0.014264739
  %v751 = vadd.f32 %v747, -0.014264739
  %v752 = vadd.f32 %v748, -0.014264739
  %v753 = vadd.f32 %v749, -0.014264739
  %v754 = vrcp.pop %v750
  %v755 = vmul.f32 %v718, %v754
  %v756 = vrcp.pop %v751
  %v757 = vmul.f32 %v719, %v756
  %v758 = vrcp.pop %v752
  %v759 = vmul.f32 %v720, %v758
  %v760 = vrcp.pop %v753
  %v761 = vmul.f32 %v721, %v760
  %v762 = vadd.f32 %v755, 1.0
  %v763 = vadd.f32 %v757, 1.0
  %v764 = vadd.f32 %v759, 1.0
  %v765 = vadd.f32 %v761, 1.0
  %v766 = vmul.f32 %v650, %v762
  %v767 = vmul.f32 %v651, %v763
  %v768 = vmul.f32 %v652, %v764
  %v769 = vmul.f32 %v653, %v765
  %v770 = vld [vmem:[%s9] sm:$0xff]
  %v771 = vld [vmem:[%s10] sm:$0xff]
  %v772 = vld [vmem:[%s11] sm:$0x1f]
  %v773 = vld [vmem:[%s12] sm:$0x1]
  %v774 = vlaneseq
  %v775 = vshrl.u32 %v774, 7
  %v776 = vsub.s32 0, %v775
  %v777 = vrot.slane %v772, %v776
  %v779 = vsel %vm80, %v766, 0
  %v782 = vsel %vm80, %v767, 0
  %v785 = vsel %vm80, %v768, 0
  %v788 = vsel %vm80, %v769, 0
  %790 = vmatprep.subr.mxu0 0.0
  %791 = vmatpush1.msra.mxu0 %v770
  %792 = vmatprep.subr.mxu0 0.0
  %793 = vmatpush1.msra.mxu0 0.0
  %794 = vmatprep.subr.mxu0 0.0
  %795 = vmatpush1.msra.mxu0 0.0
  %796 = vmatprep.subr.mxu0 0.0
  %797 = vmatpush1.msra.mxu0 0.0
  %798 = vmatprep.subr.mxu0 0.0
  %799 = vmatpush1.msra.mxu0 0.0
  %800 = vmatprep.subr.mxu0 0.0
  %801 = vmatpush1.msra.mxu0 0.0
  %802 = vmatprep.subr.mxu0 0.0
  %803 = vmatpush1.msra.mxu0 0.0
  %804 = vmatprep.subr.mxu0 0.0
  %805 = vmatpush1.msra.mxu0 0.0
  %806 = vmatprep.subr.mxu0 0.0
  %807 = vmatpush1.msra.mxu0 0.0
  %808 = vmatprep.subr.mxu0 0.0
  %809 = vmatpush1.msra.mxu0 0.0
  %810 = vmatprep.subr.mxu0 0.0
  %811 = vmatpush1.msra.mxu0 0.0
  %812 = vmatprep.subr.mxu0 0.0
  %813 = vmatpush1.msra.mxu0 0.0
  %814 = vmatprep.subr.mxu0 0.0
  %815 = vmatpush1.msra.mxu0 0.0
  %816 = vmatprep.subr.mxu0 0.0
  %817 = vmatpush1.msra.mxu0 0.0
  %818 = vmatprep.subr.mxu0 0.0
  %819 = vmatpush1.msra.mxu0 0.0
  %820 = vmatprep.subr.mxu0 0.0
  %821 = vmatpush1.msra.mxu0 0.0
  %822 = vmatprep.subr.mxu0 0.0
  %823 = vmatpush1.msra.mxu0 0.0
  %824 = vmatprep.subr.mxu0 0.0
  %825 = vmatpush1.msra.mxu0 0.0
  %826 = vmatprep.subr.mxu0 0.0
  %827 = vmatpush1.msra.mxu0 0.0
  %828 = vmatprep.subr.mxu0 0.0
  %829 = vmatpush1.msra.mxu0 0.0
  %830 = vmatprep.subr.mxu0 0.0
  %831 = vmatpush1.msra.mxu0 0.0
  %832 = vmatprep.subr.mxu0 0.0
  %833 = vmatpush1.msra.mxu0 0.0
  %834 = vmatprep.subr.mxu0 0.0
  %835 = vmatpush1.msra.mxu0 0.0
  %836 = vmatprep.subr.mxu0 0.0
  %837 = vmatpush1.msra.mxu0 0.0
  %838 = vmatprep.subr.mxu0 0.0
  %839 = vmatpush1.msra.mxu0 0.0
  %840 = vmatprep.subr.mxu0 0.0
  %841 = vmatpush1.msra.mxu0 0.0
  %842 = vmatprep.subr.mxu0 0.0
  %843 = vmatpush1.msra.mxu0 0.0
  %844 = vmatprep.subr.mxu0 0.0
  %845 = vmatpush1.msra.mxu0 0.0
  %846 = vmatprep.subr.mxu0 0.0
  %847 = vmatpush1.msra.mxu0 0.0
  %848 = vmatprep.subr.mxu0 0.0
  %849 = vmatpush1.msra.mxu0 0.0
  %850 = vmatprep.subr.mxu0 0.0
  %851 = vmatpush1.msra.mxu0 0.0
  %852 = vmatprep.subr.mxu0 0.0
  %853 = vmatpush1.msra.mxu0 0.0
  %854 = vmatprep.mubr.f32.mxu0 0.0
  %855 = vmatmul.mubr.f32.gmra.mrb[0].mxu0 %v779
  %v856 = vpop.f32.mrb[0].mxu0
  %v857 = vadd.f32 %v777, %v856
  %v858 = vpop.f32.mrb[0].mxu0
  %859 = vmatprep.mubr.f32.mxu0 0.0
  %860 = vmatmul.mubr.f32.gmra.mrb[0].mxu0 %v782
  %v861 = vpop.f32.mrb[0].mxu0
  %v862 = vadd.f32 %v777, %v861
  %v863 = vpop.f32.mrb[0].mxu0
  %864 = vmatprep.mubr.f32.mxu0 0.0
  %865 = vmatmul.mubr.f32.gmra.mrb[0].mxu0 %v785
  %v866 = vpop.f32.mrb[0].mxu0
  %v867 = vadd.f32 %v777, %v866
  %v868 = vpop.f32.mrb[0].mxu0
  %869 = vmatprep.mubr.f32.mxu0 0.0
  %870 = vmatmul.mubr.f32.gmra.mrb[0].mxu0 %v788
  %v871 = vpop.f32.mrb[0].mxu0
  %v872 = vadd.f32 %v777, %v871
  %v873 = vpop.f32.mrb[0].mxu0
  %874 = vdwg.mxu0
  %v875 = vlaneseq
  %v876 = vshrl.u32 %v875, 7
  %v877 = vsub.s32 3, %v876
  %v878 = vrot.slane %v772, %v877
  %v879 = vsub.f32 %v857, %v878
  %v880 = vsub.f32 %v862, %v878
  %v881 = vsub.f32 %v867, %v878
  %v882 = vsub.f32 %v872, %v878
  %v883 = vadd.f32 %v772, 1e-05
  %v884 = vrsqrt.pop %v883
  %v886 = vrot.slane %v884, 3
  %v888 = vmul.f32 %v772, %v886
  %v889 = vlaneseq
  %v890 = vshrl.u32 %v889, 7
  %v891 = vsub.s32 1, %v890
  %v892 = vrot.slane %v888, %v891
  %v893 = vmul.f32 %v879, %v892
  %v894 = vmul.f32 %v880, %v892
  %v895 = vmul.f32 %v881, %v892
  %v896 = vmul.f32 %v882, %v892
  %v897 = vlaneseq
  %v898 = vshrl.u32 %v897, 7
  %v899 = vsub.s32 2, %v898
  %v900 = vrot.slane %v772, %v899
  %v901 = vadd.f32 %v893, %v900
  %v902 = vadd.f32 %v894, %v900
  %v903 = vadd.f32 %v895, %v900
  %v904 = vadd.f32 %v896, %v900
  %v905 = vmul.f32 %v901, 0.5
  %v906 = vmul.f32 %v902, 0.5
  %v907 = vmul.f32 %v903, 0.5
  %v908 = vmul.f32 %v904, 0.5
  %v909 = vmul.f32 %v901, 0.70710677
  %v910 = vmul.f32 %v902, 0.70710677
  %v911 = vmul.f32 %v903, 0.70710677
  %v912 = vmul.f32 %v904, 0.70710677
  %v913 = vmax.f32 %v909, -3.832507
  %v914 = vmax.f32 %v910, -3.832507
  %v915 = vmax.f32 %v911, -3.832507
  %v916 = vmax.f32 %v912, -3.832507
  %v917 = vmin.f32 %v913, 3.832507
  %v918 = vmin.f32 %v914, 3.832507
  %v919 = vmin.f32 %v915, 3.832507
  %v920 = vmin.f32 %v916, 3.832507
  %v921 = vmul.f32 %v917, %v917
  %v922 = vmul.f32 %v918, %v918
  %v923 = vmul.f32 %v919, %v919
  %v924 = vmul.f32 %v920, %v920
  %v925 = vmul.f32 %v921, -2.7261424e-10
  %v926 = vmul.f32 %v922, -2.7261424e-10
  %v927 = vmul.f32 %v923, -2.7261424e-10
  %v928 = vmul.f32 %v924, -2.7261424e-10
  %v929 = vadd.f32 %v925, 2.7706815e-08
  %v930 = vadd.f32 %v926, 2.7706815e-08
  %v931 = vadd.f32 %v927, 2.7706815e-08
  %v932 = vadd.f32 %v928, 2.7706815e-08
  %v933 = vmul.f32 %v929, %v921
  %v934 = vmul.f32 %v930, %v922
  %v935 = vmul.f32 %v931, %v923
  %v936 = vmul.f32 %v932, %v924
  %v937 = vadd.f32 %v933, -2.101024e-06
  %v938 = vadd.f32 %v934, -2.101024e-06
  %v939 = vadd.f32 %v935, -2.101024e-06
  %v940 = vadd.f32 %v936, -2.101024e-06
  %v941 = vmul.f32 %v937, %v921
  %v942 = vmul.f32 %v938, %v922
  %v943 = vmul.f32 %v939, %v923
  %v944 = vmul.f32 %v940, %v924
  %v945 = vadd.f32 %v941, -5.6925062e-05
  %v946 = vadd.f32 %v942, -5.6925062e-05
  %v947 = vadd.f32 %v943, -5.6925062e-05
  %v948 = vadd.f32 %v944, -5.6925062e-05
  %v949 = vmul.f32 %v945, %v921
  %v950 = vmul.f32 %v946, %v922
  %v951 = vmul.f32 %v947, %v923
  %v952 = vmul.f32 %v948, %v924
  %v953 = vadd.f32 %v949, -0.00073499064
  %v954 = vadd.f32 %v950, -0.00073499064
  %v955 = vadd.f32 %v951, -0.00073499064
  %v956 = vadd.f32 %v952, -0.00073499064
  %v957 = vmul.f32 %v953, %v921
  %v958 = vmul.f32 %v954, %v922
  %v959 = vmul.f32 %v955, %v923
  %v960 = vmul.f32 %v956, %v924
  %v961 = vadd.f32 %v957, -0.0029546
  %v962 = vadd.f32 %v958, -0.0029546
  %v963 = vadd.f32 %v959, -0.0029546
  %v964 = vadd.f32 %v960, -0.0029546
  %v965 = vmul.f32 %v961, %v921
  %v966 = vmul.f32 %v962, %v922
  %v967 = vmul.f32 %v963, %v923
  %v968 = vmul.f32 %v964, %v924
  %v969 = vadd.f32 %v965, -0.016096033
  %v970 = vadd.f32 %v966, -0.016096033
  %v971 = vadd.f32 %v967, -0.016096033
  %v972 = vadd.f32 %v968, -0.016096033
  %v973 = vmul.f32 %v969, %v917
  %v974 = vmul.f32 %v970, %v918
  %v975 = vmul.f32 %v971, %v919
  %v976 = vmul.f32 %v972, %v920
  %v977 = vmul.f32 %v921, -1.45660715e-05
  %v978 = vmul.f32 %v922, -1.45660715e-05
  %v979 = vmul.f32 %v923, -1.45660715e-05
  %v980 = vmul.f32 %v924, -1.45660715e-05
  %v981 = vadd.f32 %v977, -0.00021337405
  %v982 = vadd.f32 %v978, -0.00021337405
  %v983 = vadd.f32 %v979, -0.00021337405
  %v984 = vadd.f32 %v980, -0.00021337405
  %v985 = vmul.f32 %v981, %v921
  %v986 = vmul.f32 %v982, %v922
  %v987 = vmul.f32 %v983, %v923
  %v988 = vmul.f32 %v984, %v924
  %v989 = vadd.f32 %v985, -0.001682827
  %v990 = vadd.f32 %v986, -0.001682827
  %v991 = vadd.f32 %v987, -0.001682827
  %v992 = vadd.f32 %v988, -0.001682827
  %v993 = vmul.f32 %v989, %v921
  %v994 = vmul.f32 %v990, %v922
  %v995 = vmul.f32 %v991, %v923
  %v996 = vmul.f32 %v992, %v924
  %v997 = vadd.f32 %v993, -0.0073733293
  %v998 = vadd.f32 %v994, -0.0073733293
  %v999 = vadd.f32 %v995, -0.0073733293
  %v1000 = vadd.f32 %v996, -0.0073733293
  %v1001 = vmul.f32 %v997, %v921
  %v1002 = vmul.f32 %v998, %v922
  %v1003 = vmul.f32 %v999, %v923
  %v1004 = vmul.f32 %v1000, %v924
  %v1005 = vadd.f32 %v1001, -0.014264739
  %v1006 = vadd.f32 %v1002, -0.014264739
  %v1007 = vadd.f32 %v1003, -0.014264739
  %v1008 = vadd.f32 %v1004, -0.014264739
  %v1009 = vrcp.pop %v1005
  %v1010 = vmul.f32 %v973, %v1009
  %v1011 = vrcp.pop %v1006
  %v1012 = vmul.f32 %v974, %v1011
  %v1013 = vrcp.pop %v1007
  %v1014 = vmul.f32 %v975, %v1013
  %v1015 = vrcp.pop %v1008
  %v1016 = vmul.f32 %v976, %v1015
  %v1017 = vadd.f32 %v1010, 1.0
  %v1018 = vadd.f32 %v1012, 1.0
  %v1019 = vadd.f32 %v1014, 1.0
  %v1020 = vadd.f32 %v1016, 1.0
  %v1021 = vmul.f32 %v905, %v1017
  %v1022 = vmul.f32 %v906, %v1018
  %v1023 = vmul.f32 %v907, %v1019
  %v1024 = vmul.f32 %v908, %v1020
  %v1026 = vlaneseq
  %v1027 = vshrl.u32 %v1026, 7
  %v1028 = vsub.s32 0, %v1027
  %v1029 = vrot.slane %v773, %v1028
  %v1032 = vsel %vm80, %v1021, 0
  %v1035 = vsel %vm80, %v1022, 0
  %v1038 = vsel %vm80, %v1023, 0
  %v1041 = vsel %vm80, %v1024, 0
  %1043 = vmatprep.subr.mxu0 0.0
  %1044 = vmatpush1.msra.mxu0 %v771
  %1045 = vmatprep.subr.mxu0 0.0
  %1046 = vmatpush1.msra.mxu0 0.0
  %1047 = vmatprep.subr.mxu0 0.0
  %1048 = vmatpush1.msra.mxu0 0.0
  %1049 = vmatprep.subr.mxu0 0.0
  %1050 = vmatpush1.msra.mxu0 0.0
  %1051 = vmatprep.subr.mxu0 0.0
  %1052 = vmatpush1.msra.mxu0 0.0
  %1053 = vmatprep.subr.mxu0 0.0
  %1054 = vmatpush1.msra.mxu0 0.0
  %1055 = vmatprep.subr.mxu0 0.0
  %1056 = vmatpush1.msra.mxu0 0.0
  %1057 = vmatprep.subr.mxu0 0.0
  %1058 = vmatpush1.msra.mxu0 0.0
  %1059 = vmatprep.subr.mxu0 0.0
  %1060 = vmatpush1.msra.mxu0 0.0
  %1061 = vmatprep.subr.mxu0 0.0
  %1062 = vmatpush1.msra.mxu0 0.0
  %1063 = vmatprep.subr.mxu0 0.0
  %1064 = vmatpush1.msra.mxu0 0.0
  %1065 = vmatprep.subr.mxu0 0.0
  %1066 = vmatpush1.msra.mxu0 0.0
  %1067 = vmatprep.subr.mxu0 0.0
  %1068 = vmatpush1.msra.mxu0 0.0
  %1069 = vmatprep.subr.mxu0 0.0
  %1070 = vmatpush1.msra.mxu0 0.0
  %1071 = vmatprep.subr.mxu0 0.0
  %1072 = vmatpush1.msra.mxu0 0.0
  %1073 = vmatprep.subr.mxu0 0.0
  %1074 = vmatpush1.msra.mxu0 0.0
  %1075 = vmatprep.subr.mxu0 0.0
  %1076 = vmatpush1.msra.mxu0 0.0
  %1077 = vmatprep.subr.mxu0 0.0
  %1078 = vmatpush1.msra.mxu0 0.0
  %1079 = vmatprep.subr.mxu0 0.0
  %1080 = vmatpush1.msra.mxu0 0.0
  %1081 = vmatprep.subr.mxu0 0.0
  %1082 = vmatpush1.msra.mxu0 0.0
  %1083 = vmatprep.subr.mxu0 0.0
  %1084 = vmatpush1.msra.mxu0 0.0
  %1085 = vmatprep.subr.mxu0 0.0
  %1086 = vmatpush1.msra.mxu0 0.0
  %1087 = vmatprep.subr.mxu0 0.0
  %1088 = vmatpush1.msra.mxu0 0.0
  %1089 = vmatprep.subr.mxu0 0.0
  %1090 = vmatpush1.msra.mxu0 0.0
  %1091 = vmatprep.subr.mxu0 0.0
  %1092 = vmatpush1.msra.mxu0 0.0
  %1093 = vmatprep.subr.mxu0 0.0
  %1094 = vmatpush1.msra.mxu0 0.0
  %1095 = vmatprep.subr.mxu0 0.0
  %1096 = vmatpush1.msra.mxu0 0.0
  %1097 = vmatprep.subr.mxu0 0.0
  %1098 = vmatpush1.msra.mxu0 0.0
  %1099 = vmatprep.subr.mxu0 0.0
  %1100 = vmatpush1.msra.mxu0 0.0
  %1101 = vmatprep.subr.mxu0 0.0
  %1102 = vmatpush1.msra.mxu0 0.0
  %1103 = vmatprep.subr.mxu0 0.0
  %1104 = vmatpush1.msra.mxu0 0.0
  %1105 = vmatprep.subr.mxu0 0.0
  %1106 = vmatpush1.msra.mxu0 0.0
  %1107 = vmatprep.mubr.f32.mxu0 0.0
  %1108 = vmatmul.mubr.f32.gmra.mrb[0].mxu0 %v1032
  %v1109 = vpop.f32.mrb[0].mxu0
  %v1110 = vadd.f32 %v1029, %v1109
  %v1111 = vpop.f32.mrb[0].mxu0
  %1112 = vmatprep.mubr.f32.mxu0 0.0
  %1113 = vmatmul.mubr.f32.gmra.mrb[0].mxu0 %v1035
  %v1114 = vpop.f32.mrb[0].mxu0
  %v1115 = vadd.f32 %v1029, %v1114
  %v1116 = vpop.f32.mrb[0].mxu0
  %1117 = vmatprep.mubr.f32.mxu0 0.0
  %1118 = vmatmul.mubr.f32.gmra.mrb[0].mxu0 %v1038
  %v1119 = vpop.f32.mrb[0].mxu0
  %v1120 = vadd.f32 %v1029, %v1119
  %v1121 = vpop.f32.mrb[0].mxu0
  %1122 = vmatprep.mubr.f32.mxu0 0.0
  %1123 = vmatmul.mubr.f32.gmra.mrb[0].mxu0 %v1041
  %v1124 = vpop.f32.mrb[0].mxu0
  %v1125 = vadd.f32 %v1029, %v1124
  %v1126 = vpop.f32.mrb[0].mxu0
  %1127 = vdwg.mxu0
  %v1128 = vadd.f32 %v1110, %v766
  %v1129 = vadd.f32 %v1115, %v767
  %v1130 = vadd.f32 %v1120, %v768
  %v1131 = vadd.f32 %v1125, %v769
  %v1132 = vadd.f32 %v1128, %v68
  %v1133 = vadd.f32 %v1129, %v69
  %v1134 = vadd.f32 %v1130, %v70
  %v1135 = vadd.f32 %v1131, %v71
  %v1136 = vld [vmem:[%s13] sm:$0xff]
  %v1137 = vld [vmem:[%s14] sm:$0xff]
  %v1138 = vld [vmem:[%s14 + $0x8] sm:$0xff]
  %v1139 = vld [vmem:[%s14 + $0x10] sm:$0xff]
  %v1140 = vld [vmem:[%s14 + $0x18] sm:$0xff]
  %v1141 = vld [vmem:[%s15] sm:$0x1f]
  %v1142 = vld [vmem:[%s16] sm:$0x1]
  %v1143 = vlaneseq
  %v1144 = vshrl.u32 %v1143, 7
  %v1145 = vsub.s32 0, %v1144
  %v1146 = vrot.slane %v1141, %v1145
  %v1148 = vsel %vm80, %v1132, 0
  %v1151 = vsel %vm80, %v1133, 0
  %v1154 = vsel %vm80, %v1134, 0
  %v1157 = vsel %vm80, %v1135, 0
  %1159 = vmatprep.subr.mxu0 0.0
  %1160 = vmatpush1.msra.mxu0 %v1136
  %1161 = vmatprep.subr.mxu0 0.0
  %1162 = vmatpush1.msra.mxu0 0.0
  %1163 = vmatprep.subr.mxu0 0.0
  %1164 = vmatpush1.msra.mxu0 0.0
  %1165 = vmatprep.subr.mxu0 0.0
  %1166 = vmatpush1.msra.mxu0 0.0
  %1167 = vmatprep.subr.mxu0 0.0
  %1168 = vmatpush1.msra.mxu0 0.0
  %1169 = vmatprep.subr.mxu0 0.0
  %1170 = vmatpush1.msra.mxu0 0.0
  %1171 = vmatprep.subr.mxu0 0.0
  %1172 = vmatpush1.msra.mxu0 0.0
  %1173 = vmatprep.subr.mxu0 0.0
  %1174 = vmatpush1.msra.mxu0 0.0
  %1175 = vmatprep.subr.mxu0 0.0
  %1176 = vmatpush1.msra.mxu0 0.0
  %1177 = vmatprep.subr.mxu0 0.0
  %1178 = vmatpush1.msra.mxu0 0.0
  %1179 = vmatprep.subr.mxu0 0.0
  %1180 = vmatpush1.msra.mxu0 0.0
  %1181 = vmatprep.subr.mxu0 0.0
  %1182 = vmatpush1.msra.mxu0 0.0
  %1183 = vmatprep.subr.mxu0 0.0
  %1184 = vmatpush1.msra.mxu0 0.0
  %1185 = vmatprep.subr.mxu0 0.0
  %1186 = vmatpush1.msra.mxu0 0.0
  %1187 = vmatprep.subr.mxu0 0.0
  %1188 = vmatpush1.msra.mxu0 0.0
  %1189 = vmatprep.subr.mxu0 0.0
  %1190 = vmatpush1.msra.mxu0 0.0
  %1191 = vmatprep.subr.mxu0 0.0
  %1192 = vmatpush1.msra.mxu0 0.0
  %1193 = vmatprep.subr.mxu0 0.0
  %1194 = vmatpush1.msra.mxu0 0.0
  %1195 = vmatprep.subr.mxu0 0.0
  %1196 = vmatpush1.msra.mxu0 0.0
  %1197 = vmatprep.subr.mxu0 0.0
  %1198 = vmatpush1.msra.mxu0 0.0
  %1199 = vmatprep.subr.mxu0 0.0
  %1200 = vmatpush1.msra.mxu0 0.0
  %1201 = vmatprep.subr.mxu0 0.0
  %1202 = vmatpush1.msra.mxu0 0.0
  %1203 = vmatprep.subr.mxu0 0.0
  %1204 = vmatpush1.msra.mxu0 0.0
  %1205 = vmatprep.subr.mxu0 0.0
  %1206 = vmatpush1.msra.mxu0 0.0
  %1207 = vmatprep.subr.mxu0 0.0
  %1208 = vmatpush1.msra.mxu0 0.0
  %1209 = vmatprep.subr.mxu0 0.0
  %1210 = vmatpush1.msra.mxu0 0.0
  %1211 = vmatprep.subr.mxu0 0.0
  %1212 = vmatpush1.msra.mxu0 0.0
  %1213 = vmatprep.subr.mxu0 0.0
  %1214 = vmatpush1.msra.mxu0 0.0
  %1215 = vmatprep.subr.mxu0 0.0
  %1216 = vmatpush1.msra.mxu0 0.0
  %1217 = vmatprep.subr.mxu0 0.0
  %1218 = vmatpush1.msra.mxu0 0.0
  %1219 = vmatprep.subr.mxu0 0.0
  %1220 = vmatpush1.msra.mxu0 0.0
  %1221 = vmatprep.subr.mxu0 0.0
  %1222 = vmatpush1.msra.mxu0 0.0
  %1223 = vmatprep.mubr.f32.mxu0 0.0
  %1224 = vmatmul.mubr.f32.gmra.mrb[0].mxu0 %v1148
  %v1225 = vpop.f32.mrb[0].mxu0
  %v1226 = vadd.f32 %v1146, %v1225
  %v1227 = vpop.f32.mrb[0].mxu0
  %1228 = vmatprep.mubr.f32.mxu0 0.0
  %1229 = vmatmul.mubr.f32.gmra.mrb[0].mxu0 %v1151
  %v1230 = vpop.f32.mrb[0].mxu0
  %v1231 = vadd.f32 %v1146, %v1230
  %v1232 = vpop.f32.mrb[0].mxu0
  %1233 = vmatprep.mubr.f32.mxu0 0.0
  %1234 = vmatmul.mubr.f32.gmra.mrb[0].mxu0 %v1154
  %v1235 = vpop.f32.mrb[0].mxu0
  %v1236 = vadd.f32 %v1146, %v1235
  %v1237 = vpop.f32.mrb[0].mxu0
  %1238 = vmatprep.mubr.f32.mxu0 0.0
  %1239 = vmatmul.mubr.f32.gmra.mrb[0].mxu0 %v1157
  %v1240 = vpop.f32.mrb[0].mxu0
  %v1241 = vadd.f32 %v1146, %v1240
  %v1242 = vpop.f32.mrb[0].mxu0
  %1243 = vdwg.mxu0
  %v1244 = vlaneseq
  %v1245 = vshrl.u32 %v1244, 7
  %v1246 = vsub.s32 3, %v1245
  %v1247 = vrot.slane %v1141, %v1246
  %v1248 = vsub.f32 %v1226, %v1247
  %v1249 = vsub.f32 %v1231, %v1247
  %v1250 = vsub.f32 %v1236, %v1247
  %v1251 = vsub.f32 %v1241, %v1247
  %v1252 = vadd.f32 %v1141, 1e-05
  %v1253 = vrsqrt.pop %v1252
  %v1255 = vrot.slane %v1253, 3
  %v1257 = vmul.f32 %v1141, %v1255
  %v1258 = vlaneseq
  %v1259 = vshrl.u32 %v1258, 7
  %v1260 = vsub.s32 1, %v1259
  %v1261 = vrot.slane %v1257, %v1260
  %v1262 = vmul.f32 %v1248, %v1261
  %v1263 = vmul.f32 %v1249, %v1261
  %v1264 = vmul.f32 %v1250, %v1261
  %v1265 = vmul.f32 %v1251, %v1261
  %v1266 = vlaneseq
  %v1267 = vshrl.u32 %v1266, 7
  %v1268 = vsub.s32 2, %v1267
  %v1269 = vrot.slane %v1141, %v1268
  %v1270 = vadd.f32 %v1262, %v1269
  %v1271 = vadd.f32 %v1263, %v1269
  %v1272 = vadd.f32 %v1264, %v1269
  %v1273 = vadd.f32 %v1265, %v1269
  %v1274 = vmul.f32 %v1270, 0.5
  %v1275 = vmul.f32 %v1271, 0.5
  %v1276 = vmul.f32 %v1272, 0.5
  %v1277 = vmul.f32 %v1273, 0.5
  %v1278 = vmul.f32 %v1270, 0.70710677
  %v1279 = vmul.f32 %v1271, 0.70710677
  %v1280 = vmul.f32 %v1272, 0.70710677
  %v1281 = vmul.f32 %v1273, 0.70710677
  %v1282 = vmax.f32 %v1278, -3.832507
  %v1283 = vmax.f32 %v1279, -3.832507
  %v1284 = vmax.f32 %v1280, -3.832507
  %v1285 = vmax.f32 %v1281, -3.832507
  %v1286 = vmin.f32 %v1282, 3.832507
  %v1287 = vmin.f32 %v1283, 3.832507
  %v1288 = vmin.f32 %v1284, 3.832507
  %v1289 = vmin.f32 %v1285, 3.832507
  %v1290 = vmul.f32 %v1286, %v1286
  %v1291 = vmul.f32 %v1287, %v1287
  %v1292 = vmul.f32 %v1288, %v1288
  %v1293 = vmul.f32 %v1289, %v1289
  %v1294 = vmul.f32 %v1290, -2.7261424e-10
  %v1295 = vmul.f32 %v1291, -2.7261424e-10
  %v1296 = vmul.f32 %v1292, -2.7261424e-10
  %v1297 = vmul.f32 %v1293, -2.7261424e-10
  %v1298 = vadd.f32 %v1294, 2.7706815e-08
  %v1299 = vadd.f32 %v1295, 2.7706815e-08
  %v1300 = vadd.f32 %v1296, 2.7706815e-08
  %v1301 = vadd.f32 %v1297, 2.7706815e-08
  %v1302 = vmul.f32 %v1298, %v1290
  %v1303 = vmul.f32 %v1299, %v1291
  %v1304 = vmul.f32 %v1300, %v1292
  %v1305 = vmul.f32 %v1301, %v1293
  %v1306 = vadd.f32 %v1302, -2.101024e-06
  %v1307 = vadd.f32 %v1303, -2.101024e-06
  %v1308 = vadd.f32 %v1304, -2.101024e-06
  %v1309 = vadd.f32 %v1305, -2.101024e-06
  %v1310 = vmul.f32 %v1306, %v1290
  %v1311 = vmul.f32 %v1307, %v1291
  %v1312 = vmul.f32 %v1308, %v1292
  %v1313 = vmul.f32 %v1309, %v1293
  %v1314 = vadd.f32 %v1310, -5.6925062e-05
  %v1315 = vadd.f32 %v1311, -5.6925062e-05
  %v1316 = vadd.f32 %v1312, -5.6925062e-05
  %v1317 = vadd.f32 %v1313, -5.6925062e-05
  %v1318 = vmul.f32 %v1314, %v1290
  %v1319 = vmul.f32 %v1315, %v1291
  %v1320 = vmul.f32 %v1316, %v1292
  %v1321 = vmul.f32 %v1317, %v1293
  %v1322 = vadd.f32 %v1318, -0.00073499064
  %v1323 = vadd.f32 %v1319, -0.00073499064
  %v1324 = vadd.f32 %v1320, -0.00073499064
  %v1325 = vadd.f32 %v1321, -0.00073499064
  %v1326 = vmul.f32 %v1322, %v1290
  %v1327 = vmul.f32 %v1323, %v1291
  %v1328 = vmul.f32 %v1324, %v1292
  %v1329 = vmul.f32 %v1325, %v1293
  %v1330 = vadd.f32 %v1326, -0.0029546
  %v1331 = vadd.f32 %v1327, -0.0029546
  %v1332 = vadd.f32 %v1328, -0.0029546
  %v1333 = vadd.f32 %v1329, -0.0029546
  %v1334 = vmul.f32 %v1330, %v1290
  %v1335 = vmul.f32 %v1331, %v1291
  %v1336 = vmul.f32 %v1332, %v1292
  %v1337 = vmul.f32 %v1333, %v1293
  %v1338 = vadd.f32 %v1334, -0.016096033
  %v1339 = vadd.f32 %v1335, -0.016096033
  %v1340 = vadd.f32 %v1336, -0.016096033
  %v1341 = vadd.f32 %v1337, -0.016096033
  %v1342 = vmul.f32 %v1338, %v1286
  %v1343 = vmul.f32 %v1339, %v1287
  %v1344 = vmul.f32 %v1340, %v1288
  %v1345 = vmul.f32 %v1341, %v1289
  %v1346 = vmul.f32 %v1290, -1.45660715e-05
  %v1347 = vmul.f32 %v1291, -1.45660715e-05
  %v1348 = vmul.f32 %v1292, -1.45660715e-05
  %v1349 = vmul.f32 %v1293, -1.45660715e-05
  %v1350 = vadd.f32 %v1346, -0.00021337405
  %v1351 = vadd.f32 %v1347, -0.00021337405
  %v1352 = vadd.f32 %v1348, -0.00021337405
  %v1353 = vadd.f32 %v1349, -0.00021337405
  %v1354 = vmul.f32 %v1350, %v1290
  %v1355 = vmul.f32 %v1351, %v1291
  %v1356 = vmul.f32 %v1352, %v1292
  %v1357 = vmul.f32 %v1353, %v1293
  %v1358 = vadd.f32 %v1354, -0.001682827
  %v1359 = vadd.f32 %v1355, -0.001682827
  %v1360 = vadd.f32 %v1356, -0.001682827
  %v1361 = vadd.f32 %v1357, -0.001682827
  %v1362 = vmul.f32 %v1358, %v1290
  %v1363 = vmul.f32 %v1359, %v1291
  %v1364 = vmul.f32 %v1360, %v1292
  %v1365 = vmul.f32 %v1361, %v1293
  %v1366 = vadd.f32 %v1362, -0.0073733293
  %v1367 = vadd.f32 %v1363, -0.0073733293
  %v1368 = vadd.f32 %v1364, -0.0073733293
  %v1369 = vadd.f32 %v1365, -0.0073733293
  %v1370 = vmul.f32 %v1366, %v1290
  %v1371 = vmul.f32 %v1367, %v1291
  %v1372 = vmul.f32 %v1368, %v1292
  %v1373 = vmul.f32 %v1369, %v1293
  %v1374 = vadd.f32 %v1370, -0.014264739
  %v1375 = vadd.f32 %v1371, -0.014264739
  %v1376 = vadd.f32 %v1372, -0.014264739
  %v1377 = vadd.f32 %v1373, -0.014264739
  %v1378 = vrcp.pop %v1374
  %v1379 = vmul.f32 %v1342, %v1378
  %v1380 = vrcp.pop %v1375
  %v1381 = vmul.f32 %v1343, %v1380
  %v1382 = vrcp.pop %v1376
  %v1383 = vmul.f32 %v1344, %v1382
  %v1384 = vrcp.pop %v1377
  %v1385 = vmul.f32 %v1345, %v1384
  %v1386 = vadd.f32 %v1379, 1.0
  %v1387 = vadd.f32 %v1381, 1.0
  %v1388 = vadd.f32 %v1383, 1.0
  %v1389 = vadd.f32 %v1385, 1.0
  %v1390 = vmul.f32 %v1274, %v1386
  %v1391 = vmul.f32 %v1275, %v1387
  %v1392 = vmul.f32 %v1276, %v1388
  %v1393 = vmul.f32 %v1277, %v1389
  %v1395 = vlaneseq
  %v1396 = vshrl.u32 %v1395, 7
  %v1397 = vsub.s32 0, %v1396
  %v1398 = vrot.slane %v1142, %v1397
  %vm1400 = vcmask 261120
  %v1402 = vsel %vm1400, %v1390, 0
  %v1405 = vsel %vm1400, %v1391, 0
  %v1408 = vsel %vm1400, %v1392, 0
  %v1411 = vsel %vm1400, %v1393, 0
  %1413 = vmatprep.subr.mxu0 0.0
  %1414 = vmatpush1.msra.mxu0 %v1137
  %1415 = vmatprep.subr.mxu0 0.0
  %1416 = vmatpush1.msra.mxu0 %v1138
  %1417 = vmatprep.subr.mxu0 0.0
  %1418 = vmatpush1.msra.mxu0 %v1139
  %1419 = vmatprep.subr.mxu0 0.0
  %1420 = vmatpush1.msra.mxu0 %v1140
  %1421 = vmatprep.subr.mxu0 0.0
  %1422 = vmatpush1.msra.mxu0 0.0
  %1423 = vmatprep.subr.mxu0 0.0
  %1424 = vmatpush1.msra.mxu0 0.0
  %1425 = vmatprep.subr.mxu0 0.0
  %1426 = vmatpush1.msra.mxu0 0.0
  %1427 = vmatprep.subr.mxu0 0.0
  %1428 = vmatpush1.msra.mxu0 0.0
  %1429 = vmatprep.subr.mxu0 0.0
  %1430 = vmatpush1.msra.mxu0 0.0
  %1431 = vmatprep.subr.mxu0 0.0
  %1432 = vmatpush1.msra.mxu0 0.0
  %1433 = vmatprep.subr.mxu0 0.0
  %1434 = vmatpush1.msra.mxu0 0.0
  %1435 = vmatprep.subr.mxu0 0.0
  %1436 = vmatpush1.msra.mxu0 0.0
  %1437 = vmatprep.subr.mxu0 0.0
  %1438 = vmatpush1.msra.mxu0 0.0
  %1439 = vmatprep.subr.mxu0 0.0
  %1440 = vmatpush1.msra.mxu0 0.0
  %1441 = vmatprep.subr.mxu0 0.0
  %1442 = vmatpush1.msra.mxu0 0.0
  %1443 = vmatprep.subr.mxu0 0.0
  %1444 = vmatpush1.msra.mxu0 0.0
  %1445 = vmatprep.subr.mxu0 0.0
  %1446 = vmatpush1.msra.mxu0 0.0
  %1447 = vmatprep.subr.mxu0 0.0
  %1448 = vmatpush1.msra.mxu0 0.0
  %1449 = vmatprep.subr.mxu0 0.0
  %1450 = vmatpush1.msra.mxu0 0.0
  %1451 = vmatprep.subr.mxu0 0.0
  %1452 = vmatpush1.msra.mxu0 0.0
  %1453 = vmatprep.subr.mxu0 0.0
  %1454 = vmatpush1.msra.mxu0 0.0
  %1455 = vmatprep.subr.mxu0 0.0
  %1456 = vmatpush1.msra.mxu0 0.0
  %1457 = vmatprep.subr.mxu0 0.0
  %1458 = vmatpush1.msra.mxu0 0.0
  %1459 = vmatprep.subr.mxu0 0.0
  %1460 = vmatpush1.msra.mxu0 0.0
  %1461 = vmatprep.subr.mxu0 0.0
  %1462 = vmatpush1.msra.mxu0 0.0
  %1463 = vmatprep.subr.mxu0 0.0
  %1464 = vmatpush1.msra.mxu0 0.0
  %1465 = vmatprep.subr.mxu0 0.0
  %1466 = vmatpush1.msra.mxu0 0.0
  %1467 = vmatprep.subr.mxu0 0.0
  %1468 = vmatpush1.msra.mxu0 0.0
  %1469 = vmatprep.subr.mxu0 0.0
  %1470 = vmatpush1.msra.mxu0 0.0
  %1471 = vmatprep.subr.mxu0 0.0
  %1472 = vmatpush1.msra.mxu0 0.0
  %1473 = vmatprep.subr.mxu0 0.0
  %1474 = vmatpush1.msra.mxu0 0.0
  %1475 = vmatprep.subr.mxu0 0.0
  %1476 = vmatpush1.msra.mxu0 0.0
  %1477 = vmatprep.mubr.f32.mxu0 0.0
  %1478 = vmatmul.mubr.f32.gmra.mrb[0].mxu0 %v1402
  %v1479 = vpop.f32.mrb[0].mxu0
  %v1480 = vadd.f32 %v1398, %v1479
  %v1481 = vpop.f32.mrb[0].mxu0
  %1482 = vmatprep.mubr.f32.mxu0 0.0
  %1483 = vmatmul.mubr.f32.gmra.mrb[0].mxu0 %v1405
  %v1484 = vpop.f32.mrb[0].mxu0
  %v1485 = vadd.f32 %v1398, %v1484
  %v1486 = vpop.f32.mrb[0].mxu0
  %1487 = vmatprep.mubr.f32.mxu0 0.0
  %1488 = vmatmul.mubr.f32.gmra.mrb[0].mxu0 %v1408
  %v1489 = vpop.f32.mrb[0].mxu0
  %v1490 = vadd.f32 %v1398, %v1489
  %v1491 = vpop.f32.mrb[0].mxu0
  %1492 = vmatprep.mubr.f32.mxu0 0.0
  %1493 = vmatmul.mubr.f32.gmra.mrb[0].mxu0 %v1411
  %v1494 = vpop.f32.mrb[0].mxu0
  %v1495 = vadd.f32 %v1398, %v1494
  %v1496 = vpop.f32.mrb[0].mxu0
  %1497 = vdwg.mxu0
  %v1498 = vadd.f32 %v1480, %v1132
  %v1499 = vadd.f32 %v1485, %v1133
  %v1500 = vadd.f32 %v1490, %v1134
  %v1501 = vadd.f32 %v1495, %v1135
  %v1502 = vmul.f32 %v1498, 0.5
  %v1503 = vmul.f32 %v1499, 0.5
  %v1504 = vmul.f32 %v1500, 0.5
  %v1505 = vmul.f32 %v1501, 0.5
  %v1506 = vmul.f32 %v1498, 0.70710677
  %v1507 = vmul.f32 %v1499, 0.70710677
  %v1508 = vmul.f32 %v1500, 0.70710677
  %v1509 = vmul.f32 %v1501, 0.70710677
  %v1510 = vmax.f32 %v1506, -3.832507
  %v1511 = vmax.f32 %v1507, -3.832507
  %v1512 = vmax.f32 %v1508, -3.832507
  %v1513 = vmax.f32 %v1509, -3.832507
  %v1514 = vmin.f32 %v1510, 3.832507
  %v1515 = vmin.f32 %v1511, 3.832507
  %v1516 = vmin.f32 %v1512, 3.832507
  %v1517 = vmin.f32 %v1513, 3.832507
  %v1518 = vmul.f32 %v1514, %v1514
  %v1519 = vmul.f32 %v1515, %v1515
  %v1520 = vmul.f32 %v1516, %v1516
  %v1521 = vmul.f32 %v1517, %v1517
  %v1522 = vmul.f32 %v1518, -2.7261424e-10
  %v1523 = vmul.f32 %v1519, -2.7261424e-10
  %v1524 = vmul.f32 %v1520, -2.7261424e-10
  %v1525 = vmul.f32 %v1521, -2.7261424e-10
  %v1526 = vadd.f32 %v1522, 2.7706815e-08
  %v1527 = vadd.f32 %v1523, 2.7706815e-08
  %v1528 = vadd.f32 %v1524, 2.7706815e-08
  %v1529 = vadd.f32 %v1525, 2.7706815e-08
  %v1530 = vmul.f32 %v1526, %v1518
  %v1531 = vmul.f32 %v1527, %v1519
  %v1532 = vmul.f32 %v1528, %v1520
  %v1533 = vmul.f32 %v1529, %v1521
  %v1534 = vadd.f32 %v1530, -2.101024e-06
  %v1535 = vadd.f32 %v1531, -2.101024e-06
  %v1536 = vadd.f32 %v1532, -2.101024e-06
  %v1537 = vadd.f32 %v1533, -2.101024e-06
  %v1538 = vmul.f32 %v1534, %v1518
  %v1539 = vmul.f32 %v1535, %v1519
  %v1540 = vmul.f32 %v1536, %v1520
  %v1541 = vmul.f32 %v1537, %v1521
  %v1542 = vadd.f32 %v1538, -5.6925062e-05
  %v1543 = vadd.f32 %v1539, -5.6925062e-05
  %v1544 = vadd.f32 %v1540, -5.6925062e-05
  %v1545 = vadd.f32 %v1541, -5.6925062e-05
  %v1546 = vmul.f32 %v1542, %v1518
  %v1547 = vmul.f32 %v1543, %v1519
  %v1548 = vmul.f32 %v1544, %v1520
  %v1549 = vmul.f32 %v1545, %v1521
  %v1550 = vadd.f32 %v1546, -0.00073499064
  %v1551 = vadd.f32 %v1547, -0.00073499064
  %v1552 = vadd.f32 %v1548, -0.00073499064
  %v1553 = vadd.f32 %v1549, -0.00073499064
  %v1554 = vmul.f32 %v1550, %v1518
  %v1555 = vmul.f32 %v1551, %v1519
  %v1556 = vmul.f32 %v1552, %v1520
  %v1557 = vmul.f32 %v1553, %v1521
  %v1558 = vadd.f32 %v1554, -0.0029546
  %v1559 = vadd.f32 %v1555, -0.0029546
  %v1560 = vadd.f32 %v1556, -0.0029546
  %v1561 = vadd.f32 %v1557, -0.0029546
  %v1562 = vmul.f32 %v1558, %v1518
  %v1563 = vmul.f32 %v1559, %v1519
  %v1564 = vmul.f32 %v1560, %v1520
  %v1565 = vmul.f32 %v1561, %v1521
  %v1566 = vadd.f32 %v1562, -0.016096033
  %v1567 = vadd.f32 %v1563, -0.016096033
  %v1568 = vadd.f32 %v1564, -0.016096033
  %v1569 = vadd.f32 %v1565, -0.016096033
  %v1570 = vmul.f32 %v1566, %v1514
  %v1571 = vmul.f32 %v1567, %v1515
  %v1572 = vmul.f32 %v1568, %v1516
  %v1573 = vmul.f32 %v1569, %v1517
  %v1574 = vmul.f32 %v1518, -1.45660715e-05
  %v1575 = vmul.f32 %v1519, -1.45660715e-05
  %v1576 = vmul.f32 %v1520, -1.45660715e-05
  %v1577 = vmul.f32 %v1521, -1.45660715e-05
  %v1578 = vadd.f32 %v1574, -0.00021337405
  %v1579 = vadd.f32 %v1575, -0.00021337405
  %v1580 = vadd.f32 %v1576, -0.00021337405
  %v1581 = vadd.f32 %v1577, -0.00021337405
  %v1582 = vmul.f32 %v1578, %v1518
  %v1583 = vmul.f32 %v1579, %v1519
  %v1584 = vmul.f32 %v1580, %v1520
  %v1585 = vmul.f32 %v1581, %v1521
  %v1586 = vadd.f32 %v1582, -0.001682827
  %v1587 = vadd.f32 %v1583, -0.001682827
  %v1588 = vadd.f32 %v1584, -0.001682827
  %v1589 = vadd.f32 %v1585, -0.001682827
  %v1590 = vmul.f32 %v1586, %v1518
  %v1591 = vmul.f32 %v1587, %v1519
  %v1592 = vmul.f32 %v1588, %v1520
  %v1593 = vmul.f32 %v1589, %v1521
  %v1594 = vadd.f32 %v1590, -0.0073733293
  %v1595 = vadd.f32 %v1591, -0.0073733293
  %v1596 = vadd.f32 %v1592, -0.0073733293
  %v1597 = vadd.f32 %v1593, -0.0073733293
  %v1598 = vmul.f32 %v1594, %v1518
  %v1599 = vmul.f32 %v1595, %v1519
  %v1600 = vmul.f32 %v1596, %v1520
  %v1601 = vmul.f32 %v1597, %v1521
  %v1602 = vadd.f32 %v1598, -0.014264739
  %v1603 = vadd.f32 %v1599, -0.014264739
  %v1604 = vadd.f32 %v1600, -0.014264739
  %v1605 = vadd.f32 %v1601, -0.014264739
  %v1606 = vrcp.pop %v1602
  %v1607 = vmul.f32 %v1570, %v1606
  %v1608 = vrcp.pop %v1603
  %v1609 = vmul.f32 %v1571, %v1608
  %v1610 = vrcp.pop %v1604
  %v1611 = vmul.f32 %v1572, %v1610
  %v1612 = vrcp.pop %v1605
  %v1613 = vmul.f32 %v1573, %v1612
  %v1614 = vadd.f32 %v1607, 1.0
  %v1615 = vadd.f32 %v1609, 1.0
  %v1616 = vadd.f32 %v1611, 1.0
  %v1617 = vadd.f32 %v1613, 1.0
  %v1618 = vmul.f32 %v1502, %v1614
  %v1619 = vmul.f32 %v1503, %v1615
  %v1620 = vmul.f32 %v1504, %v1616
  %v1621 = vmul.f32 %v1505, %v1617
  %v1622 = vld [vmem:[%s17] sm:$0xff]
  %v1623 = vld [vmem:[%s18] sm:$0xff]
  %v1624 = vld [vmem:[%s18 + $0x8] sm:$0xff]
  %v1625 = vld [vmem:[%s18 + $0x10] sm:$0xff]
  %v1626 = vld [vmem:[%s18 + $0x18] sm:$0xff]
  %v1627 = vld [vmem:[%s19] sm:$0x1f]
  %v1628 = vld [vmem:[%s20] sm:$0x1]
  %v1629 = vlaneseq
  %v1630 = vshrl.u32 %v1629, 7
  %v1631 = vsub.s32 0, %v1630
  %v1632 = vrot.slane %v1627, %v1631
  %v1634 = vsel %vm80, %v1618, 0
  %v1637 = vsel %vm80, %v1619, 0
  %v1640 = vsel %vm80, %v1620, 0
  %v1643 = vsel %vm80, %v1621, 0
  %1645 = vmatprep.subr.mxu0 0.0
  %1646 = vmatpush1.msra.mxu0 %v1622
  %1647 = vmatprep.subr.mxu0 0.0
  %1648 = vmatpush1.msra.mxu0 0.0
  %1649 = vmatprep.subr.mxu0 0.0
  %1650 = vmatpush1.msra.mxu0 0.0
  %1651 = vmatprep.subr.mxu0 0.0
  %1652 = vmatpush1.msra.mxu0 0.0
  %1653 = vmatprep.subr.mxu0 0.0
  %1654 = vmatpush1.msra.mxu0 0.0
  %1655 = vmatprep.subr.mxu0 0.0
  %1656 = vmatpush1.msra.mxu0 0.0
  %1657 = vmatprep.subr.mxu0 0.0
  %1658 = vmatpush1.msra.mxu0 0.0
  %1659 = vmatprep.subr.mxu0 0.0
  %1660 = vmatpush1.msra.mxu0 0.0
  %1661 = vmatprep.subr.mxu0 0.0
  %1662 = vmatpush1.msra.mxu0 0.0
  %1663 = vmatprep.subr.mxu0 0.0
  %1664 = vmatpush1.msra.mxu0 0.0
  %1665 = vmatprep.subr.mxu0 0.0
  %1666 = vmatpush1.msra.mxu0 0.0
  %1667 = vmatprep.subr.mxu0 0.0
  %1668 = vmatpush1.msra.mxu0 0.0
  %1669 = vmatprep.subr.mxu0 0.0
  %1670 = vmatpush1.msra.mxu0 0.0
  %1671 = vmatprep.subr.mxu0 0.0
  %1672 = vmatpush1.msra.mxu0 0.0
  %1673 = vmatprep.subr.mxu0 0.0
  %1674 = vmatpush1.msra.mxu0 0.0
  %1675 = vmatprep.subr.mxu0 0.0
  %1676 = vmatpush1.msra.mxu0 0.0
  %1677 = vmatprep.subr.mxu0 0.0
  %1678 = vmatpush1.msra.mxu0 0.0
  %1679 = vmatprep.subr.mxu0 0.0
  %1680 = vmatpush1.msra.mxu0 0.0
  %1681 = vmatprep.subr.mxu0 0.0
  %1682 = vmatpush1.msra.mxu0 0.0
  %1683 = vmatprep.subr.mxu0 0.0
  %1684 = vmatpush1.msra.mxu0 0.0
  %1685 = vmatprep.subr.mxu0 0.0
  %1686 = vmatpush1.msra.mxu0 0.0
  %1687 = vmatprep.subr.mxu0 0.0
  %1688 = vmatpush1.msra.mxu0 0.0
  %1689 = vmatprep.subr.mxu0 0.0
  %1690 = vmatpush1.msra.mxu0 0.0
  %1691 = vmatprep.subr.mxu0 0.0
  %1692 = vmatpush1.msra.mxu0 0.0
  %1693 = vmatprep.subr.mxu0 0.0
  %1694 = vmatpush1.msra.mxu0 0.0
  %1695 = vmatprep.subr.mxu0 0.0
  %1696 = vmatpush1.msra.mxu0 0.0
  %1697 = vmatprep.subr.mxu0 0.0
  %1698 = vmatpush1.msra.mxu0 0.0
  %1699 = vmatprep.subr.mxu0 0.0
  %1700 = vmatpush1.msra.mxu0 0.0
  %1701 = vmatprep.subr.mxu0 0.0
  %1702 = vmatpush1.msra.mxu0 0.0
  %1703 = vmatprep.subr.mxu0 0.0
  %1704 = vmatpush1.msra.mxu0 0.0
  %1705 = vmatprep.subr.mxu0 0.0
  %1706 = vmatpush1.msra.mxu0 0.0
  %1707 = vmatprep.subr.mxu0 0.0
  %1708 = vmatpush1.msra.mxu0 0.0
  %1709 = vmatprep.mubr.f32.mxu0 0.0
  %1710 = vmatmul.mubr.f32.gmra.mrb[0].mxu0 %v1634
  %v1711 = vpop.f32.mrb[0].mxu0
  %v1712 = vadd.f32 %v1632, %v1711
  %v1713 = vpop.f32.mrb[0].mxu0
  %1714 = vmatprep.mubr.f32.mxu0 0.0
  %1715 = vmatmul.mubr.f32.gmra.mrb[0].mxu0 %v1637
  %v1716 = vpop.f32.mrb[0].mxu0
  %v1717 = vadd.f32 %v1632, %v1716
  %v1718 = vpop.f32.mrb[0].mxu0
  %1719 = vmatprep.mubr.f32.mxu0 0.0
  %1720 = vmatmul.mubr.f32.gmra.mrb[0].mxu0 %v1640
  %v1721 = vpop.f32.mrb[0].mxu0
  %v1722 = vadd.f32 %v1632, %v1721
  %v1723 = vpop.f32.mrb[0].mxu0
  %1724 = vmatprep.mubr.f32.mxu0 0.0
  %1725 = vmatmul.mubr.f32.gmra.mrb[0].mxu0 %v1643
  %v1726 = vpop.f32.mrb[0].mxu0
  %v1727 = vadd.f32 %v1632, %v1726
  %v1728 = vpop.f32.mrb[0].mxu0
  %1729 = vdwg.mxu0
  %v1730 = vlaneseq
  %v1731 = vshrl.u32 %v1730, 7
  %v1732 = vsub.s32 3, %v1731
  %v1733 = vrot.slane %v1627, %v1732
  %v1734 = vsub.f32 %v1712, %v1733
  %v1735 = vsub.f32 %v1717, %v1733
  %v1736 = vsub.f32 %v1722, %v1733
  %v1737 = vsub.f32 %v1727, %v1733
  %v1738 = vadd.f32 %v1627, 1e-05
  %v1739 = vrsqrt.pop %v1738
  %v1741 = vrot.slane %v1739, 3
  %v1743 = vmul.f32 %v1627, %v1741
  %v1744 = vlaneseq
  %v1745 = vshrl.u32 %v1744, 7
  %v1746 = vsub.s32 1, %v1745
  %v1747 = vrot.slane %v1743, %v1746
  %v1748 = vmul.f32 %v1734, %v1747
  %v1749 = vmul.f32 %v1735, %v1747
  %v1750 = vmul.f32 %v1736, %v1747
  %v1751 = vmul.f32 %v1737, %v1747
  %v1752 = vlaneseq
  %v1753 = vshrl.u32 %v1752, 7
  %v1754 = vsub.s32 2, %v1753
  %v1755 = vrot.slane %v1627, %v1754
  %v1756 = vadd.f32 %v1748, %v1755
  %v1757 = vadd.f32 %v1749, %v1755
  %v1758 = vadd.f32 %v1750, %v1755
  %v1759 = vadd.f32 %v1751, %v1755
  %v1760 = vmul.f32 %v1756, 0.5
  %v1761 = vmul.f32 %v1757, 0.5
  %v1762 = vmul.f32 %v1758, 0.5
  %v1763 = vmul.f32 %v1759, 0.5
  %v1764 = vmul.f32 %v1756, 0.70710677
  %v1765 = vmul.f32 %v1757, 0.70710677
  %v1766 = vmul.f32 %v1758, 0.70710677
  %v1767 = vmul.f32 %v1759, 0.70710677
  %v1768 = vmax.f32 %v1764, -3.832507
  %v1769 = vmax.f32 %v1765, -3.832507
  %v1770 = vmax.f32 %v1766, -3.832507
  %v1771 = vmax.f32 %v1767, -3.832507
  %v1772 = vmin.f32 %v1768, 3.832507
  %v1773 = vmin.f32 %v1769, 3.832507
  %v1774 = vmin.f32 %v1770, 3.832507
  %v1775 = vmin.f32 %v1771, 3.832507
  %v1776 = vmul.f32 %v1772, %v1772
  %v1777 = vmul.f32 %v1773, %v1773
  %v1778 = vmul.f32 %v1774, %v1774
  %v1779 = vmul.f32 %v1775, %v1775
  %v1780 = vmul.f32 %v1776, -2.7261424e-10
  %v1781 = vmul.f32 %v1777, -2.7261424e-10
  %v1782 = vmul.f32 %v1778, -2.7261424e-10
  %v1783 = vmul.f32 %v1779, -2.7261424e-10
  %v1784 = vadd.f32 %v1780, 2.7706815e-08
  %v1785 = vadd.f32 %v1781, 2.7706815e-08
  %v1786 = vadd.f32 %v1782, 2.7706815e-08
  %v1787 = vadd.f32 %v1783, 2.7706815e-08
  %v1788 = vmul.f32 %v1784, %v1776
  %v1789 = vmul.f32 %v1785, %v1777
  %v1790 = vmul.f32 %v1786, %v1778
  %v1791 = vmul.f32 %v1787, %v1779
  %v1792 = vadd.f32 %v1788, -2.101024e-06
  %v1793 = vadd.f32 %v1789, -2.101024e-06
  %v1794 = vadd.f32 %v1790, -2.101024e-06
  %v1795 = vadd.f32 %v1791, -2.101024e-06
  %v1796 = vmul.f32 %v1792, %v1776
  %v1797 = vmul.f32 %v1793, %v1777
  %v1798 = vmul.f32 %v1794, %v1778
  %v1799 = vmul.f32 %v1795, %v1779
  %v1800 = vadd.f32 %v1796, -5.6925062e-05
  %v1801 = vadd.f32 %v1797, -5.6925062e-05
  %v1802 = vadd.f32 %v1798, -5.6925062e-05
  %v1803 = vadd.f32 %v1799, -5.6925062e-05
  %v1804 = vmul.f32 %v1800, %v1776
  %v1805 = vmul.f32 %v1801, %v1777
  %v1806 = vmul.f32 %v1802, %v1778
  %v1807 = vmul.f32 %v1803, %v1779
  %v1808 = vadd.f32 %v1804, -0.00073499064
  %v1809 = vadd.f32 %v1805, -0.00073499064
  %v1810 = vadd.f32 %v1806, -0.00073499064
  %v1811 = vadd.f32 %v1807, -0.00073499064
  %v1812 = vmul.f32 %v1808, %v1776
  %v1813 = vmul.f32 %v1809, %v1777
  %v1814 = vmul.f32 %v1810, %v1778
  %v1815 = vmul.f32 %v1811, %v1779
  %v1816 = vadd.f32 %v1812, -0.0029546
  %v1817 = vadd.f32 %v1813, -0.0029546
  %v1818 = vadd.f32 %v1814, -0.0029546
  %v1819 = vadd.f32 %v1815, -0.0029546
  %v1820 = vmul.f32 %v1816, %v1776
  %v1821 = vmul.f32 %v1817, %v1777
  %v1822 = vmul.f32 %v1818, %v1778
  %v1823 = vmul.f32 %v1819, %v1779
  %v1824 = vadd.f32 %v1820, -0.016096033
  %v1825 = vadd.f32 %v1821, -0.016096033
  %v1826 = vadd.f32 %v1822, -0.016096033
  %v1827 = vadd.f32 %v1823, -0.016096033
  %v1828 = vmul.f32 %v1824, %v1772
  %v1829 = vmul.f32 %v1825, %v1773
  %v1830 = vmul.f32 %v1826, %v1774
  %v1831 = vmul.f32 %v1827, %v1775
  %v1832 = vmul.f32 %v1776, -1.45660715e-05
  %v1833 = vmul.f32 %v1777, -1.45660715e-05
  %v1834 = vmul.f32 %v1778, -1.45660715e-05
  %v1835 = vmul.f32 %v1779, -1.45660715e-05
  %v1836 = vadd.f32 %v1832, -0.00021337405
  %v1837 = vadd.f32 %v1833, -0.00021337405
  %v1838 = vadd.f32 %v1834, -0.00021337405
  %v1839 = vadd.f32 %v1835, -0.00021337405
  %v1840 = vmul.f32 %v1836, %v1776
  %v1841 = vmul.f32 %v1837, %v1777
  %v1842 = vmul.f32 %v1838, %v1778
  %v1843 = vmul.f32 %v1839, %v1779
  %v1844 = vadd.f32 %v1840, -0.001682827
  %v1845 = vadd.f32 %v1841, -0.001682827
  %v1846 = vadd.f32 %v1842, -0.001682827
  %v1847 = vadd.f32 %v1843, -0.001682827
  %v1848 = vmul.f32 %v1844, %v1776
  %v1849 = vmul.f32 %v1845, %v1777
  %v1850 = vmul.f32 %v1846, %v1778
  %v1851 = vmul.f32 %v1847, %v1779
  %v1852 = vadd.f32 %v1848, -0.0073733293
  %v1853 = vadd.f32 %v1849, -0.0073733293
  %v1854 = vadd.f32 %v1850, -0.0073733293
  %v1855 = vadd.f32 %v1851, -0.0073733293
  %v1856 = vmul.f32 %v1852, %v1776
  %v1857 = vmul.f32 %v1853, %v1777
  %v1858 = vmul.f32 %v1854, %v1778
  %v1859 = vmul.f32 %v1855, %v1779
  %v1860 = vadd.f32 %v1856, -0.014264739
  %v1861 = vadd.f32 %v1857, -0.014264739
  %v1862 = vadd.f32 %v1858, -0.014264739
  %v1863 = vadd.f32 %v1859, -0.014264739
  %v1864 = vrcp.pop %v1860
  %v1865 = vmul.f32 %v1828, %v1864
  %v1866 = vrcp.pop %v1861
  %v1867 = vmul.f32 %v1829, %v1866
  %v1868 = vrcp.pop %v1862
  %v1869 = vmul.f32 %v1830, %v1868
  %v1870 = vrcp.pop %v1863
  %v1871 = vmul.f32 %v1831, %v1870
  %v1872 = vadd.f32 %v1865, 1.0
  %v1873 = vadd.f32 %v1867, 1.0
  %v1874 = vadd.f32 %v1869, 1.0
  %v1875 = vadd.f32 %v1871, 1.0
  %v1876 = vmul.f32 %v1760, %v1872
  %v1877 = vmul.f32 %v1761, %v1873
  %v1878 = vmul.f32 %v1762, %v1874
  %v1879 = vmul.f32 %v1763, %v1875
  %v1881 = vlaneseq
  %v1882 = vshrl.u32 %v1881, 7
  %v1883 = vsub.s32 0, %v1882
  %v1884 = vrot.slane %v1628, %v1883
  %v1887 = vsel %vm1400, %v1876, 0
  %v1890 = vsel %vm1400, %v1877, 0
  %v1893 = vsel %vm1400, %v1878, 0
  %v1896 = vsel %vm1400, %v1879, 0
  %1898 = vmatprep.subr.mxu0 0.0
  %1899 = vmatpush1.msra.mxu0 %v1623
  %1900 = vmatprep.subr.mxu0 0.0
  %1901 = vmatpush1.msra.mxu0 %v1624
  %1902 = vmatprep.subr.mxu0 0.0
  %1903 = vmatpush1.msra.mxu0 %v1625
  %1904 = vmatprep.subr.mxu0 0.0
  %1905 = vmatpush1.msra.mxu0 %v1626
  %1906 = vmatprep.subr.mxu0 0.0
  %1907 = vmatpush1.msra.mxu0 0.0
  %1908 = vmatprep.subr.mxu0 0.0
  %1909 = vmatpush1.msra.mxu0 0.0
  %1910 = vmatprep.subr.mxu0 0.0
  %1911 = vmatpush1.msra.mxu0 0.0
  %1912 = vmatprep.subr.mxu0 0.0
  %1913 = vmatpush1.msra.mxu0 0.0
  %1914 = vmatprep.subr.mxu0 0.0
  %1915 = vmatpush1.msra.mxu0 0.0
  %1916 = vmatprep.subr.mxu0 0.0
  %1917 = vmatpush1.msra.mxu0 0.0
  %1918 = vmatprep.subr.mxu0 0.0
  %1919 = vmatpush1.msra.mxu0 0.0
  %1920 = vmatprep.subr.mxu0 0.0
  %1921 = vmatpush1.msra.mxu0 0.0
  %1922 = vmatprep.subr.mxu0 0.0
  %1923 = vmatpush1.msra.mxu0 0.0
  %1924 = vmatprep.subr.mxu0 0.0
  %1925 = vmatpush1.msra.mxu0 0.0
  %1926 = vmatprep.subr.mxu0 0.0
  %1927 = vmatpush1.msra.mxu0 0.0
  %1928 = vmatprep.subr.mxu0 0.0
  %1929 = vmatpush1.msra.mxu0 0.0
  %1930 = vmatprep.subr.mxu0 0.0
  %1931 = vmatpush1.msra.mxu0 0.0
  %1932 = vmatprep.subr.mxu0 0.0
  %1933 = vmatpush1.msra.mxu0 0.0
  %1934 = vmatprep.subr.mxu0 0.0
  %1935 = vmatpush1.msra.mxu0 0.0
  %1936 = vmatprep.subr.mxu0 0.0
  %1937 = vmatpush1.msra.mxu0 0.0
  %1938 = vmatprep.subr.mxu0 0.0
  %1939 = vmatpush1.msra.mxu0 0.0
  %1940 = vmatprep.subr.mxu0 0.0
  %1941 = vmatpush1.msra.mxu0 0.0
  %1942 = vmatprep.subr.mxu0 0.0
  %1943 = vmatpush1.msra.mxu0 0.0
  %1944 = vmatprep.subr.mxu0 0.0
  %1945 = vmatpush1.msra.mxu0 0.0
  %1946 = vmatprep.subr.mxu0 0.0
  %1947 = vmatpush1.msra.mxu0 0.0
  %1948 = vmatprep.subr.mxu0 0.0
  %1949 = vmatpush1.msra.mxu0 0.0
  %1950 = vmatprep.subr.mxu0 0.0
  %1951 = vmatpush1.msra.mxu0 0.0
  %1952 = vmatprep.subr.mxu0 0.0
  %1953 = vmatpush1.msra.mxu0 0.0
  %1954 = vmatprep.subr.mxu0 0.0
  %1955 = vmatpush1.msra.mxu0 0.0
  %1956 = vmatprep.subr.mxu0 0.0
  %1957 = vmatpush1.msra.mxu0 0.0
  %1958 = vmatprep.subr.mxu0 0.0
  %1959 = vmatpush1.msra.mxu0 0.0
  %1960 = vmatprep.subr.mxu0 0.0
  %1961 = vmatpush1.msra.mxu0 0.0
  %1962 = vmatprep.mubr.f32.mxu0 0.0
  %1963 = vmatmul.mubr.f32.gmra.mrb[0].mxu0 %v1887
  %v1964 = vpop.f32.mrb[0].mxu0
  %v1965 = vadd.f32 %v1884, %v1964
  %v1966 = vpop.f32.mrb[0].mxu0
  %1967 = vmatprep.mubr.f32.mxu0 0.0
  %1968 = vmatmul.mubr.f32.gmra.mrb[0].mxu0 %v1890
  %v1969 = vpop.f32.mrb[0].mxu0
  %v1970 = vadd.f32 %v1884, %v1969
  %v1971 = vpop.f32.mrb[0].mxu0
  %1972 = vmatprep.mubr.f32.mxu0 0.0
  %1973 = vmatmul.mubr.f32.gmra.mrb[0].mxu0 %v1893
  %v1974 = vpop.f32.mrb[0].mxu0
  %v1975 = vadd.f32 %v1884, %v1974
  %v1976 = vpop.f32.mrb[0].mxu0
  %1977 = vmatprep.mubr.f32.mxu0 0.0
  %1978 = vmatmul.mubr.f32.gmra.mrb[0].mxu0 %v1896
  %v1979 = vpop.f32.mrb[0].mxu0
  %v1980 = vadd.f32 %v1884, %v1979
  %v1981 = vpop.f32.mrb[0].mxu0
  %1982 = vdwg.mxu0
  %v1983 = vadd.f32 %v1965, %v1618
  %v1984 = vadd.f32 %v1970, %v1619
  %v1985 = vadd.f32 %v1975, %v1620
  %v1986 = vadd.f32 %v1980, %v1621
  %v1987 = vadd.f32 %v1132, %v1983
  %v1988 = vadd.f32 %v1133, %v1984
  %v1989 = vadd.f32 %v1134, %v1985
  %v1990 = vadd.f32 %v1135, %v1986
  %1991 = vst.msk [vmem:[%s21] sm:$0xff] %vm80, %v1987
  %1992 = vst.msk [vmem:[%s21 + $0x8] sm:$0xff] %vm80, %v1988
  %1993 = vst.msk [vmem:[%s21 + $0x10] sm:$0xff] %vm80, %v1989
  %1994 = vst.msk [vmem:[%s21 + $0x18] sm:$0xff] %vm80, %v1990
  // Predicated region
  $region86: #{vig_block.7} parent=0 // pred_check
    _
  $region87: #{vig_block.7} parent=0 // pred_check_branch
    %1996 = sbr.rel (0) target = $region89
  $region88: #{vig_block.7} parent=0 // pred_region
    _
  $region89: #{vig_block.7} parent=0 // pred_fallthru
    _
  // Predicated region
  $region90: #{vig_block.7} parent=0 // pred_check
    _
  $region91: #{vig_block.7} parent=0 // pred_check_branch
    %1998 = sbr.rel (0) target = $region93
  $region92: #{vig_block.7} parent=0 // pred_region
    _
  $region93: #{vig_block.7} parent=0 // pred_fallthru
    _

</llo_original>
